<compile_context>
chip_gen: v5e
topology: v5e:2x2
jax: 0.10.0
libtpu: 0.0.40
codegen_flags: <defaults>
</compile_context>

<pallas_src>
import jax
import jax.numpy as jnp
from jax import lax
from jax.experimental import pallas as pl
from jax.experimental.pallas import tpu as pltpu


# ----------------------------------------------------------------------------
# Fused SimpleCNN forward kernel (one image per grid step).
# ----------------------------------------------------------------------------
def _simple_cnn_kernel(p1_ref, w1_ref, b1_ref, w2_ref, b2_ref,
                       wfc1_ref, bfc1_ref, wfc2_ref, bfc2_ref,
                       out_ref,
                       c1_ref, x2_ref, patch2_ref, c2_ref, feat_ref):
    """Refs:
      p1_ref    : (1, 392, 18)  paired conv1 patches; row = h*14 + j (j = w//2),
                                col = s*9 + t, s = w%2, t = dy*3 + dx
      w1_ref    : (18, 64) bf16 block-diag conv1 weights (s-pair on both axes)
      b1_ref    : (1, 64)  f32  conv1 bias duplicated per pair
      w2_ref    : (288, 64) bf16 conv2 im2col weights, row = t*32 + cin
      wfc1_ref  : (3136, 128) bf16, rows in (h, w, c) order
      wfc2_ref  : (128, 10) bf16
      out_ref   : (1, 1, 10) f32 logits
      scratch   : c1 (392,64), x2 (256,32), patch2 (222,288), c2 (222,64),
                  feat (1,3136) — all f32 VMEM.
    """
    f32, bf16 = jnp.float32, jnp.bfloat16

    # ---- conv1 (paired-column form) + bias + ReLU: one MXU dot ------------
    a1 = jnp.dot(p1_ref[0].astype(bf16), w1_ref[...],
                 preferred_element_type=f32)                    # (392, 64)
    c1_ref[...] = jnp.maximum(a1 + b1_ref[...], 0.0)

    # ---- maxpool1 (2x2/2) + zero-pad into the 16x16x32 conv2 input grid ----
    # c1 row h*14+j holds channels of w=2j (lanes 0..31) and w=2j+1 (32..63),
    # so the horizontal max is a lane-slice max and the vertical max pairs two
    # contiguous 14-row blocks.  Everything is contiguous — no strided gathers.
    x2_ref[...] = jnp.zeros(x2_ref.shape, f32)
    for i in range(14):                                          # pooled row i
        seg = c1_ref[28 * i: 28 * i + 28, :]                     # h = 2i, 2i+1
        hp = jnp.maximum(seg[:, 0:32], seg[:, 32:64])            # (28, 32)
        blk = jnp.maximum(hp[0:14, :], hp[14:28, :])             # (14, 32)
        base = (i + 1) * 16
        x2_ref[base + 1: base + 15, :] = blk                     # interior only

    # ---- conv2: im2col built in VMEM, single K=288 MXU dot -----------------
    for t in range(9):
        dy, dx = divmod(t, 3)
        off = dy * 16 + dx
        patch2_ref[:, 32 * t: 32 * t + 32] = x2_ref[off: off + 222, :]
    a2 = jnp.dot(patch2_ref[...].astype(bf16), w2_ref[...],
                 preferred_element_type=f32)                     # (222, 64)
    c2_ref[...] = jnp.maximum(a2 + b2_ref[...], 0.0)

    # ---- maxpool2 (2x2/2) + NHWC flatten straight into the fc1 feature -----
    vm = jnp.maximum(c2_ref[0:206, :], c2_ref[16:222, :])        # vertical max
    hm = jnp.maximum(vm[0:205, :], vm[1:206, :])                 # + horizontal
    for k in range(49):                                          # (h2, w2)
        i2, j2 = divmod(k, 7)
        r = 32 * i2 + 2 * j2                                     # valid pooled row
        feat_ref[0:1, 64 * k: 64 * k + 64] = hm[r: r + 1, :]

    # ---- fc1 + ReLU + fc2 (hidden stays in vregs) ---------------------------
    h = jnp.dot(feat_ref[...].astype(bf16), wfc1_ref[...],
                preferred_element_type=f32)
    h = jnp.maximum(h + bfc1_ref[...], 0.0)                      # (1, 128)
    y = jnp.dot(h.astype(bf16), wfc2_ref[...],
                preferred_element_type=f32) + bfc2_ref[...]      # (1, 10)
    out_ref[0] = y.astype(out_ref.dtype)


def simple_cnn_forward(x, params):
    """x: (B, 1, 28, 28) f32 NCHW (PyTorch layout). Returns (B, 10) f32 logits."""
    B = x.shape[0]

    # Input-side prep (tiny, ~28 KB/image): zero-pad and build the paired
    # conv1 patches.  This is the only XLA glue left in the forward.
    xp = jnp.pad(x[:, 0], ((0, 0), (1, 1), (1, 1)))              # (B, 30, 30)
    taps = [xp[:, dy:dy + 28, dx:dx + 28]
            for dy in range(3) for dx in range(3)]               # t = dy*3 + dx
    p1 = jnp.stack(taps, axis=-1)                                # (B, 28, 28, 9)
    p1 = p1.reshape(B, 28, 14, 2, 9).reshape(B, 392, 18)         # pair w columns

    out = pl.pallas_call(
        _simple_cnn_kernel,
        out_shape=jax.ShapeDtypeStruct((B, 1, 10), jnp.float32),
        grid=(B,),
        in_specs=[
            pl.BlockSpec((1, 392, 18), lambda i: (i, 0, 0)),
            pl.BlockSpec((18, 64), lambda i: (0, 0)),
            pl.BlockSpec((1, 64), lambda i: (0, 0)),
            pl.BlockSpec((288, 64), lambda i: (0, 0)),
            pl.BlockSpec((1, 64), lambda i: (0, 0)),
            pl.BlockSpec((3136, 128), lambda i: (0, 0)),
            pl.BlockSpec((1, 128), lambda i: (0, 0)),
            pl.BlockSpec((128, 10), lambda i: (0, 0)),
            pl.BlockSpec((1, 10), lambda i: (0, 0)),
        ],
        out_specs=pl.BlockSpec((1, 1, 10), lambda i: (i, 0, 0)),
        scratch_shapes=[
            pltpu.VMEM((392, 64), jnp.float32),    # conv1 output (paired cols)
            pltpu.VMEM((256, 32), jnp.float32),    # pooled1, zero-padded 16x16
            pltpu.VMEM((222, 288), jnp.float32),   # conv2 im2col (in VMEM only)
            pltpu.VMEM((222, 64), jnp.float32),    # conv2 output
            pltpu.VMEM((1, 3136), jnp.float32),    # fc1 feature vector
        ],
        compiler_params=pltpu.CompilerParams(
            dimension_semantics=("parallel",),
            vmem_limit_bytes=32 * 1024 * 1024),
    )(p1, params["w1p"], params["b1p"], params["w2"], params["b2"],
      params["wfc1"], params["bfc1"], params["wfc2"], params["bfc2"])
    return out.reshape(B, 10)


# ----------------------------------------------------------------------------
# Parameters: f32 "masters" (for the reference) + kernel-layout bf16 params.
# ----------------------------------------------------------------------------
def init_params(key):
    ks = jax.random.split(key, 8)

    def kaiming(k, shape, fan_in):
        return jax.random.normal(k, shape, jnp.float32) * jnp.sqrt(2.0 / fan_in)

    m = {}
    m["w1"] = kaiming(ks[0], (3, 3, 32), 9)              # Conv2d(1, 32, 3, pad=1)
    m["b1"] = 0.1 * jax.random.normal(ks[1], (32,), jnp.float32)
    m["w2"] = kaiming(ks[2], (3, 3, 32, 64), 9 * 32)     # Conv2d(32, 64, 3, pad=1)
    m["b2"] = 0.1 * jax.random.normal(ks[3], (64,), jnp.float32)
    m["wfc1"] = kaiming(ks[4], (3136, 128), 3136)        # Linear(3136, 128), NHWC rows
    m["bfc1"] = 0.1 * jax.random.normal(ks[5], (128,), jnp.float32)
    m["wfc2"] = kaiming(ks[6], (128, 10), 128)           # Linear(128, 10)
    m["bfc2"] = 0.1 * jax.random.normal(ks[7], (10,), jnp.float32)
    return m


def prepare_params(m):
    """Build kernel-layout parameters (bf16 MXU operands, f32 biases)."""
    w1 = m["w1"].reshape(9, 32)                          # row t = dy*3 + dx
    w1p = jnp.zeros((18, 64), jnp.float32)
    w1p = w1p.at[0:9, 0:32].set(w1).at[9:18, 32:64].set(w1)   # block-diag pair
    return {
        "w1p": w1p.astype(jnp.bfloat16),
        "b1p": jnp.concatenate([m["b1"], m["b1"]]).reshape(1, 64),
        "w2": m["w2"].reshape(288, 64).astype(jnp.bfloat16),   # row = t*32 + cin
        "b2": m["b2"].reshape(1, 64),
        "wfc1": m["wfc1"].astype(jnp.bfloat16),
        "bfc1": m["bfc1"].reshape(1, 128),
        "wfc2": m["wfc2"].astype(jnp.bfloat16),
        "bfc2": m["bfc2"].reshape(1, 10),
    }


# ----------------------------------------------------------------------------
# Pure-JAX f32 reference (PyTorch semantics, same weight-layout convention).
# ----------------------------------------------------------------------------
def reference_forward(x, m):
    B = x.shape[0]
    dn = ("NCHW", "OIHW", "NCHW")
    w1 = jnp.transpose(m["w1"], (2, 0, 1))[:, None]      # (32,1,3,3)
    w2 = jnp.transpose(m["w2"], (3, 2, 0, 1))            # (64,32,3,3)

    y = lax.conv_general_dilated(x, w1, (1, 1), "SAME", dimension_numbers=dn)
    y = jnp.maximum(y + m["b1"][None, :, None, None], 0.0)
    y = lax.reduce_window(y, -jnp.inf, lax.max, (1, 1, 2, 2), (1, 1, 2, 2), "VALID")
    y = lax.conv_general_dilated(y, w2, (1, 1), "SAME", dimension_numbers=dn)
    y = jnp.maximum(y + m["b2"][None, :, None, None], 0.0)
    y = lax.reduce_window(y, -jnp.inf, lax.max, (1, 1, 2, 2), (1, 1, 2, 2), "VALID")
    feat = jnp.transpose(y, (0, 2, 3, 1)).reshape(B, 3136)   # NHWC flatten
    h = jnp.maximum(feat @ m["wfc1"] + m["bfc1"], 0.0)
    return h @ m["wfc2"] + m["bfc2"]


if __name__ == "__main__":
    key = jax.random.PRNGKey(0)
    pkey, xkey = jax.random.split(key)
    masters = init_params(pkey)
    params = prepare_params(masters)
    # Spatial size 28x28 is required by fc1 = Linear(64*7*7, 128); batch=2
    # (even, so both v7x TensorCores get one image each).
    x = jax.random.normal(xkey, (2, 1, 28, 28), jnp.float32)

    fwd = jax.jit(simple_cnn_forward)
    out = fwd(x, params)
    jax.block_until_ready(out)
    assert out.shape == (2, 10) and out.dtype == jnp.float32

    # Sanity check against the f32 reference (bf16 MXU operands => loose tol).
    ref = reference_forward(x, masters)
    err = jnp.max(jnp.abs(out - ref))
    assert jnp.isfinite(err) and err < 2e-1, f"max |err| = {err}"
    print("KERNEL_OK")
</pallas_src>

<mosaic_0001>
module attributes {stable_mosaic.version = 11 : i64} {
  func.func @_simple_cnn_kernel(%arg0: i32, %arg1: memref<1x392x18xf32, #tpu.memory_space<vmem>>, %arg2: memref<18x64xbf16, #tpu.memory_space<vmem>>, %arg3: memref<1x64xf32, #tpu.memory_space<vmem>>, %arg4: memref<288x64xbf16, #tpu.memory_space<vmem>>, %arg5: memref<1x64xf32, #tpu.memory_space<vmem>>, %arg6: memref<3136x128xbf16, #tpu.memory_space<vmem>>, %arg7: memref<1x128xf32, #tpu.memory_space<vmem>>, %arg8: memref<128x10xbf16, #tpu.memory_space<vmem>>, %arg9: memref<1x10xf32, #tpu.memory_space<vmem>>, %arg10: memref<1x1x10xf32, #tpu.memory_space<vmem>>, %arg11: memref<392x64xf32, #tpu.memory_space<vmem>>, %arg12: memref<256x32xf32, #tpu.memory_space<vmem>>, %arg13: memref<222x288xf32, #tpu.memory_space<vmem>>, %arg14: memref<222x64xf32, #tpu.memory_space<vmem>>, %arg15: memref<1x3136xf32, #tpu.memory_space<vmem>>) attributes {dimension_semantics = [#tpu.dimension_semantics<parallel>], iteration_bounds = array<i64: 2>, scalar_prefetch = 0 : i64, scratch_operands = 5 : i64, tpu.core_type = #tpu.core_type<tc>, window_params = [{transform_indices = @transform_0, window_bounds = array<i64: 1, 392, 18>}, {pipeline_mode = #tpu.pipeline_mode<synchronous>, transform_indices = @transform_1, window_bounds = array<i64: 18, 64>}, {pipeline_mode = #tpu.pipeline_mode<synchronous>, transform_indices = @transform_2, window_bounds = array<i64: 1, 64>}, {pipeline_mode = #tpu.pipeline_mode<synchronous>, transform_indices = @transform_3, window_bounds = array<i64: 288, 64>}, {pipeline_mode = #tpu.pipeline_mode<synchronous>, transform_indices = @transform_4, window_bounds = array<i64: 1, 64>}, {pipeline_mode = #tpu.pipeline_mode<synchronous>, transform_indices = @transform_5, window_bounds = array<i64: 3136, 128>}, {pipeline_mode = #tpu.pipeline_mode<synchronous>, transform_indices = @transform_6, window_bounds = array<i64: 1, 128>}, {pipeline_mode = #tpu.pipeline_mode<synchronous>, transform_indices = @transform_7, window_bounds = array<i64: 128, 10>}, {pipeline_mode = #tpu.pipeline_mode<synchronous>, transform_indices = @transform_8, window_bounds = array<i64: 1, 10>}, {transform_indices = @transform_9, window_bounds = array<i64: 1, 1, 10>}]} {
    %c0 = arith.constant 0 : index
    %c0_0 = arith.constant 0 : index
    %c0_1 = arith.constant 0 : index
    %0 = vector.load %arg1[%c0, %c0_0, %c0_1] : memref<1x392x18xf32, #tpu.memory_space<vmem>>, vector<1x392x18xf32>
    %1 = vector.shape_cast %0 : vector<1x392x18xf32> to vector<392x18xf32>
    %2 = arith.truncf %1 : vector<392x18xf32> to vector<392x18xbf16>
    %c0_2 = arith.constant 0 : index
    %c0_3 = arith.constant 0 : index
    %3 = vector.load %arg2[%c0_2, %c0_3] : memref<18x64xbf16, #tpu.memory_space<vmem>>, vector<18x64xbf16>
    %cst = arith.constant dense<0.000000e+00> : vector<392x64xf32>
    %4 = tpu.matmul %2, %3, %cst {dimension_numbers = #tpu.dot_dimension_numbers<[1], [0], [0], [1], [0, 0, 1, 1], [], []>} : vector<392x18xbf16>, vector<18x64xbf16>, vector<392x64xf32> -> vector<392x64xf32>
    %c0_4 = arith.constant 0 : index
    %c0_5 = arith.constant 0 : index
    %5 = vector.load %arg3[%c0_4, %c0_5] : memref<1x64xf32, #tpu.memory_space<vmem>>, vector<1x64xf32>
    %6 = vector.broadcast %5 : vector<1x64xf32> to vector<392x64xf32>
    %7 = arith.addf %4, %6 : vector<392x64xf32>
    %cst_6 = arith.constant 0.000000e+00 : f32
    %8 = vector.broadcast %cst_6 : f32 to vector<392x64xf32>
    %9 = arith.maximumf %7, %8 : vector<392x64xf32>
    %c0_7 = arith.constant 0 : index
    %c0_8 = arith.constant 0 : index
    %10 = vector.load %arg11[%c0_7, %c0_8] : memref<392x64xf32, #tpu.memory_space<vmem>>, vector<392x64xf32>
    tpu.vector_store %arg11[%c0_7, %c0_8], %9 {strides = array<i32>} : memref<392x64xf32, #tpu.memory_space<vmem>>, vector<392x64xf32>,
    %cst_9 = arith.constant 0.000000e+00 : f32
    %11 = vector.broadcast %cst_9 : f32 to vector<256x32xf32>
    %c0_10 = arith.constant 0 : index
    %c0_11 = arith.constant 0 : index
    %12 = vector.load %arg12[%c0_10, %c0_11] : memref<256x32xf32, #tpu.memory_space<vmem>>, vector<256x32xf32>
    tpu.vector_store %arg12[%c0_10, %c0_11], %11 {strides = array<i32>} : memref<256x32xf32, #tpu.memory_space<vmem>>, vector<256x32xf32>,
    %c0_12 = arith.constant 0 : index
    %c0_13 = arith.constant 0 : index
    %13 = vector.load %arg11[%c0_12, %c0_13] : memref<392x64xf32, #tpu.memory_space<vmem>>, vector<28x64xf32>
    %14 = vector.extract_strided_slice %13 {offsets = [0, 0], sizes = [28, 32], strides = [1, 1]} : vector<28x64xf32> to vector<28x32xf32>
    %15 = vector.extract_strided_slice %13 {offsets = [0, 32], sizes = [28, 32], strides = [1, 1]} : vector<28x64xf32> to vector<28x32xf32>
    %16 = arith.maximumf %14, %15 : vector<28x32xf32>
    %17 = vector.extract_strided_slice %16 {offsets = [0, 0], sizes = [14, 32], strides = [1, 1]} : vector<28x32xf32> to vector<14x32xf32>
    %18 = vector.extract_strided_slice %16 {offsets = [14, 0], sizes = [14, 32], strides = [1, 1]} : vector<28x32xf32> to vector<14x32xf32>
    %19 = arith.maximumf %17, %18 : vector<14x32xf32>
    %c17 = arith.constant 17 : index
    %c0_14 = arith.constant 0 : index
    %20 = vector.load %arg12[%c17, %c0_14] : memref<256x32xf32, #tpu.memory_space<vmem>>, vector<14x32xf32>
    tpu.vector_store %arg12[%c17, %c0_14], %19 {strides = array<i32>} : memref<256x32xf32, #tpu.memory_space<vmem>>, vector<14x32xf32>,
    %c28 = arith.constant 28 : index
    %c0_15 = arith.constant 0 : index
    %21 = vector.load %arg11[%c28, %c0_15] : memref<392x64xf32, #tpu.memory_space<vmem>>, vector<28x64xf32>
    %22 = vector.extract_strided_slice %21 {offsets = [0, 0], sizes = [28, 32], strides = [1, 1]} : vector<28x64xf32> to vector<28x32xf32>
    %23 = vector.extract_strided_slice %21 {offsets = [0, 32], sizes = [28, 32], strides = [1, 1]} : vector<28x64xf32> to vector<28x32xf32>
    %24 = arith.maximumf %22, %23 : vector<28x32xf32>
    %25 = vector.extract_strided_slice %24 {offsets = [0, 0], sizes = [14, 32], strides = [1, 1]} : vector<28x32xf32> to vector<14x32xf32>
    %26 = vector.extract_strided_slice %24 {offsets = [14, 0], sizes = [14, 32], strides = [1, 1]} : vector<28x32xf32> to vector<14x32xf32>
    %27 = arith.maximumf %25, %26 : vector<14x32xf32>
    %c33 = arith.constant 33 : index
    %c0_16 = arith.constant 0 : index
    %28 = vector.load %arg12[%c33, %c0_16] : memref<256x32xf32, #tpu.memory_space<vmem>>, vector<14x32xf32>
    tpu.vector_store %arg12[%c33, %c0_16], %27 {strides = array<i32>} : memref<256x32xf32, #tpu.memory_space<vmem>>, vector<14x32xf32>,
    %c56 = arith.constant 56 : index
    %c0_17 = arith.constant 0 : index
    %29 = vector.load %arg11[%c56, %c0_17] : memref<392x64xf32, #tpu.memory_space<vmem>>, vector<28x64xf32>
    %30 = vector.extract_strided_slice %29 {offsets = [0, 0], sizes = [28, 32], strides = [1, 1]} : vector<28x64xf32> to vector<28x32xf32>
    %31 = vector.extract_strided_slice %29 {offsets = [0, 32], sizes = [28, 32], strides = [1, 1]} : vector<28x64xf32> to vector<28x32xf32>
    %32 = arith.maximumf %30, %31 : vector<28x32xf32>
    %33 = vector.extract_strided_slice %32 {offsets = [0, 0], sizes = [14, 32], strides = [1, 1]} : vector<28x32xf32> to vector<14x32xf32>
    %34 = vector.extract_strided_slice %32 {offsets = [14, 0], sizes = [14, 32], strides = [1, 1]} : vector<28x32xf32> to vector<14x32xf32>
    %35 = arith.maximumf %33, %34 : vector<14x32xf32>
    %c49 = arith.constant 49 : index
    %c0_18 = arith.constant 0 : index
    %36 = vector.load %arg12[%c49, %c0_18] : memref<256x32xf32, #tpu.memory_space<vmem>>, vector<14x32xf32>
    tpu.vector_store %arg12[%c49, %c0_18], %35 {strides = array<i32>} : memref<256x32xf32, #tpu.memory_space<vmem>>, vector<14x32xf32>,
    %c84 = arith.constant 84 : index
    %c0_19 = arith.constant 0 : index
    %37 = vector.load %arg11[%c84, %c0_19] : memref<392x64xf32, #tpu.memory_space<vmem>>, vector<28x64xf32>
    %38 = vector.extract_strided_slice %37 {offsets = [0, 0], sizes = [28, 32], strides = [1, 1]} : vector<28x64xf32> to vector<28x32xf32>
    %39 = vector.extract_strided_slice %37 {offsets = [0, 32], sizes = [28, 32], strides = [1, 1]} : vector<28x64xf32> to vector<28x32xf32>
    %40 = arith.maximumf %38, %39 : vector<28x32xf32>
    %41 = vector.extract_strided_slice %40 {offsets = [0, 0], sizes = [14, 32], strides = [1, 1]} : vector<28x32xf32> to vector<14x32xf32>
    %42 = vector.extract_strided_slice %40 {offsets = [14, 0], sizes = [14, 32], strides = [1, 1]} : vector<28x32xf32> to vector<14x32xf32>
    %43 = arith.maximumf %41, %42 : vector<14x32xf32>
    %c65 = arith.constant 65 : index
    %c0_20 = arith.constant 0 : index
    %44 = vector.load %arg12[%c65, %c0_20] : memref<256x32xf32, #tpu.memory_space<vmem>>, vector<14x32xf32>
    tpu.vector_store %arg12[%c65, %c0_20], %43 {strides = array<i32>} : memref<256x32xf32, #tpu.memory_space<vmem>>, vector<14x32xf32>,
    %c112 = arith.constant 112 : index
    %c0_21 = arith.constant 0 : index
    %45 = vector.load %arg11[%c112, %c0_21] : memref<392x64xf32, #tpu.memory_space<vmem>>, vector<28x64xf32>
    %46 = vector.extract_strided_slice %45 {offsets = [0, 0], sizes = [28, 32], strides = [1, 1]} : vector<28x64xf32> to vector<28x32xf32>
    %47 = vector.extract_strided_slice %45 {offsets = [0, 32], sizes = [28, 32], strides = [1, 1]} : vector<28x64xf32> to vector<28x32xf32>
    %48 = arith.maximumf %46, %47 : vector<28x32xf32>
    %49 = vector.extract_strided_slice %48 {offsets = [0, 0], sizes = [14, 32], strides = [1, 1]} : vector<28x32xf32> to vector<14x32xf32>
    %50 = vector.extract_strided_slice %48 {offsets = [14, 0], sizes = [14, 32], strides = [1, 1]} : vector<28x32xf32> to vector<14x32xf32>
    %51 = arith.maximumf %49, %50 : vector<14x32xf32>
    %c81 = arith.constant 81 : index
    %c0_22 = arith.constant 0 : index
    %52 = vector.load %arg12[%c81, %c0_22] : memref<256x32xf32, #tpu.memory_space<vmem>>, vector<14x32xf32>
    tpu.vector_store %arg12[%c81, %c0_22], %51 {strides = array<i32>} : memref<256x32xf32, #tpu.memory_space<vmem>>, vector<14x32xf32>,
    %c140 = arith.constant 140 : index
    %c0_23 = arith.constant 0 : index
    %53 = vector.load %arg11[%c140, %c0_23] : memref<392x64xf32, #tpu.memory_space<vmem>>, vector<28x64xf32>
    %54 = vector.extract_strided_slice %53 {offsets = [0, 0], sizes = [28, 32], strides = [1, 1]} : vector<28x64xf32> to vector<28x32xf32>
    %55 = vector.extract_strided_slice %53 {offsets = [0, 32], sizes = [28, 32], strides = [1, 1]} : vector<28x64xf32> to vector<28x32xf32>
    %56 = arith.maximumf %54, %55 : vector<28x32xf32>
    %57 = vector.extract_strided_slice %56 {offsets = [0, 0], sizes = [14, 32], strides = [1, 1]} : vector<28x32xf32> to vector<14x32xf32>
    %58 = vector.extract_strided_slice %56 {offsets = [14, 0], sizes = [14, 32], strides = [1, 1]} : vector<28x32xf32> to vector<14x32xf32>
    %59 = arith.maximumf %57, %58 : vector<14x32xf32>
    %c97 = arith.constant 97 : index
    %c0_24 = arith.constant 0 : index
    %60 = vector.load %arg12[%c97, %c0_24] : memref<256x32xf32, #tpu.memory_space<vmem>>, vector<14x32xf32>
    tpu.vector_store %arg12[%c97, %c0_24], %59 {strides = array<i32>} : memref<256x32xf32, #tpu.memory_space<vmem>>, vector<14x32xf32>,
    %c168 = arith.constant 168 : index
    %c0_25 = arith.constant 0 : index
    %61 = vector.load %arg11[%c168, %c0_25] : memref<392x64xf32, #tpu.memory_space<vmem>>, vector<28x64xf32>
    %62 = vector.extract_strided_slice %61 {offsets = [0, 0], sizes = [28, 32], strides = [1, 1]} : vector<28x64xf32> to vector<28x32xf32>
    %63 = vector.extract_strided_slice %61 {offsets = [0, 32], sizes = [28, 32], strides = [1, 1]} : vector<28x64xf32> to vector<28x32xf32>
    %64 = arith.maximumf %62, %63 : vector<28x32xf32>
    %65 = vector.extract_strided_slice %64 {offsets = [0, 0], sizes = [14, 32], strides = [1, 1]} : vector<28x32xf32> to vector<14x32xf32>
    %66 = vector.extract_strided_slice %64 {offsets = [14, 0], sizes = [14, 32], strides = [1, 1]} : vector<28x32xf32> to vector<14x32xf32>
    %67 = arith.maximumf %65, %66 : vector<14x32xf32>
    %c113 = arith.constant 113 : index
    %c0_26 = arith.constant 0 : index
    %68 = vector.load %arg12[%c113, %c0_26] : memref<256x32xf32, #tpu.memory_space<vmem>>, vector<14x32xf32>
    tpu.vector_store %arg12[%c113, %c0_26], %67 {strides = array<i32>} : memref<256x32xf32, #tpu.memory_space<vmem>>, vector<14x32xf32>,
    %c196 = arith.constant 196 : index
    %c0_27 = arith.constant 0 : index
    %69 = vector.load %arg11[%c196, %c0_27] : memref<392x64xf32, #tpu.memory_space<vmem>>, vector<28x64xf32>
    %70 = vector.extract_strided_slice %69 {offsets = [0, 0], sizes = [28, 32], strides = [1, 1]} : vector<28x64xf32> to vector<28x32xf32>
    %71 = vector.extract_strided_slice %69 {offsets = [0, 32], sizes = [28, 32], strides = [1, 1]} : vector<28x64xf32> to vector<28x32xf32>
    %72 = arith.maximumf %70, %71 : vector<28x32xf32>
    %73 = vector.extract_strided_slice %72 {offsets = [0, 0], sizes = [14, 32], strides = [1, 1]} : vector<28x32xf32> to vector<14x32xf32>
    %74 = vector.extract_strided_slice %72 {offsets = [14, 0], sizes = [14, 32], strides = [1, 1]} : vector<28x32xf32> to vector<14x32xf32>
    %75 = arith.maximumf %73, %74 : vector<14x32xf32>
    %c129 = arith.constant 129 : index
    %c0_28 = arith.constant 0 : index
    %76 = vector.load %arg12[%c129, %c0_28] : memref<256x32xf32, #tpu.memory_space<vmem>>, vector<14x32xf32>
    tpu.vector_store %arg12[%c129, %c0_28], %75 {strides = array<i32>} : memref<256x32xf32, #tpu.memory_space<vmem>>, vector<14x32xf32>,
    %c224 = arith.constant 224 : index
    %c0_29 = arith.constant 0 : index
    %77 = vector.load %arg11[%c224, %c0_29] : memref<392x64xf32, #tpu.memory_space<vmem>>, vector<28x64xf32>
    %78 = vector.extract_strided_slice %77 {offsets = [0, 0], sizes = [28, 32], strides = [1, 1]} : vector<28x64xf32> to vector<28x32xf32>
    %79 = vector.extract_strided_slice %77 {offsets = [0, 32], sizes = [28, 32], strides = [1, 1]} : vector<28x64xf32> to vector<28x32xf32>
    %80 = arith.maximumf %78, %79 : vector<28x32xf32>
    %81 = vector.extract_strided_slice %80 {offsets = [0, 0], sizes = [14, 32], strides = [1, 1]} : vector<28x32xf32> to vector<14x32xf32>
    %82 = vector.extract_strided_slice %80 {offsets = [14, 0], sizes = [14, 32], strides = [1, 1]} : vector<28x32xf32> to vector<14x32xf32>
    %83 = arith.maximumf %81, %82 : vector<14x32xf32>
    %c145 = arith.constant 145 : index
    %c0_30 = arith.constant 0 : index
    %84 = vector.load %arg12[%c145, %c0_30] : memref<256x32xf32, #tpu.memory_space<vmem>>, vector<14x32xf32>
    tpu.vector_store %arg12[%c145, %c0_30], %83 {strides = array<i32>} : memref<256x32xf32, #tpu.memory_space<vmem>>, vector<14x32xf32>,
    %c252 = arith.constant 252 : index
    %c0_31 = arith.constant 0 : index
    %85 = vector.load %arg11[%c252, %c0_31] : memref<392x64xf32, #tpu.memory_space<vmem>>, vector<28x64xf32>
    %86 = vector.extract_strided_slice %85 {offsets = [0, 0], sizes = [28, 32], strides = [1, 1]} : vector<28x64xf32> to vector<28x32xf32>
    %87 = vector.extract_strided_slice %85 {offsets = [0, 32], sizes = [28, 32], strides = [1, 1]} : vector<28x64xf32> to vector<28x32xf32>
    %88 = arith.maximumf %86, %87 : vector<28x32xf32>
    %89 = vector.extract_strided_slice %88 {offsets = [0, 0], sizes = [14, 32], strides = [1, 1]} : vector<28x32xf32> to vector<14x32xf32>
    %90 = vector.extract_strided_slice %88 {offsets = [14, 0], sizes = [14, 32], strides = [1, 1]} : vector<28x32xf32> to vector<14x32xf32>
    %91 = arith.maximumf %89, %90 : vector<14x32xf32>
    %c161 = arith.constant 161 : index
    %c0_32 = arith.constant 0 : index
    %92 = vector.load %arg12[%c161, %c0_32] : memref<256x32xf32, #tpu.memory_space<vmem>>, vector<14x32xf32>
    tpu.vector_store %arg12[%c161, %c0_32], %91 {strides = array<i32>} : memref<256x32xf32, #tpu.memory_space<vmem>>, vector<14x32xf32>,
    %c280 = arith.constant 280 : index
    %c0_33 = arith.constant 0 : index
    %93 = vector.load %arg11[%c280, %c0_33] : memref<392x64xf32, #tpu.memory_space<vmem>>, vector<28x64xf32>
    %94 = vector.extract_strided_slice %93 {offsets = [0, 0], sizes = [28, 32], strides = [1, 1]} : vector<28x64xf32> to vector<28x32xf32>
    %95 = vector.extract_strided_slice %93 {offsets = [0, 32], sizes = [28, 32], strides = [1, 1]} : vector<28x64xf32> to vector<28x32xf32>
    %96 = arith.maximumf %94, %95 : vector<28x32xf32>
    %97 = vector.extract_strided_slice %96 {offsets = [0, 0], sizes = [14, 32], strides = [1, 1]} : vector<28x32xf32> to vector<14x32xf32>
    %98 = vector.extract_strided_slice %96 {offsets = [14, 0], sizes = [14, 32], strides = [1, 1]} : vector<28x32xf32> to vector<14x32xf32>
    %99 = arith.maximumf %97, %98 : vector<14x32xf32>
    %c177 = arith.constant 177 : index
    %c0_34 = arith.constant 0 : index
    %100 = vector.load %arg12[%c177, %c0_34] : memref<256x32xf32, #tpu.memory_space<vmem>>, vector<14x32xf32>
    tpu.vector_store %arg12[%c177, %c0_34], %99 {strides = array<i32>} : memref<256x32xf32, #tpu.memory_space<vmem>>, vector<14x32xf32>,
    %c308 = arith.constant 308 : index
    %c0_35 = arith.constant 0 : index
    %101 = vector.load %arg11[%c308, %c0_35] : memref<392x64xf32, #tpu.memory_space<vmem>>, vector<28x64xf32>
    %102 = vector.extract_strided_slice %101 {offsets = [0, 0], sizes = [28, 32], strides = [1, 1]} : vector<28x64xf32> to vector<28x32xf32>
    %103 = vector.extract_strided_slice %101 {offsets = [0, 32], sizes = [28, 32], strides = [1, 1]} : vector<28x64xf32> to vector<28x32xf32>
    %104 = arith.maximumf %102, %103 : vector<28x32xf32>
    %105 = vector.extract_strided_slice %104 {offsets = [0, 0], sizes = [14, 32], strides = [1, 1]} : vector<28x32xf32> to vector<14x32xf32>
    %106 = vector.extract_strided_slice %104 {offsets = [14, 0], sizes = [14, 32], strides = [1, 1]} : vector<28x32xf32> to vector<14x32xf32>
    %107 = arith.maximumf %105, %106 : vector<14x32xf32>
    %c193 = arith.constant 193 : index
    %c0_36 = arith.constant 0 : index
    %108 = vector.load %arg12[%c193, %c0_36] : memref<256x32xf32, #tpu.memory_space<vmem>>, vector<14x32xf32>
    tpu.vector_store %arg12[%c193, %c0_36], %107 {strides = array<i32>} : memref<256x32xf32, #tpu.memory_space<vmem>>, vector<14x32xf32>,
    %c336 = arith.constant 336 : index
    %c0_37 = arith.constant 0 : index
    %109 = vector.load %arg11[%c336, %c0_37] : memref<392x64xf32, #tpu.memory_space<vmem>>, vector<28x64xf32>
    %110 = vector.extract_strided_slice %109 {offsets = [0, 0], sizes = [28, 32], strides = [1, 1]} : vector<28x64xf32> to vector<28x32xf32>
    %111 = vector.extract_strided_slice %109 {offsets = [0, 32], sizes = [28, 32], strides = [1, 1]} : vector<28x64xf32> to vector<28x32xf32>
    %112 = arith.maximumf %110, %111 : vector<28x32xf32>
    %113 = vector.extract_strided_slice %112 {offsets = [0, 0], sizes = [14, 32], strides = [1, 1]} : vector<28x32xf32> to vector<14x32xf32>
    %114 = vector.extract_strided_slice %112 {offsets = [14, 0], sizes = [14, 32], strides = [1, 1]} : vector<28x32xf32> to vector<14x32xf32>
    %115 = arith.maximumf %113, %114 : vector<14x32xf32>
    %c209 = arith.constant 209 : index
    %c0_38 = arith.constant 0 : index
    %116 = vector.load %arg12[%c209, %c0_38] : memref<256x32xf32, #tpu.memory_space<vmem>>, vector<14x32xf32>
    tpu.vector_store %arg12[%c209, %c0_38], %115 {strides = array<i32>} : memref<256x32xf32, #tpu.memory_space<vmem>>, vector<14x32xf32>,
    %c364 = arith.constant 364 : index
    %c0_39 = arith.constant 0 : index
    %117 = vector.load %arg11[%c364, %c0_39] : memref<392x64xf32, #tpu.memory_space<vmem>>, vector<28x64xf32>
    %118 = vector.extract_strided_slice %117 {offsets = [0, 0], sizes = [28, 32], strides = [1, 1]} : vector<28x64xf32> to vector<28x32xf32>
    %119 = vector.extract_strided_slice %117 {offsets = [0, 32], sizes = [28, 32], strides = [1, 1]} : vector<28x64xf32> to vector<28x32xf32>
    %120 = arith.maximumf %118, %119 : vector<28x32xf32>
    %121 = vector.extract_strided_slice %120 {offsets = [0, 0], sizes = [14, 32], strides = [1, 1]} : vector<28x32xf32> to vector<14x32xf32>
    %122 = vector.extract_strided_slice %120 {offsets = [14, 0], sizes = [14, 32], strides = [1, 1]} : vector<28x32xf32> to vector<14x32xf32>
    %123 = arith.maximumf %121, %122 : vector<14x32xf32>
    %c225 = arith.constant 225 : index
    %c0_40 = arith.constant 0 : index
    %124 = vector.load %arg12[%c225, %c0_40] : memref<256x32xf32, #tpu.memory_space<vmem>>, vector<14x32xf32>
    tpu.vector_store %arg12[%c225, %c0_40], %123 {strides = array<i32>} : memref<256x32xf32, #tpu.memory_space<vmem>>, vector<14x32xf32>,
    %c0_41 = arith.constant 0 : index
    %c0_42 = arith.constant 0 : index
    %125 = vector.load %arg12[%c0_41, %c0_42] : memref<256x32xf32, #tpu.memory_space<vmem>>, vector<222x32xf32>
    %c0_43 = arith.constant 0 : index
    %c0_44 = arith.constant 0 : index
    %126 = vector.load %arg13[%c0_43, %c0_44] : memref<222x288xf32, #tpu.memory_space<vmem>>, vector<222x32xf32>
    tpu.vector_store %arg13[%c0_43, %c0_44], %125 {strides = array<i32>} : memref<222x288xf32, #tpu.memory_space<vmem>>, vector<222x32xf32>,
    %c1 = arith.constant 1 : index
    %c0_45 = arith.constant 0 : index
    %127 = vector.load %arg12[%c1, %c0_45] : memref<256x32xf32, #tpu.memory_space<vmem>>, vector<222x32xf32>
    %c0_46 = arith.constant 0 : index
    %c32 = arith.constant 32 : index
    %128 = vector.load %arg13[%c0_46, %c32] : memref<222x288xf32, #tpu.memory_space<vmem>>, vector<222x32xf32>
    tpu.vector_store %arg13[%c0_46, %c32], %127 {strides = array<i32>} : memref<222x288xf32, #tpu.memory_space<vmem>>, vector<222x32xf32>,
    %c2 = arith.constant 2 : index
    %c0_47 = arith.constant 0 : index
    %129 = vector.load %arg12[%c2, %c0_47] : memref<256x32xf32, #tpu.memory_space<vmem>>, vector<222x32xf32>
    %c0_48 = arith.constant 0 : index
    %c64 = arith.constant 64 : index
    %130 = vector.load %arg13[%c0_48, %c64] : memref<222x288xf32, #tpu.memory_space<vmem>>, vector<222x32xf32>
    tpu.vector_store %arg13[%c0_48, %c64], %129 {strides = array<i32>} : memref<222x288xf32, #tpu.memory_space<vmem>>, vector<222x32xf32>,
    %c16 = arith.constant 16 : index
    %c0_49 = arith.constant 0 : index
    %131 = vector.load %arg12[%c16, %c0_49] : memref<256x32xf32, #tpu.memory_space<vmem>>, vector<222x32xf32>
    %c0_50 = arith.constant 0 : index
    %c96 = arith.constant 96 : index
    %132 = vector.load %arg13[%c0_50, %c96] : memref<222x288xf32, #tpu.memory_space<vmem>>, vector<222x32xf32>
    tpu.vector_store %arg13[%c0_50, %c96], %131 {strides = array<i32>} : memref<222x288xf32, #tpu.memory_space<vmem>>, vector<222x32xf32>,
    %c17_51 = arith.constant 17 : index
    %c0_52 = arith.constant 0 : index
    %133 = vector.load %arg12[%c17_51, %c0_52] : memref<256x32xf32, #tpu.memory_space<vmem>>, vector<222x32xf32>
    %c0_53 = arith.constant 0 : index
    %c128 = arith.constant 128 : index
    %134 = vector.load %arg13[%c0_53, %c128] : memref<222x288xf32, #tpu.memory_space<vmem>>, vector<222x32xf32>
    tpu.vector_store %arg13[%c0_53, %c128], %133 {strides = array<i32>} : memref<222x288xf32, #tpu.memory_space<vmem>>, vector<222x32xf32>,
    %c18 = arith.constant 18 : index
    %c0_54 = arith.constant 0 : index
    %135 = vector.load %arg12[%c18, %c0_54] : memref<256x32xf32, #tpu.memory_space<vmem>>, vector<222x32xf32>
    %c0_55 = arith.constant 0 : index
    %c160 = arith.constant 160 : index
    %136 = vector.load %arg13[%c0_55, %c160] : memref<222x288xf32, #tpu.memory_space<vmem>>, vector<222x32xf32>
    tpu.vector_store %arg13[%c0_55, %c160], %135 {strides = array<i32>} : memref<222x288xf32, #tpu.memory_space<vmem>>, vector<222x32xf32>,
    %c32_56 = arith.constant 32 : index
    %c0_57 = arith.constant 0 : index
    %137 = vector.load %arg12[%c32_56, %c0_57] : memref<256x32xf32, #tpu.memory_space<vmem>>, vector<222x32xf32>
    %c0_58 = arith.constant 0 : index
    %c192 = arith.constant 192 : index
    %138 = vector.load %arg13[%c0_58, %c192] : memref<222x288xf32, #tpu.memory_space<vmem>>, vector<222x32xf32>
    tpu.vector_store %arg13[%c0_58, %c192], %137 {strides = array<i32>} : memref<222x288xf32, #tpu.memory_space<vmem>>, vector<222x32xf32>,
    %c33_59 = arith.constant 33 : index
    %c0_60 = arith.constant 0 : index
    %139 = vector.load %arg12[%c33_59, %c0_60] : memref<256x32xf32, #tpu.memory_space<vmem>>, vector<222x32xf32>
    %c0_61 = arith.constant 0 : index
    %c224_62 = arith.constant 224 : index
    %140 = vector.load %arg13[%c0_61, %c224_62] : memref<222x288xf32, #tpu.memory_space<vmem>>, vector<222x32xf32>
    tpu.vector_store %arg13[%c0_61, %c224_62], %139 {strides = array<i32>} : memref<222x288xf32, #tpu.memory_space<vmem>>, vector<222x32xf32>,
    %c34 = arith.constant 34 : index
    %c0_63 = arith.constant 0 : index
    %141 = vector.load %arg12[%c34, %c0_63] : memref<256x32xf32, #tpu.memory_space<vmem>>, vector<222x32xf32>
    %c0_64 = arith.constant 0 : index
    %c256 = arith.constant 256 : index
    %142 = vector.load %arg13[%c0_64, %c256] : memref<222x288xf32, #tpu.memory_space<vmem>>, vector<222x32xf32>
    tpu.vector_store %arg13[%c0_64, %c256], %141 {strides = array<i32>} : memref<222x288xf32, #tpu.memory_space<vmem>>, vector<222x32xf32>,
    %c0_65 = arith.constant 0 : index
    %c0_66 = arith.constant 0 : index
    %143 = vector.load %arg13[%c0_65, %c0_66] : memref<222x288xf32, #tpu.memory_space<vmem>>, vector<222x288xf32>
    %144 = arith.truncf %143 : vector<222x288xf32> to vector<222x288xbf16>
    %c0_67 = arith.constant 0 : index
    %c0_68 = arith.constant 0 : index
    %145 = vector.load %arg4[%c0_67, %c0_68] : memref<288x64xbf16, #tpu.memory_space<vmem>>, vector<288x64xbf16>
    %cst_69 = arith.constant dense<0.000000e+00> : vector<222x64xf32>
    %146 = tpu.matmul %144, %145, %cst_69 {dimension_numbers = #tpu.dot_dimension_numbers<[1], [0], [0], [1], [0, 0, 1, 1], [], []>} : vector<222x288xbf16>, vector<288x64xbf16>, vector<222x64xf32> -> vector<222x64xf32>
    %c0_70 = arith.constant 0 : index
    %c0_71 = arith.constant 0 : index
    %147 = vector.load %arg5[%c0_70, %c0_71] : memref<1x64xf32, #tpu.memory_space<vmem>>, vector<1x64xf32>
    %148 = vector.broadcast %147 : vector<1x64xf32> to vector<222x64xf32>
    %149 = arith.addf %146, %148 : vector<222x64xf32>
    %cst_72 = arith.constant 0.000000e+00 : f32
    %150 = vector.broadcast %cst_72 : f32 to vector<222x64xf32>
    %151 = arith.maximumf %149, %150 : vector<222x64xf32>
    %c0_73 = arith.constant 0 : index
    %c0_74 = arith.constant 0 : index
    %152 = vector.load %arg14[%c0_73, %c0_74] : memref<222x64xf32, #tpu.memory_space<vmem>>, vector<222x64xf32>
    tpu.vector_store %arg14[%c0_73, %c0_74], %151 {strides = array<i32>} : memref<222x64xf32, #tpu.memory_space<vmem>>, vector<222x64xf32>,
    %c0_75 = arith.constant 0 : index
    %c0_76 = arith.constant 0 : index
    %153 = vector.load %arg14[%c0_75, %c0_76] : memref<222x64xf32, #tpu.memory_space<vmem>>, vector<206x64xf32>
    %c16_77 = arith.constant 16 : index
    %c0_78 = arith.constant 0 : index
    %154 = vector.load %arg14[%c16_77, %c0_78] : memref<222x64xf32, #tpu.memory_space<vmem>>, vector<206x64xf32>
    %155 = arith.maximumf %153, %154 : vector<206x64xf32>
    %156 = vector.extract_strided_slice %155 {offsets = [0, 0], sizes = [205, 64], strides = [1, 1]} : vector<206x64xf32> to vector<205x64xf32>
    %157 = vector.extract_strided_slice %155 {offsets = [1, 0], sizes = [205, 64], strides = [1, 1]} : vector<206x64xf32> to vector<205x64xf32>
    %158 = arith.maximumf %156, %157 : vector<205x64xf32>
    %159 = vector.extract_strided_slice %158 {offsets = [0, 0], sizes = [1, 64], strides = [1, 1]} : vector<205x64xf32> to vector<1x64xf32>
    %c0_79 = arith.constant 0 : index
    %c0_80 = arith.constant 0 : index
    %160 = vector.load %arg15[%c0_79, %c0_80] : memref<1x3136xf32, #tpu.memory_space<vmem>>, vector<1x64xf32>
    tpu.vector_store %arg15[%c0_79, %c0_80], %159 {strides = array<i32>} : memref<1x3136xf32, #tpu.memory_space<vmem>>, vector<1x64xf32>,
    %161 = vector.extract_strided_slice %158 {offsets = [2, 0], sizes = [1, 64], strides = [1, 1]} : vector<205x64xf32> to vector<1x64xf32>
    %c0_81 = arith.constant 0 : index
    %c64_82 = arith.constant 64 : index
    %162 = vector.load %arg15[%c0_81, %c64_82] : memref<1x3136xf32, #tpu.memory_space<vmem>>, vector<1x64xf32>
    tpu.vector_store %arg15[%c0_81, %c64_82], %161 {strides = array<i32>} : memref<1x3136xf32, #tpu.memory_space<vmem>>, vector<1x64xf32>,
    %163 = vector.extract_strided_slice %158 {offsets = [4, 0], sizes = [1, 64], strides = [1, 1]} : vector<205x64xf32> to vector<1x64xf32>
    %c0_83 = arith.constant 0 : index
    %c128_84 = arith.constant 128 : index
    %164 = vector.load %arg15[%c0_83, %c128_84] : memref<1x3136xf32, #tpu.memory_space<vmem>>, vector<1x64xf32>
    tpu.vector_store %arg15[%c0_83, %c128_84], %163 {strides = array<i32>} : memref<1x3136xf32, #tpu.memory_space<vmem>>, vector<1x64xf32>,
    %165 = vector.extract_strided_slice %158 {offsets = [6, 0], sizes = [1, 64], strides = [1, 1]} : vector<205x64xf32> to vector<1x64xf32>
    %c0_85 = arith.constant 0 : index
    %c192_86 = arith.constant 192 : index
    %166 = vector.load %arg15[%c0_85, %c192_86] : memref<1x3136xf32, #tpu.memory_space<vmem>>, vector<1x64xf32>
    tpu.vector_store %arg15[%c0_85, %c192_86], %165 {strides = array<i32>} : memref<1x3136xf32, #tpu.memory_space<vmem>>, vector<1x64xf32>,
    %167 = vector.extract_strided_slice %158 {offsets = [8, 0], sizes = [1, 64], strides = [1, 1]} : vector<205x64xf32> to vector<1x64xf32>
    %c0_87 = arith.constant 0 : index
    %c256_88 = arith.constant 256 : index
    %168 = vector.load %arg15[%c0_87, %c256_88] : memref<1x3136xf32, #tpu.memory_space<vmem>>, vector<1x64xf32>
    tpu.vector_store %arg15[%c0_87, %c256_88], %167 {strides = array<i32>} : memref<1x3136xf32, #tpu.memory_space<vmem>>, vector<1x64xf32>,
    %169 = vector.extract_strided_slice %158 {offsets = [10, 0], sizes = [1, 64], strides = [1, 1]} : vector<205x64xf32> to vector<1x64xf32>
    %c0_89 = arith.constant 0 : index
    %c320 = arith.constant 320 : index
    %170 = vector.load %arg15[%c0_89, %c320] : memref<1x3136xf32, #tpu.memory_space<vmem>>, vector<1x64xf32>
    tpu.vector_store %arg15[%c0_89, %c320], %169 {strides = array<i32>} : memref<1x3136xf32, #tpu.memory_space<vmem>>, vector<1x64xf32>,
    %171 = vector.extract_strided_slice %158 {offsets = [12, 0], sizes = [1, 64], strides = [1, 1]} : vector<205x64xf32> to vector<1x64xf32>
    %c0_90 = arith.constant 0 : index
    %c384 = arith.constant 384 : index
    %172 = vector.load %arg15[%c0_90, %c384] : memref<1x3136xf32, #tpu.memory_space<vmem>>, vector<1x64xf32>
    tpu.vector_store %arg15[%c0_90, %c384], %171 {strides = array<i32>} : memref<1x3136xf32, #tpu.memory_space<vmem>>, vector<1x64xf32>,
    %173 = vector.extract_strided_slice %158 {offsets = [32, 0], sizes = [1, 64], strides = [1, 1]} : vector<205x64xf32> to vector<1x64xf32>
    %c0_91 = arith.constant 0 : index
    %c448 = arith.constant 448 : index
    %174 = vector.load %arg15[%c0_91, %c448] : memref<1x3136xf32, #tpu.memory_space<vmem>>, vector<1x64xf32>
    tpu.vector_store %arg15[%c0_91, %c448], %173 {strides = array<i32>} : memref<1x3136xf32, #tpu.memory_space<vmem>>, vector<1x64xf32>,
    %175 = vector.extract_strided_slice %158 {offsets = [34, 0], sizes = [1, 64], strides = [1, 1]} : vector<205x64xf32> to vector<1x64xf32>
    %c0_92 = arith.constant 0 : index
    %c512 = arith.constant 512 : index
    %176 = vector.load %arg15[%c0_92, %c512] : memref<1x3136xf32, #tpu.memory_space<vmem>>, vector<1x64xf32>
    tpu.vector_store %arg15[%c0_92, %c512], %175 {strides = array<i32>} : memref<1x3136xf32, #tpu.memory_space<vmem>>, vector<1x64xf32>,
    %177 = vector.extract_strided_slice %158 {offsets = [36, 0], sizes = [1, 64], strides = [1, 1]} : vector<205x64xf32> to vector<1x64xf32>
    %c0_93 = arith.constant 0 : index
    %c576 = arith.constant 576 : index
    %178 = vector.load %arg15[%c0_93, %c576] : memref<1x3136xf32, #tpu.memory_space<vmem>>, vector<1x64xf32>
    tpu.vector_store %arg15[%c0_93, %c576], %177 {strides = array<i32>} : memref<1x3136xf32, #tpu.memory_space<vmem>>, vector<1x64xf32>,
    %179 = vector.extract_strided_slice %158 {offsets = [38, 0], sizes = [1, 64], strides = [1, 1]} : vector<205x64xf32> to vector<1x64xf32>
    %c0_94 = arith.constant 0 : index
    %c640 = arith.constant 640 : index
    %180 = vector.load %arg15[%c0_94, %c640] : memref<1x3136xf32, #tpu.memory_space<vmem>>, vector<1x64xf32>
    tpu.vector_store %arg15[%c0_94, %c640], %179 {strides = array<i32>} : memref<1x3136xf32, #tpu.memory_space<vmem>>, vector<1x64xf32>,
    %181 = vector.extract_strided_slice %158 {offsets = [40, 0], sizes = [1, 64], strides = [1, 1]} : vector<205x64xf32> to vector<1x64xf32>
    %c0_95 = arith.constant 0 : index
    %c704 = arith.constant 704 : index
    %182 = vector.load %arg15[%c0_95, %c704] : memref<1x3136xf32, #tpu.memory_space<vmem>>, vector<1x64xf32>
    tpu.vector_store %arg15[%c0_95, %c704], %181 {strides = array<i32>} : memref<1x3136xf32, #tpu.memory_space<vmem>>, vector<1x64xf32>,
    %183 = vector.extract_strided_slice %158 {offsets = [42, 0], sizes = [1, 64], strides = [1, 1]} : vector<205x64xf32> to vector<1x64xf32>
    %c0_96 = arith.constant 0 : index
    %c768 = arith.constant 768 : index
    %184 = vector.load %arg15[%c0_96, %c768] : memref<1x3136xf32, #tpu.memory_space<vmem>>, vector<1x64xf32>
    tpu.vector_store %arg15[%c0_96, %c768], %183 {strides = array<i32>} : memref<1x3136xf32, #tpu.memory_space<vmem>>, vector<1x64xf32>,
    %185 = vector.extract_strided_slice %158 {offsets = [44, 0], sizes = [1, 64], strides = [1, 1]} : vector<205x64xf32> to vector<1x64xf32>
    %c0_97 = arith.constant 0 : index
    %c832 = arith.constant 832 : index
    %186 = vector.load %arg15[%c0_97, %c832] : memref<1x3136xf32, #tpu.memory_space<vmem>>, vector<1x64xf32>
    tpu.vector_store %arg15[%c0_97, %c832], %185 {strides = array<i32>} : memref<1x3136xf32, #tpu.memory_space<vmem>>, vector<1x64xf32>,
    %187 = vector.extract_strided_slice %158 {offsets = [64, 0], sizes = [1, 64], strides = [1, 1]} : vector<205x64xf32> to vector<1x64xf32>
    %c0_98 = arith.constant 0 : index
    %c896 = arith.constant 896 : index
    %188 = vector.load %arg15[%c0_98, %c896] : memref<1x3136xf32, #tpu.memory_space<vmem>>, vector<1x64xf32>
    tpu.vector_store %arg15[%c0_98, %c896], %187 {strides = array<i32>} : memref<1x3136xf32, #tpu.memory_space<vmem>>, vector<1x64xf32>,
    %189 = vector.extract_strided_slice %158 {offsets = [66, 0], sizes = [1, 64], strides = [1, 1]} : vector<205x64xf32> to vector<1x64xf32>
    %c0_99 = arith.constant 0 : index
    %c960 = arith.constant 960 : index
    %190 = vector.load %arg15[%c0_99, %c960] : memref<1x3136xf32, #tpu.memory_space<vmem>>, vector<1x64xf32>
    tpu.vector_store %arg15[%c0_99, %c960], %189 {strides = array<i32>} : memref<1x3136xf32, #tpu.memory_space<vmem>>, vector<1x64xf32>,
    %191 = vector.extract_strided_slice %158 {offsets = [68, 0], sizes = [1, 64], strides = [1, 1]} : vector<205x64xf32> to vector<1x64xf32>
    %c0_100 = arith.constant 0 : index
    %c1024 = arith.constant 1024 : index
    %192 = vector.load %arg15[%c0_100, %c1024] : memref<1x3136xf32, #tpu.memory_space<vmem>>, vector<1x64xf32>
    tpu.vector_store %arg15[%c0_100, %c1024], %191 {strides = array<i32>} : memref<1x3136xf32, #tpu.memory_space<vmem>>, vector<1x64xf32>,
    %193 = vector.extract_strided_slice %158 {offsets = [70, 0], sizes = [1, 64], strides = [1, 1]} : vector<205x64xf32> to vector<1x64xf32>
    %c0_101 = arith.constant 0 : index
    %c1088 = arith.constant 1088 : index
    %194 = vector.load %arg15[%c0_101, %c1088] : memref<1x3136xf32, #tpu.memory_space<vmem>>, vector<1x64xf32>
    tpu.vector_store %arg15[%c0_101, %c1088], %193 {strides = array<i32>} : memref<1x3136xf32, #tpu.memory_space<vmem>>, vector<1x64xf32>,
    %195 = vector.extract_strided_slice %158 {offsets = [72, 0], sizes = [1, 64], strides = [1, 1]} : vector<205x64xf32> to vector<1x64xf32>
    %c0_102 = arith.constant 0 : index
    %c1152 = arith.constant 1152 : index
    %196 = vector.load %arg15[%c0_102, %c1152] : memref<1x3136xf32, #tpu.memory_space<vmem>>, vector<1x64xf32>
    tpu.vector_store %arg15[%c0_102, %c1152], %195 {strides = array<i32>} : memref<1x3136xf32, #tpu.memory_space<vmem>>, vector<1x64xf32>,
    %197 = vector.extract_strided_slice %158 {offsets = [74, 0], sizes = [1, 64], strides = [1, 1]} : vector<205x64xf32> to vector<1x64xf32>
    %c0_103 = arith.constant 0 : index
    %c1216 = arith.constant 1216 : index
    %198 = vector.load %arg15[%c0_103, %c1216] : memref<1x3136xf32, #tpu.memory_space<vmem>>, vector<1x64xf32>
    tpu.vector_store %arg15[%c0_103, %c1216], %197 {strides = array<i32>} : memref<1x3136xf32, #tpu.memory_space<vmem>>, vector<1x64xf32>,
    %199 = vector.extract_strided_slice %158 {offsets = [76, 0], sizes = [1, 64], strides = [1, 1]} : vector<205x64xf32> to vector<1x64xf32>
    %c0_104 = arith.constant 0 : index
    %c1280 = arith.constant 1280 : index
    %200 = vector.load %arg15[%c0_104, %c1280] : memref<1x3136xf32, #tpu.memory_space<vmem>>, vector<1x64xf32>
    tpu.vector_store %arg15[%c0_104, %c1280], %199 {strides = array<i32>} : memref<1x3136xf32, #tpu.memory_space<vmem>>, vector<1x64xf32>,
    %201 = vector.extract_strided_slice %158 {offsets = [96, 0], sizes = [1, 64], strides = [1, 1]} : vector<205x64xf32> to vector<1x64xf32>
    %c0_105 = arith.constant 0 : index
    %c1344 = arith.constant 1344 : index
    %202 = vector.load %arg15[%c0_105, %c1344] : memref<1x3136xf32, #tpu.memory_space<vmem>>, vector<1x64xf32>
    tpu.vector_store %arg15[%c0_105, %c1344], %201 {strides = array<i32>} : memref<1x3136xf32, #tpu.memory_space<vmem>>, vector<1x64xf32>,
    %203 = vector.extract_strided_slice %158 {offsets = [98, 0], sizes = [1, 64], strides = [1, 1]} : vector<205x64xf32> to vector<1x64xf32>
    %c0_106 = arith.constant 0 : index
    %c1408 = arith.constant 1408 : index
    %204 = vector.load %arg15[%c0_106, %c1408] : memref<1x3136xf32, #tpu.memory_space<vmem>>, vector<1x64xf32>
    tpu.vector_store %arg15[%c0_106, %c1408], %203 {strides = array<i32>} : memref<1x3136xf32, #tpu.memory_space<vmem>>, vector<1x64xf32>,
    %205 = vector.extract_strided_slice %158 {offsets = [100, 0], sizes = [1, 64], strides = [1, 1]} : vector<205x64xf32> to vector<1x64xf32>
    %c0_107 = arith.constant 0 : index
    %c1472 = arith.constant 1472 : index
    %206 = vector.load %arg15[%c0_107, %c1472] : memref<1x3136xf32, #tpu.memory_space<vmem>>, vector<1x64xf32>
    tpu.vector_store %arg15[%c0_107, %c1472], %205 {strides = array<i32>} : memref<1x3136xf32, #tpu.memory_space<vmem>>, vector<1x64xf32>,
    %207 = vector.extract_strided_slice %158 {offsets = [102, 0], sizes = [1, 64], strides = [1, 1]} : vector<205x64xf32> to vector<1x64xf32>
    %c0_108 = arith.constant 0 : index
    %c1536 = arith.constant 1536 : index
    %208 = vector.load %arg15[%c0_108, %c1536] : memref<1x3136xf32, #tpu.memory_space<vmem>>, vector<1x64xf32>
    tpu.vector_store %arg15[%c0_108, %c1536], %207 {strides = array<i32>} : memref<1x3136xf32, #tpu.memory_space<vmem>>, vector<1x64xf32>,
    %209 = vector.extract_strided_slice %158 {offsets = [104, 0], sizes = [1, 64], strides = [1, 1]} : vector<205x64xf32> to vector<1x64xf32>
    %c0_109 = arith.constant 0 : index
    %c1600 = arith.constant 1600 : index
    %210 = vector.load %arg15[%c0_109, %c1600] : memref<1x3136xf32, #tpu.memory_space<vmem>>, vector<1x64xf32>
    tpu.vector_store %arg15[%c0_109, %c1600], %209 {strides = array<i32>} : memref<1x3136xf32, #tpu.memory_space<vmem>>, vector<1x64xf32>,
    %211 = vector.extract_strided_slice %158 {offsets = [106, 0], sizes = [1, 64], strides = [1, 1]} : vector<205x64xf32> to vector<1x64xf32>
    %c0_110 = arith.constant 0 : index
    %c1664 = arith.constant 1664 : index
    %212 = vector.load %arg15[%c0_110, %c1664] : memref<1x3136xf32, #tpu.memory_space<vmem>>, vector<1x64xf32>
    tpu.vector_store %arg15[%c0_110, %c1664], %211 {strides = array<i32>} : memref<1x3136xf32, #tpu.memory_space<vmem>>, vector<1x64xf32>,
    %213 = vector.extract_strided_slice %158 {offsets = [108, 0], sizes = [1, 64], strides = [1, 1]} : vector<205x64xf32> to vector<1x64xf32>
    %c0_111 = arith.constant 0 : index
    %c1728 = arith.constant 1728 : index
    %214 = vector.load %arg15[%c0_111, %c1728] : memref<1x3136xf32, #tpu.memory_space<vmem>>, vector<1x64xf32>
    tpu.vector_store %arg15[%c0_111, %c1728], %213 {strides = array<i32>} : memref<1x3136xf32, #tpu.memory_space<vmem>>, vector<1x64xf32>,
    %215 = vector.extract_strided_slice %158 {offsets = [128, 0], sizes = [1, 64], strides = [1, 1]} : vector<205x64xf32> to vector<1x64xf32>
    %c0_112 = arith.constant 0 : index
    %c1792 = arith.constant 1792 : index
    %216 = vector.load %arg15[%c0_112, %c1792] : memref<1x3136xf32, #tpu.memory_space<vmem>>, vector<1x64xf32>
    tpu.vector_store %arg15[%c0_112, %c1792], %215 {strides = array<i32>} : memref<1x3136xf32, #tpu.memory_space<vmem>>, vector<1x64xf32>,
    %217 = vector.extract_strided_slice %158 {offsets = [130, 0], sizes = [1, 64], strides = [1, 1]} : vector<205x64xf32> to vector<1x64xf32>
    %c0_113 = arith.constant 0 : index
    %c1856 = arith.constant 1856 : index
    %218 = vector.load %arg15[%c0_113, %c1856] : memref<1x3136xf32, #tpu.memory_space<vmem>>, vector<1x64xf32>
    tpu.vector_store %arg15[%c0_113, %c1856], %217 {strides = array<i32>} : memref<1x3136xf32, #tpu.memory_space<vmem>>, vector<1x64xf32>,
    %219 = vector.extract_strided_slice %158 {offsets = [132, 0], sizes = [1, 64], strides = [1, 1]} : vector<205x64xf32> to vector<1x64xf32>
    %c0_114 = arith.constant 0 : index
    %c1920 = arith.constant 1920 : index
    %220 = vector.load %arg15[%c0_114, %c1920] : memref<1x3136xf32, #tpu.memory_space<vmem>>, vector<1x64xf32>
    tpu.vector_store %arg15[%c0_114, %c1920], %219 {strides = array<i32>} : memref<1x3136xf32, #tpu.memory_space<vmem>>, vector<1x64xf32>,
    %221 = vector.extract_strided_slice %158 {offsets = [134, 0], sizes = [1, 64], strides = [1, 1]} : vector<205x64xf32> to vector<1x64xf32>
    %c0_115 = arith.constant 0 : index
    %c1984 = arith.constant 1984 : index
    %222 = vector.load %arg15[%c0_115, %c1984] : memref<1x3136xf32, #tpu.memory_space<vmem>>, vector<1x64xf32>
    tpu.vector_store %arg15[%c0_115, %c1984], %221 {strides = array<i32>} : memref<1x3136xf32, #tpu.memory_space<vmem>>, vector<1x64xf32>,
    %223 = vector.extract_strided_slice %158 {offsets = [136, 0], sizes = [1, 64], strides = [1, 1]} : vector<205x64xf32> to vector<1x64xf32>
    %c0_116 = arith.constant 0 : index
    %c2048 = arith.constant 2048 : index
    %224 = vector.load %arg15[%c0_116, %c2048] : memref<1x3136xf32, #tpu.memory_space<vmem>>, vector<1x64xf32>
    tpu.vector_store %arg15[%c0_116, %c2048], %223 {strides = array<i32>} : memref<1x3136xf32, #tpu.memory_space<vmem>>, vector<1x64xf32>,
    %225 = vector.extract_strided_slice %158 {offsets = [138, 0], sizes = [1, 64], strides = [1, 1]} : vector<205x64xf32> to vector<1x64xf32>
    %c0_117 = arith.constant 0 : index
    %c2112 = arith.constant 2112 : index
    %226 = vector.load %arg15[%c0_117, %c2112] : memref<1x3136xf32, #tpu.memory_space<vmem>>, vector<1x64xf32>
    tpu.vector_store %arg15[%c0_117, %c2112], %225 {strides = array<i32>} : memref<1x3136xf32, #tpu.memory_space<vmem>>, vector<1x64xf32>,
    %227 = vector.extract_strided_slice %158 {offsets = [140, 0], sizes = [1, 64], strides = [1, 1]} : vector<205x64xf32> to vector<1x64xf32>
    %c0_118 = arith.constant 0 : index
    %c2176 = arith.constant 2176 : index
    %228 = vector.load %arg15[%c0_118, %c2176] : memref<1x3136xf32, #tpu.memory_space<vmem>>, vector<1x64xf32>
    tpu.vector_store %arg15[%c0_118, %c2176], %227 {strides = array<i32>} : memref<1x3136xf32, #tpu.memory_space<vmem>>, vector<1x64xf32>,
    %229 = vector.extract_strided_slice %158 {offsets = [160, 0], sizes = [1, 64], strides = [1, 1]} : vector<205x64xf32> to vector<1x64xf32>
    %c0_119 = arith.constant 0 : index
    %c2240 = arith.constant 2240 : index
    %230 = vector.load %arg15[%c0_119, %c2240] : memref<1x3136xf32, #tpu.memory_space<vmem>>, vector<1x64xf32>
    tpu.vector_store %arg15[%c0_119, %c2240], %229 {strides = array<i32>} : memref<1x3136xf32, #tpu.memory_space<vmem>>, vector<1x64xf32>,
    %231 = vector.extract_strided_slice %158 {offsets = [162, 0], sizes = [1, 64], strides = [1, 1]} : vector<205x64xf32> to vector<1x64xf32>
    %c0_120 = arith.constant 0 : index
    %c2304 = arith.constant 2304 : index
    %232 = vector.load %arg15[%c0_120, %c2304] : memref<1x3136xf32, #tpu.memory_space<vmem>>, vector<1x64xf32>
    tpu.vector_store %arg15[%c0_120, %c2304], %231 {strides = array<i32>} : memref<1x3136xf32, #tpu.memory_space<vmem>>, vector<1x64xf32>,
    %233 = vector.extract_strided_slice %158 {offsets = [164, 0], sizes = [1, 64], strides = [1, 1]} : vector<205x64xf32> to vector<1x64xf32>
    %c0_121 = arith.constant 0 : index
    %c2368 = arith.constant 2368 : index
    %234 = vector.load %arg15[%c0_121, %c2368] : memref<1x3136xf32, #tpu.memory_space<vmem>>, vector<1x64xf32>
    tpu.vector_store %arg15[%c0_121, %c2368], %233 {strides = array<i32>} : memref<1x3136xf32, #tpu.memory_space<vmem>>, vector<1x64xf32>,
    %235 = vector.extract_strided_slice %158 {offsets = [166, 0], sizes = [1, 64], strides = [1, 1]} : vector<205x64xf32> to vector<1x64xf32>
    %c0_122 = arith.constant 0 : index
    %c2432 = arith.constant 2432 : index
    %236 = vector.load %arg15[%c0_122, %c2432] : memref<1x3136xf32, #tpu.memory_space<vmem>>, vector<1x64xf32>
    tpu.vector_store %arg15[%c0_122, %c2432], %235 {strides = array<i32>} : memref<1x3136xf32, #tpu.memory_space<vmem>>, vector<1x64xf32>,
    %237 = vector.extract_strided_slice %158 {offsets = [168, 0], sizes = [1, 64], strides = [1, 1]} : vector<205x64xf32> to vector<1x64xf32>
    %c0_123 = arith.constant 0 : index
    %c2496 = arith.constant 2496 : index
    %238 = vector.load %arg15[%c0_123, %c2496] : memref<1x3136xf32, #tpu.memory_space<vmem>>, vector<1x64xf32>
    tpu.vector_store %arg15[%c0_123, %c2496], %237 {strides = array<i32>} : memref<1x3136xf32, #tpu.memory_space<vmem>>, vector<1x64xf32>,
    %239 = vector.extract_strided_slice %158 {offsets = [170, 0], sizes = [1, 64], strides = [1, 1]} : vector<205x64xf32> to vector<1x64xf32>
    %c0_124 = arith.constant 0 : index
    %c2560 = arith.constant 2560 : index
    %240 = vector.load %arg15[%c0_124, %c2560] : memref<1x3136xf32, #tpu.memory_space<vmem>>, vector<1x64xf32>
    tpu.vector_store %arg15[%c0_124, %c2560], %239 {strides = array<i32>} : memref<1x3136xf32, #tpu.memory_space<vmem>>, vector<1x64xf32>,
    %241 = vector.extract_strided_slice %158 {offsets = [172, 0], sizes = [1, 64], strides = [1, 1]} : vector<205x64xf32> to vector<1x64xf32>
    %c0_125 = arith.constant 0 : index
    %c2624 = arith.constant 2624 : index
    %242 = vector.load %arg15[%c0_125, %c2624] : memref<1x3136xf32, #tpu.memory_space<vmem>>, vector<1x64xf32>
    tpu.vector_store %arg15[%c0_125, %c2624], %241 {strides = array<i32>} : memref<1x3136xf32, #tpu.memory_space<vmem>>, vector<1x64xf32>,
    %243 = vector.extract_strided_slice %158 {offsets = [192, 0], sizes = [1, 64], strides = [1, 1]} : vector<205x64xf32> to vector<1x64xf32>
    %c0_126 = arith.constant 0 : index
    %c2688 = arith.constant 2688 : index
    %244 = vector.load %arg15[%c0_126, %c2688] : memref<1x3136xf32, #tpu.memory_space<vmem>>, vector<1x64xf32>
    tpu.vector_store %arg15[%c0_126, %c2688], %243 {strides = array<i32>} : memref<1x3136xf32, #tpu.memory_space<vmem>>, vector<1x64xf32>,
    %245 = vector.extract_strided_slice %158 {offsets = [194, 0], sizes = [1, 64], strides = [1, 1]} : vector<205x64xf32> to vector<1x64xf32>
    %c0_127 = arith.constant 0 : index
    %c2752 = arith.constant 2752 : index
    %246 = vector.load %arg15[%c0_127, %c2752] : memref<1x3136xf32, #tpu.memory_space<vmem>>, vector<1x64xf32>
    tpu.vector_store %arg15[%c0_127, %c2752], %245 {strides = array<i32>} : memref<1x3136xf32, #tpu.memory_space<vmem>>, vector<1x64xf32>,
    %247 = vector.extract_strided_slice %158 {offsets = [196, 0], sizes = [1, 64], strides = [1, 1]} : vector<205x64xf32> to vector<1x64xf32>
    %c0_128 = arith.constant 0 : index
    %c2816 = arith.constant 2816 : index
    %248 = vector.load %arg15[%c0_128, %c2816] : memref<1x3136xf32, #tpu.memory_space<vmem>>, vector<1x64xf32>
    tpu.vector_store %arg15[%c0_128, %c2816], %247 {strides = array<i32>} : memref<1x3136xf32, #tpu.memory_space<vmem>>, vector<1x64xf32>,
    %249 = vector.extract_strided_slice %158 {offsets = [198, 0], sizes = [1, 64], strides = [1, 1]} : vector<205x64xf32> to vector<1x64xf32>
    %c0_129 = arith.constant 0 : index
    %c2880 = arith.constant 2880 : index
    %250 = vector.load %arg15[%c0_129, %c2880] : memref<1x3136xf32, #tpu.memory_space<vmem>>, vector<1x64xf32>
    tpu.vector_store %arg15[%c0_129, %c2880], %249 {strides = array<i32>} : memref<1x3136xf32, #tpu.memory_space<vmem>>, vector<1x64xf32>,
    %251 = vector.extract_strided_slice %158 {offsets = [200, 0], sizes = [1, 64], strides = [1, 1]} : vector<205x64xf32> to vector<1x64xf32>
    %c0_130 = arith.constant 0 : index
    %c2944 = arith.constant 2944 : index
    %252 = vector.load %arg15[%c0_130, %c2944] : memref<1x3136xf32, #tpu.memory_space<vmem>>, vector<1x64xf32>
    tpu.vector_store %arg15[%c0_130, %c2944], %251 {strides = array<i32>} : memref<1x3136xf32, #tpu.memory_space<vmem>>, vector<1x64xf32>,
    %253 = vector.extract_strided_slice %158 {offsets = [202, 0], sizes = [1, 64], strides = [1, 1]} : vector<205x64xf32> to vector<1x64xf32>
    %c0_131 = arith.constant 0 : index
    %c3008 = arith.constant 3008 : index
    %254 = vector.load %arg15[%c0_131, %c3008] : memref<1x3136xf32, #tpu.memory_space<vmem>>, vector<1x64xf32>
    tpu.vector_store %arg15[%c0_131, %c3008], %253 {strides = array<i32>} : memref<1x3136xf32, #tpu.memory_space<vmem>>, vector<1x64xf32>,
    %255 = vector.extract_strided_slice %158 {offsets = [204, 0], sizes = [1, 64], strides = [1, 1]} : vector<205x64xf32> to vector<1x64xf32>
    %c0_132 = arith.constant 0 : index
    %c3072 = arith.constant 3072 : index
    %256 = vector.load %arg15[%c0_132, %c3072] : memref<1x3136xf32, #tpu.memory_space<vmem>>, vector<1x64xf32>
    tpu.vector_store %arg15[%c0_132, %c3072], %255 {strides = array<i32>} : memref<1x3136xf32, #tpu.memory_space<vmem>>, vector<1x64xf32>,
    %c0_133 = arith.constant 0 : index
    %c0_134 = arith.constant 0 : index
    %257 = vector.load %arg15[%c0_133, %c0_134] : memref<1x3136xf32, #tpu.memory_space<vmem>>, vector<1x3136xf32>
    %258 = arith.truncf %257 : vector<1x3136xf32> to vector<1x3136xbf16>
    %c0_135 = arith.constant 0 : index
    %c0_136 = arith.constant 0 : index
    %259 = vector.load %arg6[%c0_135, %c0_136] : memref<3136x128xbf16, #tpu.memory_space<vmem>>, vector<3136x128xbf16>
    %cst_137 = arith.constant dense<0.000000e+00> : vector<1x128xf32>
    %260 = tpu.matmul %258, %259, %cst_137 {dimension_numbers = #tpu.dot_dimension_numbers<[1], [0], [0], [1], [0, 0, 1, 1], [], []>} : vector<1x3136xbf16>, vector<3136x128xbf16>, vector<1x128xf32> -> vector<1x128xf32>
    %c0_138 = arith.constant 0 : index
    %c0_139 = arith.constant 0 : index
    %261 = vector.load %arg7[%c0_138, %c0_139] : memref<1x128xf32, #tpu.memory_space<vmem>>, vector<1x128xf32>
    %262 = arith.addf %260, %261 : vector<1x128xf32>
    %cst_140 = arith.constant 0.000000e+00 : f32
    %263 = vector.broadcast %cst_140 : f32 to vector<1x128xf32>
    %264 = arith.maximumf %262, %263 : vector<1x128xf32>
    %265 = arith.truncf %264 : vector<1x128xf32> to vector<1x128xbf16>
    %c0_141 = arith.constant 0 : index
    %c0_142 = arith.constant 0 : index
    %266 = vector.load %arg8[%c0_141, %c0_142] : memref<128x10xbf16, #tpu.memory_space<vmem>>, vector<128x10xbf16>
    %cst_143 = arith.constant dense<0.000000e+00> : vector<1x10xf32>
    %267 = tpu.matmul %265, %266, %cst_143 {dimension_numbers = #tpu.dot_dimension_numbers<[1], [0], [0], [1], [0, 0, 1, 1], [], []>} : vector<1x128xbf16>, vector<128x10xbf16>, vector<1x10xf32> -> vector<1x10xf32>
    %c0_144 = arith.constant 0 : index
    %c0_145 = arith.constant 0 : index
    %268 = vector.load %arg9[%c0_144, %c0_145] : memref<1x10xf32, #tpu.memory_space<vmem>>, vector<1x10xf32>
    %269 = arith.addf %267, %268 : vector<1x10xf32>
    %c0_146 = arith.constant 0 : index
    %c0_147 = arith.constant 0 : index
    %c0_148 = arith.constant 0 : index
    %270 = vector.load %arg10[%c0_146, %c0_147, %c0_148] : memref<1x1x10xf32, #tpu.memory_space<vmem>>, vector<1x1x10xf32>
    %271 = vector.shape_cast %270 : vector<1x1x10xf32> to vector<1x10xf32>
    %272 = vector.shape_cast %269 : vector<1x10xf32> to vector<1x1x10xf32>
    tpu.vector_store %arg10[%c0_146, %c0_147, %c0_148], %272 {strides = array<i32>} : memref<1x1x10xf32, #tpu.memory_space<vmem>>, vector<1x1x10xf32>,
    return
  }
  func.func @transform_0(%arg0: i32) -> (i32, i32, i32) {
    %c0_i32 = arith.constant 0 : i32
    %c0_i32_0 = arith.constant 0 : i32
    %c0_i32_1 = arith.constant 0 : i32
    return %arg0, %c0_i32, %c0_i32_0 : i32, i32, i32
  }
  func.func @transform_1(%arg0: i32) -> (i32, i32) {
    %c0_i32 = arith.constant 0 : i32
    %c0_i32_0 = arith.constant 0 : i32
    %c0_i32_1 = arith.constant 0 : i32
    return %c0_i32, %c0_i32_0 : i32, i32
  }
  func.func @transform_2(%arg0: i32) -> (i32, i32) {
    %c0_i32 = arith.constant 0 : i32
    %c0_i32_0 = arith.constant 0 : i32
    %c0_i32_1 = arith.constant 0 : i32
    return %c0_i32, %c0_i32_0 : i32, i32
  }
  func.func @transform_3(%arg0: i32) -> (i32, i32) {
    %c0_i32 = arith.constant 0 : i32
    %c0_i32_0 = arith.constant 0 : i32
    %c0_i32_1 = arith.constant 0 : i32
    return %c0_i32, %c0_i32_0 : i32, i32
  }
  func.func @transform_4(%arg0: i32) -> (i32, i32) {
    %c0_i32 = arith.constant 0 : i32
    %c0_i32_0 = arith.constant 0 : i32
    %c0_i32_1 = arith.constant 0 : i32
    return %c0_i32, %c0_i32_0 : i32, i32
  }
  func.func @transform_5(%arg0: i32) -> (i32, i32) {
    %c0_i32 = arith.constant 0 : i32
    %c0_i32_0 = arith.constant 0 : i32
    %c0_i32_1 = arith.constant 0 : i32
    return %c0_i32, %c0_i32_0 : i32, i32
  }
  func.func @transform_6(%arg0: i32) -> (i32, i32) {
    %c0_i32 = arith.constant 0 : i32
    %c0_i32_0 = arith.constant 0 : i32
    %c0_i32_1 = arith.constant 0 : i32
    return %c0_i32, %c0_i32_0 : i32, i32
  }
  func.func @transform_7(%arg0: i32) -> (i32, i32) {
    %c0_i32 = arith.constant 0 : i32
    %c0_i32_0 = arith.constant 0 : i32
    %c0_i32_1 = arith.constant 0 : i32
    return %c0_i32, %c0_i32_0 : i32, i32
  }
  func.func @transform_8(%arg0: i32) -> (i32, i32) {
    %c0_i32 = arith.constant 0 : i32
    %c0_i32_0 = arith.constant 0 : i32
    %c0_i32_1 = arith.constant 0 : i32
    return %c0_i32, %c0_i32_0 : i32, i32
  }
  func.func @transform_9(%arg0: i32) -> (i32, i32, i32) {
    %c0_i32 = arith.constant 0 : i32
    %c0_i32_0 = arith.constant 0 : i32
    %c0_i32_1 = arith.constant 0 : i32
    return %arg0, %c0_i32, %c0_i32_0 : i32, i32, i32
  }
}

</mosaic_0001>

<llo_original>
// kernel: simple_cnn_forward.1
$region0: #{simple_cnn_forward.1}
  #allocation0 [shape = 'u32[]', space=smem, size = 0x4, offset = 0x4, fixed_abs, tag = 'smem constant byte address 0x4 - core index']
  #allocation1 [shape = 'u32[72,128]{1,0:T(1,128)}', space=vmem, size = 0x9000, scoped, tag = 'internal scratch']
  #allocation2 [shape = 'f32[392,64]{1,0:T(8,128)}', space=vmem, size = 0x31000, scoped, tag = 'scratch operand']
  #allocation3 [shape = 'f32[256,32]{1,0:T(8,128)}', space=vmem, size = 0x20000, scoped, tag = 'scratch operand']
  #allocation4 [shape = 'f32[222,288]{1,0:T(8,128)}', space=vmem, size = 0x54000, scoped, tag = 'scratch operand']
  #allocation5 [shape = 'f32[222,64]{1,0:T(8,128)}', space=vmem, size = 0x1c000, scoped, tag = 'scratch operand']
  #allocation6 [shape = 'f32[1,3136]{1,0:T(1,128)}', space=vmem, size = 0x3200, scoped, tag = 'scratch operand']
  %s0 = inlined_call_operand.vmem [shape: f32[2,392,18], index: 0, kind: input, shape index: {}]
  %s1 = inlined_call_operand.vmem [shape: bf16[18,64], index: 1, kind: input, shape index: {}]
  %s2 = inlined_call_operand.vmem [shape: f32[1,64], index: 2, kind: input, shape index: {}]
  %s3 = inlined_call_operand.vmem [shape: bf16[288,64], index: 3, kind: input, shape index: {}]
  %s4 = inlined_call_operand.vmem [shape: f32[1,64], index: 4, kind: input, shape index: {}]
  %s5 = inlined_call_operand.vmem [shape: bf16[3136,128], index: 5, kind: input, shape index: {}]
  %s6 = inlined_call_operand.vmem [shape: f32[1,128], index: 6, kind: input, shape index: {}]
  %s7 = inlined_call_operand.vmem [shape: bf16[128,10], index: 7, kind: input, shape index: {}]
  %s8 = inlined_call_operand.vmem [shape: f32[1,10], index: 8, kind: input, shape index: {}]
  %s9 = inlined_call_operand.hbm [shape: f32[2,1,10], index: 9, kind: output, shape index: {}]
  %s10 = sld [smem:[#allocation0]]
  $region69: #{simple_cnn_forward.1} parent=0
    _
  %s12 = ssub.s32 1, %s10
  %s13 = scalar_select 0, %s12, %s10
  $region1: #{simple_cnn_forward.1} parent=0
    #allocation7 [shape = 'u8[1024]{0}', space=vmem, size = 0x400, scoped, tag = 'output window, operand 0']
    #allocation8 [shape = 's32[2]{0}', space=sflag, size = 0x8, scoped, tag = 'scoped memory for simple_cnn_forward.1']
    %14 = vsyncpa [#allocation8], 0
    %s15 = scalar_lea.sflag [#allocation8], 1
    %16 = vsyncpa %s15, 0
    loop: start=0, step=1, limit=4
    $region2: #{simple_cnn_forward.1} parent=1 // loop_pre_header
      _
    $region3: #{simple_cnn_forward.1} parent=1 // loop_header
      %s18 = sphi 0, %s22
      %p19 = scmp.ge.s32.totalorder %s18, 4
      %s28 = sphi 0, %s30
      %s31 = sphi 0, %s28
      %s32 = sphi 0, %s31
      %s48 = sphi 0, %s32
      %s52 = sphi 0, %s52
      %s54 = sphi 0, %s52
      %s55 = sphi 0, %s54
      %s69 = sphi 0, %s55
      %s73 = sphi 0, %s73
      %s75 = sphi 0, %s73
      %s76 = sphi 0, %s75
      %s90 = sphi 0, %s76
      %s94 = sphi 0, %s94
      %s96 = sphi 0, %s94
      %s97 = sphi 0, %s96
      %s111 = sphi 0, %s97
      %s115 = sphi 0, %s115
      %s117 = sphi 0, %s115
      %s118 = sphi 0, %s117
      %s132 = sphi 0, %s118
      %s136 = sphi 0, %s136
      %s138 = sphi 0, %s136
      %s139 = sphi 0, %s138
      %s153 = sphi 0, %s139
      %s157 = sphi 0, %s157
      %s159 = sphi 0, %s157
      %s160 = sphi 0, %s159
      %s174 = sphi 0, %s160
      %s178 = sphi 0, %s178
      %s180 = sphi 0, %s178
      %s181 = sphi 0, %s180
      %s195 = sphi 0, %s181
      %s199 = sphi 0, %s199
      %s201 = sphi 0, %s199
      %s202 = sphi 0, %s201
      %s216 = sphi 0, %s202
      %s222 = sphi 0, %s224
      %s225 = sphi 0, %s222
      %s226 = sphi 0, %s225
      %s242 = sphi 0, %s226
    $region4: #{simple_cnn_forward.1} parent=1 // loop_header_branch
      %21 = sbr.rel (%p19) target = $region8
    $region5: #{simple_cnn_forward.1} parent=1 // loop_body
      %s23 = ssub.s32 %s18, 1
      %s24 = ssub.s32 %s18, 2
      %s25 = sadd.s32 %s18, 1
      %s26 = ssub.s32 %s18, %s25
      %p27 = scmp.eq.s32.totalorder %s26, 0
      %s29 = sadd.s32 %s28, 1
      %s30 = scalar_select %p27, %s28, %s29
      %p33 = pneg %p27
      %p34 = scmp.eq.s32.totalorder %s18, 1
      %p35 = por %p33, %p34
      %p36 = scmp.ne.s32.totalorder %s28, %s31
      %p37 = scmp.eq.s32.totalorder %s18, 0
      %p38 = por %p36, %p37
      %p39 = scmp.ne.s32.totalorder %s28, %s31
      %p40 = scmp.eq.s32.totalorder %s23, 1
      %p41 = por %p39, %p40
      %p42 = scmp.ne.s32.totalorder %s31, %s32
      %p43 = scmp.eq.s32.totalorder %s23, 0
      %p44 = por %p42, %p43
      %p45 = scmp.ne.s32.totalorder %s31, %s32
      %p46 = scmp.eq.s32.totalorder %s24, 1
      %p47 = por %p45, %p46
      %p49 = scmp.ne.s32.totalorder %s32, %s48
      %p50 = scmp.eq.s32.totalorder %s24, 0
      %p51 = por %p49, %p50
      %s53 = sadd.s32 %s52, 1
      %p56 = scmp.eq.s32.totalorder %s18, 1
      %p57 = scmp.ne.s32.totalorder %s52, %s54
      %p58 = scmp.eq.s32.totalorder %s18, 0
      %p59 = por %p57, %p58
      %p60 = scmp.ne.s32.totalorder %s52, %s54
      %p61 = scmp.eq.s32.totalorder %s23, 1
      %p62 = por %p60, %p61
      %p63 = scmp.ne.s32.totalorder %s54, %s55
      %p64 = scmp.eq.s32.totalorder %s23, 0
      %p65 = por %p63, %p64
      %p66 = scmp.ne.s32.totalorder %s54, %s55
      %p67 = scmp.eq.s32.totalorder %s24, 1
      %p68 = por %p66, %p67
      %p70 = scmp.ne.s32.totalorder %s55, %s69
      %p71 = scmp.eq.s32.totalorder %s24, 0
      %p72 = por %p70, %p71
      %s74 = sadd.s32 %s73, 1
      %p77 = scmp.eq.s32.totalorder %s18, 1
      %p78 = scmp.ne.s32.totalorder %s73, %s75
      %p79 = scmp.eq.s32.totalorder %s18, 0
      %p80 = por %p78, %p79
      %p81 = scmp.ne.s32.totalorder %s73, %s75
      %p82 = scmp.eq.s32.totalorder %s23, 1
      %p83 = por %p81, %p82
      %p84 = scmp.ne.s32.totalorder %s75, %s76
      %p85 = scmp.eq.s32.totalorder %s23, 0
      %p86 = por %p84, %p85
      %p87 = scmp.ne.s32.totalorder %s75, %s76
      %p88 = scmp.eq.s32.totalorder %s24, 1
      %p89 = por %p87, %p88
      %p91 = scmp.ne.s32.totalorder %s76, %s90
      %p92 = scmp.eq.s32.totalorder %s24, 0
      %p93 = por %p91, %p92
      %s95 = sadd.s32 %s94, 1
      %p98 = scmp.eq.s32.totalorder %s18, 1
      %p99 = scmp.ne.s32.totalorder %s94, %s96
      %p100 = scmp.eq.s32.totalorder %s18, 0
      %p101 = por %p99, %p100
      %p102 = scmp.ne.s32.totalorder %s94, %s96
      %p103 = scmp.eq.s32.totalorder %s23, 1
      %p104 = por %p102, %p103
      %p105 = scmp.ne.s32.totalorder %s96, %s97
      %p106 = scmp.eq.s32.totalorder %s23, 0
      %p107 = por %p105, %p106
      %p108 = scmp.ne.s32.totalorder %s96, %s97
      %p109 = scmp.eq.s32.totalorder %s24, 1
      %p110 = por %p108, %p109
      %p112 = scmp.ne.s32.totalorder %s97, %s111
      %p113 = scmp.eq.s32.totalorder %s24, 0
      %p114 = por %p112, %p113
      %s116 = sadd.s32 %s115, 1
      %p119 = scmp.eq.s32.totalorder %s18, 1
      %p120 = scmp.ne.s32.totalorder %s115, %s117
      %p121 = scmp.eq.s32.totalorder %s18, 0
      %p122 = por %p120, %p121
      %p123 = scmp.ne.s32.totalorder %s115, %s117
      %p124 = scmp.eq.s32.totalorder %s23, 1
      %p125 = por %p123, %p124
      %p126 = scmp.ne.s32.totalorder %s117, %s118
      %p127 = scmp.eq.s32.totalorder %s23, 0
      %p128 = por %p126, %p127
      %p129 = scmp.ne.s32.totalorder %s117, %s118
      %p130 = scmp.eq.s32.totalorder %s24, 1
      %p131 = por %p129, %p130
      %p133 = scmp.ne.s32.totalorder %s118, %s132
      %p134 = scmp.eq.s32.totalorder %s24, 0
      %p135 = por %p133, %p134
      %s137 = sadd.s32 %s136, 1
      %p140 = scmp.eq.s32.totalorder %s18, 1
      %p141 = scmp.ne.s32.totalorder %s136, %s138
      %p142 = scmp.eq.s32.totalorder %s18, 0
      %p143 = por %p141, %p142
      %p144 = scmp.ne.s32.totalorder %s136, %s138
      %p145 = scmp.eq.s32.totalorder %s23, 1
      %p146 = por %p144, %p145
      %p147 = scmp.ne.s32.totalorder %s138, %s139
      %p148 = scmp.eq.s32.totalorder %s23, 0
      %p149 = por %p147, %p148
      %p150 = scmp.ne.s32.totalorder %s138, %s139
      %p151 = scmp.eq.s32.totalorder %s24, 1
      %p152 = por %p150, %p151
      %p154 = scmp.ne.s32.totalorder %s139, %s153
      %p155 = scmp.eq.s32.totalorder %s24, 0
      %p156 = por %p154, %p155
      %s158 = sadd.s32 %s157, 1
      %p161 = scmp.eq.s32.totalorder %s18, 1
      %p162 = scmp.ne.s32.totalorder %s157, %s159
      %p163 = scmp.eq.s32.totalorder %s18, 0
      %p164 = por %p162, %p163
      %p165 = scmp.ne.s32.totalorder %s157, %s159
      %p166 = scmp.eq.s32.totalorder %s23, 1
      %p167 = por %p165, %p166
      %p168 = scmp.ne.s32.totalorder %s159, %s160
      %p169 = scmp.eq.s32.totalorder %s23, 0
      %p170 = por %p168, %p169
      %p171 = scmp.ne.s32.totalorder %s159, %s160
      %p172 = scmp.eq.s32.totalorder %s24, 1
      %p173 = por %p171, %p172
      %p175 = scmp.ne.s32.totalorder %s160, %s174
      %p176 = scmp.eq.s32.totalorder %s24, 0
      %p177 = por %p175, %p176
      %s179 = sadd.s32 %s178, 1
      %p182 = scmp.eq.s32.totalorder %s18, 1
      %p183 = scmp.ne.s32.totalorder %s178, %s180
      %p184 = scmp.eq.s32.totalorder %s18, 0
      %p185 = por %p183, %p184
      %p186 = scmp.ne.s32.totalorder %s178, %s180
      %p187 = scmp.eq.s32.totalorder %s23, 1
      %p188 = por %p186, %p187
      %p189 = scmp.ne.s32.totalorder %s180, %s181
      %p190 = scmp.eq.s32.totalorder %s23, 0
      %p191 = por %p189, %p190
      %p192 = scmp.ne.s32.totalorder %s180, %s181
      %p193 = scmp.eq.s32.totalorder %s24, 1
      %p194 = por %p192, %p193
      %p196 = scmp.ne.s32.totalorder %s181, %s195
      %p197 = scmp.eq.s32.totalorder %s24, 0
      %p198 = por %p196, %p197
      %s200 = sadd.s32 %s199, 1
      %p203 = scmp.eq.s32.totalorder %s18, 1
      %p204 = scmp.ne.s32.totalorder %s199, %s201
      %p205 = scmp.eq.s32.totalorder %s18, 0
      %p206 = por %p204, %p205
      %p207 = scmp.ne.s32.totalorder %s199, %s201
      %p208 = scmp.eq.s32.totalorder %s23, 1
      %p209 = por %p207, %p208
      %p210 = scmp.ne.s32.totalorder %s201, %s202
      %p211 = scmp.eq.s32.totalorder %s23, 0
      %p212 = por %p210, %p211
      %p213 = scmp.ne.s32.totalorder %s201, %s202
      %p214 = scmp.eq.s32.totalorder %s24, 1
      %p215 = por %p213, %p214
      %p217 = scmp.ne.s32.totalorder %s202, %s216
      %p218 = scmp.eq.s32.totalorder %s24, 0
      %p219 = por %p217, %p218
      %s220 = ssub.s32 %s18, %s25
      %p221 = scmp.eq.s32.totalorder %s220, 0
      %s223 = sadd.s32 %s222, 1
      %s224 = scalar_select %p221, %s222, %s223
      %p227 = pneg %p221
      %p228 = scmp.eq.s32.totalorder %s18, 1
      %p229 = por %p227, %p228
      %p230 = scmp.ne.s32.totalorder %s222, %s225
      %p231 = scmp.eq.s32.totalorder %s18, 0
      %p232 = por %p230, %p231
      %p233 = scmp.ne.s32.totalorder %s222, %s225
      %p234 = scmp.eq.s32.totalorder %s23, 1
      %p235 = por %p233, %p234
      %p236 = scmp.ne.s32.totalorder %s225, %s226
      %p237 = scmp.eq.s32.totalorder %s23, 0
      %p238 = por %p236, %p237
      %p239 = scmp.ne.s32.totalorder %s225, %s226
      %p240 = scmp.eq.s32.totalorder %s24, 1
      %p241 = por %p239, %p240
      %p243 = scmp.ne.s32.totalorder %s226, %s242
      %p244 = scmp.eq.s32.totalorder %s24, 0
      %p245 = por %p243, %p244
      %p246 = scmp.le.s32.totalorder 1, %s18
      %p247 = scmp.lt.s32.totalorder %s18, 3
      %p248 = pnand %p246, %p247
      %p249 = pneg %p248
      // Predicated region
      $region9: #{simple_cnn_forward.1} parent=5 // pred_check
        _
      $region10: #{simple_cnn_forward.1} parent=5 // pred_check_branch
        %251 = sbr.rel (%p248) target = $region12
      $region11: #{simple_cnn_forward.1} parent=5 // pred_region
        %s252 = ssub.s32 %s18, 1
        // Predicated region
        $region13: #{simple_cnn_forward.1} parent=11 // pred_check
          %p253 = pneg %p65
        $region14: #{simple_cnn_forward.1} parent=11 // pred_check_branch
          %255 = sbr.rel (%p253) target = $region16
        $region15: #{simple_cnn_forward.1} parent=11 // pred_region
          _
        $region16: #{simple_cnn_forward.1} parent=11 // pred_fallthru
          _
        // Predicated region
        $region17: #{simple_cnn_forward.1} parent=11 // pred_check
          %p256 = pneg %p86
        $region18: #{simple_cnn_forward.1} parent=11 // pred_check_branch
          %258 = sbr.rel (%p256) target = $region20
        $region19: #{simple_cnn_forward.1} parent=11 // pred_region
          _
        $region20: #{simple_cnn_forward.1} parent=11 // pred_fallthru
          _
        // Predicated region
        $region21: #{simple_cnn_forward.1} parent=11 // pred_check
          %p259 = pneg %p107
        $region22: #{simple_cnn_forward.1} parent=11 // pred_check_branch
          %261 = sbr.rel (%p259) target = $region24
        $region23: #{simple_cnn_forward.1} parent=11 // pred_region
          _
        $region24: #{simple_cnn_forward.1} parent=11 // pred_fallthru
          _
        // Predicated region
        $region25: #{simple_cnn_forward.1} parent=11 // pred_check
          %p262 = pneg %p128
        $region26: #{simple_cnn_forward.1} parent=11 // pred_check_branch
          %264 = sbr.rel (%p262) target = $region28
        $region27: #{simple_cnn_forward.1} parent=11 // pred_region
          _
        $region28: #{simple_cnn_forward.1} parent=11 // pred_fallthru
          _
        // Predicated region
        $region29: #{simple_cnn_forward.1} parent=11 // pred_check
          %p265 = pneg %p149
        $region30: #{simple_cnn_forward.1} parent=11 // pred_check_branch
          %267 = sbr.rel (%p265) target = $region32
        $region31: #{simple_cnn_forward.1} parent=11 // pred_region
          _
        $region32: #{simple_cnn_forward.1} parent=11 // pred_fallthru
          _
        // Predicated region
        $region33: #{simple_cnn_forward.1} parent=11 // pred_check
          %p268 = pneg %p170
        $region34: #{simple_cnn_forward.1} parent=11 // pred_check_branch
          %270 = sbr.rel (%p268) target = $region36
        $region35: #{simple_cnn_forward.1} parent=11 // pred_region
          _
        $region36: #{simple_cnn_forward.1} parent=11 // pred_fallthru
          _
        // Predicated region
        $region37: #{simple_cnn_forward.1} parent=11 // pred_check
          %p271 = pneg %p191
        $region38: #{simple_cnn_forward.1} parent=11 // pred_check_branch
          %273 = sbr.rel (%p271) target = $region40
        $region39: #{simple_cnn_forward.1} parent=11 // pred_region
          _
        $region40: #{simple_cnn_forward.1} parent=11 // pred_fallthru
          _
        // Predicated region
        $region41: #{simple_cnn_forward.1} parent=11 // pred_check
          %p274 = pneg %p212
        $region42: #{simple_cnn_forward.1} parent=11 // pred_check_branch
          %276 = sbr.rel (%p274) target = $region44
        $region43: #{simple_cnn_forward.1} parent=11 // pred_region
          _
        $region44: #{simple_cnn_forward.1} parent=11 // pred_fallthru
          _
      $region12: #{simple_cnn_forward.1} parent=5 // pred_fallthru
        _
      %p277 = scmp.lt.s32.totalorder %s18, 2
      // Predicated region
      $region45: #{simple_cnn_forward.1} parent=5 // pred_check
        %p278 = pneg %p277
      $region46: #{simple_cnn_forward.1} parent=5 // pred_check_branch
        %280 = sbr.rel (%p278) target = $region48
      $region47: #{simple_cnn_forward.1} parent=5 // pred_region
        // Predicated region
        $region49: #{simple_cnn_forward.1} parent=47 // pred_check
          %p281 = pneg %p38
        $region50: #{simple_cnn_forward.1} parent=47 // pred_check_branch
          %283 = sbr.rel (%p281) target = $region52
        $region51: #{simple_cnn_forward.1} parent=47 // pred_region
          %p284 = scmp.lt.s32.totalorder %s18, 1
          %s285 = scalar_select %p284, %s18, 1
          %s286 = smul.addr %s285, 49
          %s287 = smul.addr %s286, 8
          %s288 = scalar_lea.vmem %s0, %s287
        $region52: #{simple_cnn_forward.1} parent=47 // pred_fallthru
          _
      $region48: #{simple_cnn_forward.1} parent=5 // pred_fallthru
        _
      %p289 = scmp.le.s32.totalorder 1, %s18
      %p290 = scmp.lt.s32.totalorder %s18, 3
      %p291 = pnand %p289, %p290
      %p292 = pneg %p291
      // Predicated region
      $region53: #{simple_cnn_forward.1} parent=5 // pred_check
        _
      $region54: #{simple_cnn_forward.1} parent=5 // pred_check_branch
        %294 = sbr.rel (%p291) target = $region56
      $region55: #{simple_cnn_forward.1} parent=5 // pred_region
        %s295 = ssub.s32 %s18, 1
        %p296 = scmp.lt.s32.totalorder %s23, 1
        %s297 = scalar_select %p296, %s23, 1
        %s298 = smul.addr %s297, 49
        %s299 = smul.addr %s298, 8
        %s300 = scalar_lea.vmem %s0, %s299
        %p301 = pneg %p44
        %p302 = pneg %p41
        %p303 = pneg %p65
        %p304 = pneg %p62
        %p305 = pneg %p86
        %p306 = pneg %p83
        %p307 = pneg %p107
        %p308 = pneg %p104
        %p309 = pneg %p128
        %p310 = pneg %p125
        %p311 = pneg %p149
        %p312 = pneg %p146
        %p313 = pneg %p170
        %p314 = pneg %p167
        %p315 = pneg %p191
        %p316 = pneg %p188
        %p317 = pneg %p212
        %p318 = pneg %p209
        %p319 = pneg %p238
        %p320 = pneg %p235
        %s321 = sand.u32 %s225, 1
        %s322 = scalar_lea.sflag [#allocation8], %s321
        %s323 = sand.u32 %s225, 1
        %s324 = scalar_lea.vmem [#allocation7], %s323
        %p325 = scmp.lt.s32.totalorder %s23, 1
        %s326 = scalar_select %p325, %s23, 1
        %s327 = smul.addr %s326, 49
        %s328 = smul.addr %s327, 8
        %s329 = scalar_lea.vmem %s0, %s328
        %v331 = vld [vmem:[%s329] sm:$0xff]
        %v332 = vld [vmem:[%s329 + $0x8] sm:$0xff]
        %v333 = vld [vmem:[%s329 + $0x10] sm:$0xff]
        %v334 = vld [vmem:[%s329 + $0x18] sm:$0xff]
        %v335 = vld [vmem:[%s329 + $0x20] sm:$0xff]
        %v336 = vld [vmem:[%s329 + $0x28] sm:$0xff]
        %v337 = vld [vmem:[%s329 + $0x30] sm:$0xff]
        %v338 = vld [vmem:[%s329 + $0x38] sm:$0xff]
        %v339 = vld [vmem:[%s329 + $0x40] sm:$0xff]
        %v340 = vld [vmem:[%s329 + $0x48] sm:$0xff]
        %v341 = vld [vmem:[%s329 + $0x50] sm:$0xff]
        %v342 = vld [vmem:[%s329 + $0x58] sm:$0xff]
        %v343 = vld [vmem:[%s329 + $0x60] sm:$0xff]
        %v344 = vld [vmem:[%s329 + $0x68] sm:$0xff]
        %v345 = vld [vmem:[%s329 + $0x70] sm:$0xff]
        %v346 = vld [vmem:[%s329 + $0x78] sm:$0xff]
        %v347 = vld [vmem:[%s329 + $0x80] sm:$0xff]
        %v348 = vld [vmem:[%s329 + $0x88] sm:$0xff]
        %v349 = vld [vmem:[%s329 + $0x90] sm:$0xff]
        %v350 = vld [vmem:[%s329 + $0x98] sm:$0xff]
        %v351 = vld [vmem:[%s329 + $0xa0] sm:$0xff]
        %v352 = vld [vmem:[%s329 + $0xa8] sm:$0xff]
        %v353 = vld [vmem:[%s329 + $0xb0] sm:$0xff]
        %v354 = vld [vmem:[%s329 + $0xb8] sm:$0xff]
        %v355 = vld [vmem:[%s329 + $0xc0] sm:$0xff]
        %v356 = vld [vmem:[%s329 + $0xc8] sm:$0xff]
        %v357 = vld [vmem:[%s329 + $0xd0] sm:$0xff]
        %v358 = vld [vmem:[%s329 + $0xd8] sm:$0xff]
        %v359 = vld [vmem:[%s329 + $0xe0] sm:$0xff]
        %v360 = vld [vmem:[%s329 + $0xe8] sm:$0xff]
        %v361 = vld [vmem:[%s329 + $0xf0] sm:$0xff]
        %v362 = vld [vmem:[%s329 + $0xf8] sm:$0xff]
        %v363 = vld [vmem:[%s329 + $0x100] sm:$0xff]
        %v364 = vld [vmem:[%s329 + $0x108] sm:$0xff]
        %v365 = vld [vmem:[%s329 + $0x110] sm:$0xff]
        %v366 = vld [vmem:[%s329 + $0x118] sm:$0xff]
        %v367 = vld [vmem:[%s329 + $0x120] sm:$0xff]
        %v368 = vld [vmem:[%s329 + $0x128] sm:$0xff]
        %v369 = vld [vmem:[%s329 + $0x130] sm:$0xff]
        %v370 = vld [vmem:[%s329 + $0x138] sm:$0xff]
        %v371 = vld [vmem:[%s329 + $0x140] sm:$0xff]
        %v372 = vld [vmem:[%s329 + $0x148] sm:$0xff]
        %v373 = vld [vmem:[%s329 + $0x150] sm:$0xff]
        %v374 = vld [vmem:[%s329 + $0x158] sm:$0xff]
        %v375 = vld [vmem:[%s329 + $0x160] sm:$0xff]
        %v376 = vld [vmem:[%s329 + $0x168] sm:$0xff]
        %v377 = vld [vmem:[%s329 + $0x170] sm:$0xff]
        %v378 = vld [vmem:[%s329 + $0x178] sm:$0xff]
        %v379 = vld [vmem:[%s329 + $0x180] sm:$0xff]
        %v380 = vpack.c.bf16 %v332, %v331
        %v381 = vpack.c.bf16 %v334, %v333
        %v382 = vpack.c.bf16 %v336, %v335
        %v383 = vpack.c.bf16 %v338, %v337
        %v384 = vpack.c.bf16 %v340, %v339
        %v385 = vpack.c.bf16 %v342, %v341
        %v386 = vpack.c.bf16 %v344, %v343
        %v387 = vpack.c.bf16 %v346, %v345
        %v388 = vpack.c.bf16 %v348, %v347
        %v389 = vpack.c.bf16 %v350, %v349
        %v390 = vpack.c.bf16 %v352, %v351
        %v391 = vpack.c.bf16 %v354, %v353
        %v392 = vpack.c.bf16 %v356, %v355
        %v393 = vpack.c.bf16 %v358, %v357
        %v394 = vpack.c.bf16 %v360, %v359
        %v395 = vpack.c.bf16 %v362, %v361
        %v396 = vpack.c.bf16 %v364, %v363
        %v397 = vpack.c.bf16 %v366, %v365
        %v398 = vpack.c.bf16 %v368, %v367
        %v399 = vpack.c.bf16 %v370, %v369
        %v400 = vpack.c.bf16 %v372, %v371
        %v401 = vpack.c.bf16 %v374, %v373
        %v402 = vpack.c.bf16 %v376, %v375
        %v403 = vpack.c.bf16 %v378, %v377
        %v404 = vpack.c.bf16 %v379, %v379
        %v405 = vld [vmem:[%s1] sm:$0xf]
        %v406 = vld [vmem:[%s1 + $0x4] sm:$0xf]
        %v407 = vld [vmem:[%s1 + $0x8] sm:$0x1]
        %v408 = vld [vmem:[%s2] sm:$0x1]
        %v410 = vperm.slane %v408, 0
        %v415 = vunpack.c.l.b16 %v405
        %v416 = vunpack.c.l.b16 %v406
        %v417 = vunpack.c.l.b16 %v407
        %v418 = vpack.c.b16 %v416, %v415
        %v419 = vpack.c.b16 %v417, %v417
        %vm421 = vcmask 146432
        %v423 = vsel %vm421, %v380, 0
        %v426 = vsel %vm421, %v381, 0
        %v429 = vsel %vm421, %v382, 0
        %v432 = vsel %vm421, %v383, 0
        %v435 = vsel %vm421, %v384, 0
        %v438 = vsel %vm421, %v385, 0
        %v441 = vsel %vm421, %v386, 0
        %v444 = vsel %vm421, %v387, 0
        %v447 = vsel %vm421, %v388, 0
        %v450 = vsel %vm421, %v389, 0
        %v453 = vsel %vm421, %v390, 0
        %v456 = vsel %vm421, %v391, 0
        %v459 = vsel %vm421, %v392, 0
        %v462 = vsel %vm421, %v393, 0
        %v465 = vsel %vm421, %v394, 0
        %v468 = vsel %vm421, %v395, 0
        %v471 = vsel %vm421, %v396, 0
        %v474 = vsel %vm421, %v397, 0
        %v477 = vsel %vm421, %v398, 0
        %v480 = vsel %vm421, %v399, 0
        %v483 = vsel %vm421, %v400, 0
        %v486 = vsel %vm421, %v401, 0
        %v489 = vsel %vm421, %v402, 0
        %v492 = vsel %vm421, %v403, 0
        %v495 = vsel %vm421, %v404, 0
        %vm497 = vcmask 1040384
        %v499 = vsel %vm497, %v419, 0
        %501 = vmatpush.bf16.msra.mxu0 0
        %502 = vmatpush.bf16.msra.mxu0 0
        %503 = vmatpush.bf16.msra.mxu0 0
        %504 = vmatpush.bf16.msra.mxu0 0
        %505 = vmatpush.bf16.msra.mxu0 0
        %506 = vmatpush.bf16.msra.mxu0 0
        %507 = vmatpush.bf16.msra.mxu0 %v499
        %508 = vmatpush.bf16.msra.mxu0 %v418
        %509 = vmatmul.bf16.gmra.mxu0 %v423
        %v510 = vpop.f32.mrf.mxu0
        %v511 = vadd.f32 %v410, %v510
        %v512 = vpop.f32.mrf.mxu0
        %v513 = vadd.f32 %v410, %v512
        %514 = vmatmul.bf16.gmra.mxu0 %v426
        %v515 = vpop.f32.mrf.mxu0
        %v516 = vadd.f32 %v410, %v515
        %v517 = vpop.f32.mrf.mxu0
        %v518 = vadd.f32 %v410, %v517
        %519 = vmatmul.bf16.gmra.mxu0 %v429
        %v520 = vpop.f32.mrf.mxu0
        %v521 = vadd.f32 %v410, %v520
        %v522 = vpop.f32.mrf.mxu0
        %v523 = vadd.f32 %v410, %v522
        %524 = vmatmul.bf16.gmra.mxu0 %v432
        %v525 = vpop.f32.mrf.mxu0
        %v526 = vadd.f32 %v410, %v525
        %v527 = vpop.f32.mrf.mxu0
        %v528 = vadd.f32 %v410, %v527
        %529 = vmatmul.bf16.gmra.mxu0 %v435
        %v530 = vpop.f32.mrf.mxu0
        %v531 = vadd.f32 %v410, %v530
        %v532 = vpop.f32.mrf.mxu0
        %v533 = vadd.f32 %v410, %v532
        %534 = vmatmul.bf16.gmra.mxu0 %v438
        %v535 = vpop.f32.mrf.mxu0
        %v536 = vadd.f32 %v410, %v535
        %v537 = vpop.f32.mrf.mxu0
        %v538 = vadd.f32 %v410, %v537
        %539 = vmatmul.bf16.gmra.mxu0 %v441
        %v540 = vpop.f32.mrf.mxu0
        %v541 = vadd.f32 %v410, %v540
        %v542 = vpop.f32.mrf.mxu0
        %v543 = vadd.f32 %v410, %v542
        %544 = vmatmul.bf16.gmra.mxu0 %v444
        %v545 = vpop.f32.mrf.mxu0
        %v546 = vadd.f32 %v410, %v545
        %v547 = vpop.f32.mrf.mxu0
        %v548 = vadd.f32 %v410, %v547
        %549 = vmatmul.bf16.gmra.mxu0 %v447
        %v550 = vpop.f32.mrf.mxu0
        %v551 = vadd.f32 %v410, %v550
        %v552 = vpop.f32.mrf.mxu0
        %v553 = vadd.f32 %v410, %v552
        %554 = vmatmul.bf16.gmra.mxu0 %v450
        %v555 = vpop.f32.mrf.mxu0
        %v556 = vadd.f32 %v410, %v555
        %v557 = vpop.f32.mrf.mxu0
        %v558 = vadd.f32 %v410, %v557
        %559 = vmatmul.bf16.gmra.mxu0 %v453
        %v560 = vpop.f32.mrf.mxu0
        %v561 = vadd.f32 %v410, %v560
        %v562 = vpop.f32.mrf.mxu0
        %v563 = vadd.f32 %v410, %v562
        %564 = vmatmul.bf16.gmra.mxu0 %v456
        %v565 = vpop.f32.mrf.mxu0
        %v566 = vadd.f32 %v410, %v565
        %v567 = vpop.f32.mrf.mxu0
        %v568 = vadd.f32 %v410, %v567
        %569 = vmatmul.bf16.gmra.mxu0 %v459
        %v570 = vpop.f32.mrf.mxu0
        %v571 = vadd.f32 %v410, %v570
        %v572 = vpop.f32.mrf.mxu0
        %v573 = vadd.f32 %v410, %v572
        %574 = vmatmul.bf16.gmra.mxu0 %v462
        %v575 = vpop.f32.mrf.mxu0
        %v576 = vadd.f32 %v410, %v575
        %v577 = vpop.f32.mrf.mxu0
        %v578 = vadd.f32 %v410, %v577
        %579 = vmatmul.bf16.gmra.mxu0 %v465
        %v580 = vpop.f32.mrf.mxu0
        %v581 = vadd.f32 %v410, %v580
        %v582 = vpop.f32.mrf.mxu0
        %v583 = vadd.f32 %v410, %v582
        %584 = vmatmul.bf16.gmra.mxu0 %v468
        %v585 = vpop.f32.mrf.mxu0
        %v586 = vadd.f32 %v410, %v585
        %v587 = vpop.f32.mrf.mxu0
        %v588 = vadd.f32 %v410, %v587
        %589 = vmatmul.bf16.gmra.mxu0 %v471
        %v590 = vpop.f32.mrf.mxu0
        %v591 = vadd.f32 %v410, %v590
        %v592 = vpop.f32.mrf.mxu0
        %v593 = vadd.f32 %v410, %v592
        %594 = vmatmul.bf16.gmra.mxu0 %v474
        %v595 = vpop.f32.mrf.mxu0
        %v596 = vadd.f32 %v410, %v595
        %v597 = vpop.f32.mrf.mxu0
        %v598 = vadd.f32 %v410, %v597
        %599 = vmatmul.bf16.gmra.mxu0 %v477
        %v600 = vpop.f32.mrf.mxu0
        %v601 = vadd.f32 %v410, %v600
        %v602 = vpop.f32.mrf.mxu0
        %v603 = vadd.f32 %v410, %v602
        %604 = vmatmul.bf16.gmra.mxu0 %v480
        %v605 = vpop.f32.mrf.mxu0
        %v606 = vadd.f32 %v410, %v605
        %v607 = vpop.f32.mrf.mxu0
        %v608 = vadd.f32 %v410, %v607
        %609 = vmatmul.bf16.gmra.mxu0 %v483
        %v610 = vpop.f32.mrf.mxu0
        %v611 = vadd.f32 %v410, %v610
        %v612 = vpop.f32.mrf.mxu0
        %v613 = vadd.f32 %v410, %v612
        %614 = vmatmul.bf16.gmra.mxu0 %v486
        %v615 = vpop.f32.mrf.mxu0
        %v616 = vadd.f32 %v410, %v615
        %v617 = vpop.f32.mrf.mxu0
        %v618 = vadd.f32 %v410, %v617
        %619 = vmatmul.bf16.gmra.mxu0 %v489
        %v620 = vpop.f32.mrf.mxu0
        %v621 = vadd.f32 %v410, %v620
        %v622 = vpop.f32.mrf.mxu0
        %v623 = vadd.f32 %v410, %v622
        %624 = vmatmul.bf16.gmra.mxu0 %v492
        %v625 = vpop.f32.mrf.mxu0
        %v626 = vadd.f32 %v410, %v625
        %v627 = vpop.f32.mrf.mxu0
        %v628 = vadd.f32 %v410, %v627
        %629 = vmatmul.bf16.gmra.mxu0 %v495
        %v630 = vpop.f32.mrf.mxu0
        %v631 = vadd.f32 %v410, %v630
        %v632 = vpop.f32.mrf.mxu0
        %633 = vdwg.mxu0
        %v634 = vmax.f32 %v511, 0.0
        %v635 = vmax.f32 %v513, 0.0
        %v636 = vmax.f32 %v516, 0.0
        %v637 = vmax.f32 %v518, 0.0
        %v638 = vmax.f32 %v521, 0.0
        %v639 = vmax.f32 %v523, 0.0
        %v640 = vmax.f32 %v526, 0.0
        %v641 = vmax.f32 %v528, 0.0
        %v642 = vmax.f32 %v531, 0.0
        %v643 = vmax.f32 %v533, 0.0
        %v644 = vmax.f32 %v536, 0.0
        %v645 = vmax.f32 %v538, 0.0
        %v646 = vmax.f32 %v541, 0.0
        %v647 = vmax.f32 %v543, 0.0
        %v648 = vmax.f32 %v546, 0.0
        %v649 = vmax.f32 %v548, 0.0
        %v650 = vmax.f32 %v551, 0.0
        %v651 = vmax.f32 %v553, 0.0
        %v652 = vmax.f32 %v556, 0.0
        %v653 = vmax.f32 %v558, 0.0
        %v654 = vmax.f32 %v561, 0.0
        %v655 = vmax.f32 %v563, 0.0
        %v656 = vmax.f32 %v566, 0.0
        %v657 = vmax.f32 %v568, 0.0
        %v658 = vmax.f32 %v571, 0.0
        %v659 = vmax.f32 %v573, 0.0
        %v660 = vmax.f32 %v576, 0.0
        %v661 = vmax.f32 %v578, 0.0
        %v662 = vmax.f32 %v581, 0.0
        %v663 = vmax.f32 %v583, 0.0
        %v664 = vmax.f32 %v586, 0.0
        %v665 = vmax.f32 %v588, 0.0
        %v666 = vmax.f32 %v591, 0.0
        %v667 = vmax.f32 %v593, 0.0
        %v668 = vmax.f32 %v596, 0.0
        %v669 = vmax.f32 %v598, 0.0
        %v670 = vmax.f32 %v601, 0.0
        %v671 = vmax.f32 %v603, 0.0
        %v672 = vmax.f32 %v606, 0.0
        %v673 = vmax.f32 %v608, 0.0
        %v674 = vmax.f32 %v611, 0.0
        %v675 = vmax.f32 %v613, 0.0
        %v676 = vmax.f32 %v616, 0.0
        %v677 = vmax.f32 %v618, 0.0
        %v678 = vmax.f32 %v621, 0.0
        %v679 = vmax.f32 %v623, 0.0
        %v680 = vmax.f32 %v626, 0.0
        %v681 = vmax.f32 %v628, 0.0
        %v682 = vmax.f32 %v631, 0.0
        %vm683 = vcmask 523264
        %684 = vst.msk [vmem:[#allocation2] sm:$0xff] %vm683, %v634
        %685 = vst.msk [vmem:[#allocation2 + $0x8] sm:$0xff] %vm683, %v635
        %686 = vst.msk [vmem:[#allocation2 + $0x10] sm:$0xff] %vm683, %v636
        %687 = vst.msk [vmem:[#allocation2 + $0x18] sm:$0xff] %vm683, %v637
        %688 = vst.msk [vmem:[#allocation2 + $0x20] sm:$0xff] %vm683, %v638
        %689 = vst.msk [vmem:[#allocation2 + $0x28] sm:$0xff] %vm683, %v639
        %690 = vst.msk [vmem:[#allocation2 + $0x30] sm:$0xff] %vm683, %v640
        %691 = vst.msk [vmem:[#allocation2 + $0x38] sm:$0xff] %vm683, %v641
        %692 = vst.msk [vmem:[#allocation2 + $0x40] sm:$0xff] %vm683, %v642
        %693 = vst.msk [vmem:[#allocation2 + $0x48] sm:$0xff] %vm683, %v643
        %694 = vst.msk [vmem:[#allocation2 + $0x50] sm:$0xff] %vm683, %v644
        %695 = vst.msk [vmem:[#allocation2 + $0x58] sm:$0xff] %vm683, %v645
        %696 = vst.msk [vmem:[#allocation2 + $0x60] sm:$0xff] %vm683, %v646
        %697 = vst.msk [vmem:[#allocation2 + $0x68] sm:$0xff] %vm683, %v647
        %698 = vst.msk [vmem:[#allocation2 + $0x70] sm:$0xff] %vm683, %v648
        %699 = vst.msk [vmem:[#allocation2 + $0x78] sm:$0xff] %vm683, %v649
        %700 = vst.msk [vmem:[#allocation2 + $0x80] sm:$0xff] %vm683, %v650
        %701 = vst.msk [vmem:[#allocation2 + $0x88] sm:$0xff] %vm683, %v651
        %702 = vst.msk [vmem:[#allocation2 + $0x90] sm:$0xff] %vm683, %v652
        %703 = vst.msk [vmem:[#allocation2 + $0x98] sm:$0xff] %vm683, %v653
        %704 = vst.msk [vmem:[#allocation2 + $0xa0] sm:$0xff] %vm683, %v654
        %705 = vst.msk [vmem:[#allocation2 + $0xa8] sm:$0xff] %vm683, %v655
        %706 = vst.msk [vmem:[#allocation2 + $0xb0] sm:$0xff] %vm683, %v656
        %707 = vst.msk [vmem:[#allocation2 + $0xb8] sm:$0xff] %vm683, %v657
        %708 = vst.msk [vmem:[#allocation2 + $0xc0] sm:$0xff] %vm683, %v658
        %709 = vst.msk [vmem:[#allocation2 + $0xc8] sm:$0xff] %vm683, %v659
        %710 = vst.msk [vmem:[#allocation2 + $0xd0] sm:$0xff] %vm683, %v660
        %711 = vst.msk [vmem:[#allocation2 + $0xd8] sm:$0xff] %vm683, %v661
        %712 = vst.msk [vmem:[#allocation2 + $0xe0] sm:$0xff] %vm683, %v662
        %713 = vst.msk [vmem:[#allocation2 + $0xe8] sm:$0xff] %vm683, %v663
        %714 = vst.msk [vmem:[#allocation2 + $0xf0] sm:$0xff] %vm683, %v664
        %715 = vst.msk [vmem:[#allocation2 + $0xf8] sm:$0xff] %vm683, %v665
        %716 = vst.msk [vmem:[#allocation2 + $0x100] sm:$0xff] %vm683, %v666
        %717 = vst.msk [vmem:[#allocation2 + $0x108] sm:$0xff] %vm683, %v667
        %718 = vst.msk [vmem:[#allocation2 + $0x110] sm:$0xff] %vm683, %v668
        %719 = vst.msk [vmem:[#allocation2 + $0x118] sm:$0xff] %vm683, %v669
        %720 = vst.msk [vmem:[#allocation2 + $0x120] sm:$0xff] %vm683, %v670
        %721 = vst.msk [vmem:[#allocation2 + $0x128] sm:$0xff] %vm683, %v671
        %722 = vst.msk [vmem:[#allocation2 + $0x130] sm:$0xff] %vm683, %v672
        %723 = vst.msk [vmem:[#allocation2 + $0x138] sm:$0xff] %vm683, %v673
        %724 = vst.msk [vmem:[#allocation2 + $0x140] sm:$0xff] %vm683, %v674
        %725 = vst.msk [vmem:[#allocation2 + $0x148] sm:$0xff] %vm683, %v675
        %726 = vst.msk [vmem:[#allocation2 + $0x150] sm:$0xff] %vm683, %v676
        %727 = vst.msk [vmem:[#allocation2 + $0x158] sm:$0xff] %vm683, %v677
        %728 = vst.msk [vmem:[#allocation2 + $0x160] sm:$0xff] %vm683, %v678
        %729 = vst.msk [vmem:[#allocation2 + $0x168] sm:$0xff] %vm683, %v679
        %730 = vst.msk [vmem:[#allocation2 + $0x170] sm:$0xff] %vm683, %v680
        %731 = vst.msk [vmem:[#allocation2 + $0x178] sm:$0xff] %vm683, %v681
        %732 = vst.msk [vmem:[#allocation2 + $0x180] sm:$0xff] %vm683, %v682
        %vm733 = vcmask 261120
        %734 = vst.msk [vmem:[#allocation3] sm:$0xff] %vm733, 0.0
        %735 = vst.msk [vmem:[#allocation3 + $0x8] sm:$0xff] %vm733, 0.0
        %736 = vst.msk [vmem:[#allocation3 + $0x10] sm:$0xff] %vm733, 0.0
        %737 = vst.msk [vmem:[#allocation3 + $0x18] sm:$0xff] %vm733, 0.0
        %738 = vst.msk [vmem:[#allocation3 + $0x20] sm:$0xff] %vm733, 0.0
        %739 = vst.msk [vmem:[#allocation3 + $0x28] sm:$0xff] %vm733, 0.0
        %740 = vst.msk [vmem:[#allocation3 + $0x30] sm:$0xff] %vm733, 0.0
        %741 = vst.msk [vmem:[#allocation3 + $0x38] sm:$0xff] %vm733, 0.0
        %742 = vst.msk [vmem:[#allocation3 + $0x40] sm:$0xff] %vm733, 0.0
        %743 = vst.msk [vmem:[#allocation3 + $0x48] sm:$0xff] %vm733, 0.0
        %744 = vst.msk [vmem:[#allocation3 + $0x50] sm:$0xff] %vm733, 0.0
        %745 = vst.msk [vmem:[#allocation3 + $0x58] sm:$0xff] %vm733, 0.0
        %746 = vst.msk [vmem:[#allocation3 + $0x60] sm:$0xff] %vm733, 0.0
        %747 = vst.msk [vmem:[#allocation3 + $0x68] sm:$0xff] %vm733, 0.0
        %748 = vst.msk [vmem:[#allocation3 + $0x70] sm:$0xff] %vm733, 0.0
        %749 = vst.msk [vmem:[#allocation3 + $0x78] sm:$0xff] %vm733, 0.0
        %750 = vst.msk [vmem:[#allocation3 + $0x80] sm:$0xff] %vm733, 0.0
        %751 = vst.msk [vmem:[#allocation3 + $0x88] sm:$0xff] %vm733, 0.0
        %752 = vst.msk [vmem:[#allocation3 + $0x90] sm:$0xff] %vm733, 0.0
        %753 = vst.msk [vmem:[#allocation3 + $0x98] sm:$0xff] %vm733, 0.0
        %754 = vst.msk [vmem:[#allocation3 + $0xa0] sm:$0xff] %vm733, 0.0
        %755 = vst.msk [vmem:[#allocation3 + $0xa8] sm:$0xff] %vm733, 0.0
        %756 = vst.msk [vmem:[#allocation3 + $0xb0] sm:$0xff] %vm733, 0.0
        %757 = vst.msk [vmem:[#allocation3 + $0xb8] sm:$0xff] %vm733, 0.0
        %758 = vst.msk [vmem:[#allocation3 + $0xc0] sm:$0xff] %vm733, 0.0
        %759 = vst.msk [vmem:[#allocation3 + $0xc8] sm:$0xff] %vm733, 0.0
        %760 = vst.msk [vmem:[#allocation3 + $0xd0] sm:$0xff] %vm733, 0.0
        %761 = vst.msk [vmem:[#allocation3 + $0xd8] sm:$0xff] %vm733, 0.0
        %762 = vst.msk [vmem:[#allocation3 + $0xe0] sm:$0xff] %vm733, 0.0
        %763 = vst.msk [vmem:[#allocation3 + $0xe8] sm:$0xff] %vm733, 0.0
        %764 = vst.msk [vmem:[#allocation3 + $0xf0] sm:$0xff] %vm733, 0.0
        %765 = vst.msk [vmem:[#allocation3 + $0xf8] sm:$0xff] %vm733, 0.0
        %v766 = vld [vmem:[#allocation2] sm:$0xff]
        %v767 = vld [vmem:[#allocation2 + $0x8] sm:$0xff]
        %v768 = vld [vmem:[#allocation2 + $0x10] sm:$0xff]
        %v769 = vld [vmem:[#allocation2 + $0x18] sm:$0xf]
        %774 = vrot.lane.b32.xlu0 %v766, 96
        %v775 = vpop.permute.xlu0 %774
        %776 = vrot.lane.b32.xlu0 %v767, 96
        %v777 = vpop.permute.xlu0 %776
        %778 = vrot.lane.b32.xlu0 %v768, 96
        %v779 = vpop.permute.xlu0 %778
        %780 = vrot.lane.b32.xlu0 %v769, 96
        %v781 = vpop.permute.xlu0 %780
        %v786 = vmax.f32 %v766, %v775
        %v787 = vmax.f32 %v767, %v777
        %v788 = vmax.f32 %v768, %v779
        %v789 = vmax.f32 %v769, %v781
        %vm793 = vcmask 1041408
        %v794 = vrot.slane %v787, 6
        %v795 = vrot.slane %v788, 6
        %v796 = vsel %vm793, %v794, %v795
        %v797 = vrot.slane %v789, 6
        %v798 = vsel %vm793, %v795, %v797
        %v801 = vmax.f32 %v786, %v796
        %v802 = vmax.f32 %v787, %v798
        %803 = vst.msk [vmem:[#allocation3 + $0x11] sm:$0xff] %vm733, %v801
        %vm804 = vcmask 259072
        %805 = vst.msk [vmem:[#allocation3 + $0x19] sm:$0x3f] %vm804, %v802
        %v806 = vld [vmem:[#allocation2 + $0x1c] sm:$0xff]
        %v807 = vld [vmem:[#allocation2 + $0x24] sm:$0xff]
        %v808 = vld [vmem:[#allocation2 + $0x2c] sm:$0xff]
        %v809 = vld [vmem:[#allocation2 + $0x34] sm:$0xf]
        %814 = vrot.lane.b32.xlu0 %v806, 96
        %v815 = vpop.permute.xlu0 %814
        %816 = vrot.lane.b32.xlu0 %v807, 96
        %v817 = vpop.permute.xlu0 %816
        %818 = vrot.lane.b32.xlu0 %v808, 96
        %v819 = vpop.permute.xlu0 %818
        %820 = vrot.lane.b32.xlu0 %v809, 96
        %v821 = vpop.permute.xlu0 %820
        %v826 = vmax.f32 %v806, %v815
        %v827 = vmax.f32 %v807, %v817
        %v828 = vmax.f32 %v808, %v819
        %v829 = vmax.f32 %v809, %v821
        %v833 = vrot.slane %v827, 6
        %v834 = vrot.slane %v828, 6
        %v835 = vsel %vm793, %v833, %v834
        %v836 = vrot.slane %v829, 6
        %v837 = vsel %vm793, %v834, %v836
        %v840 = vmax.f32 %v826, %v835
        %v841 = vmax.f32 %v827, %v837
        %842 = vst.msk [vmem:[#allocation3 + $0x21] sm:$0xff] %vm733, %v840
        %843 = vst.msk [vmem:[#allocation3 + $0x29] sm:$0x3f] %vm804, %v841
        %v844 = vld [vmem:[#allocation2 + $0x38] sm:$0xff]
        %v845 = vld [vmem:[#allocation2 + $0x40] sm:$0xff]
        %v846 = vld [vmem:[#allocation2 + $0x48] sm:$0xff]
        %v847 = vld [vmem:[#allocation2 + $0x50] sm:$0xf]
        %852 = vrot.lane.b32.xlu0 %v844, 96
        %v853 = vpop.permute.xlu0 %852
        %854 = vrot.lane.b32.xlu0 %v845, 96
        %v855 = vpop.permute.xlu0 %854
        %856 = vrot.lane.b32.xlu0 %v846, 96
        %v857 = vpop.permute.xlu0 %856
        %858 = vrot.lane.b32.xlu0 %v847, 96
        %v859 = vpop.permute.xlu0 %858
        %v864 = vmax.f32 %v844, %v853
        %v865 = vmax.f32 %v845, %v855
        %v866 = vmax.f32 %v846, %v857
        %v867 = vmax.f32 %v847, %v859
        %v871 = vrot.slane %v865, 6
        %v872 = vrot.slane %v866, 6
        %v873 = vsel %vm793, %v871, %v872
        %v874 = vrot.slane %v867, 6
        %v875 = vsel %vm793, %v872, %v874
        %v878 = vmax.f32 %v864, %v873
        %v879 = vmax.f32 %v865, %v875
        %880 = vst.msk [vmem:[#allocation3 + $0x31] sm:$0xff] %vm733, %v878
        %881 = vst.msk [vmem:[#allocation3 + $0x39] sm:$0x3f] %vm804, %v879
        %v882 = vld [vmem:[#allocation2 + $0x54] sm:$0xff]
        %v883 = vld [vmem:[#allocation2 + $0x5c] sm:$0xff]
        %v884 = vld [vmem:[#allocation2 + $0x64] sm:$0xff]
        %v885 = vld [vmem:[#allocation2 + $0x6c] sm:$0xf]
        %890 = vrot.lane.b32.xlu0 %v882, 96
        %v891 = vpop.permute.xlu0 %890
        %892 = vrot.lane.b32.xlu0 %v883, 96
        %v893 = vpop.permute.xlu0 %892
        %894 = vrot.lane.b32.xlu0 %v884, 96
        %v895 = vpop.permute.xlu0 %894
        %896 = vrot.lane.b32.xlu0 %v885, 96
        %v897 = vpop.permute.xlu0 %896
        %v902 = vmax.f32 %v882, %v891
        %v903 = vmax.f32 %v883, %v893
        %v904 = vmax.f32 %v884, %v895
        %v905 = vmax.f32 %v885, %v897
        %v909 = vrot.slane %v903, 6
        %v910 = vrot.slane %v904, 6
        %v911 = vsel %vm793, %v909, %v910
        %v912 = vrot.slane %v905, 6
        %v913 = vsel %vm793, %v910, %v912
        %v916 = vmax.f32 %v902, %v911
        %v917 = vmax.f32 %v903, %v913
        %918 = vst.msk [vmem:[#allocation3 + $0x41] sm:$0xff] %vm733, %v916
        %919 = vst.msk [vmem:[#allocation3 + $0x49] sm:$0x3f] %vm804, %v917
        %v920 = vld [vmem:[#allocation2 + $0x70] sm:$0xff]
        %v921 = vld [vmem:[#allocation2 + $0x78] sm:$0xff]
        %v922 = vld [vmem:[#allocation2 + $0x80] sm:$0xff]
        %v923 = vld [vmem:[#allocation2 + $0x88] sm:$0xf]
        %928 = vrot.lane.b32.xlu0 %v920, 96
        %v929 = vpop.permute.xlu0 %928
        %930 = vrot.lane.b32.xlu0 %v921, 96
        %v931 = vpop.permute.xlu0 %930
        %932 = vrot.lane.b32.xlu0 %v922, 96
        %v933 = vpop.permute.xlu0 %932
        %934 = vrot.lane.b32.xlu0 %v923, 96
        %v935 = vpop.permute.xlu0 %934
        %v940 = vmax.f32 %v920, %v929
        %v941 = vmax.f32 %v921, %v931
        %v942 = vmax.f32 %v922, %v933
        %v943 = vmax.f32 %v923, %v935
        %v947 = vrot.slane %v941, 6
        %v948 = vrot.slane %v942, 6
        %v949 = vsel %vm793, %v947, %v948
        %v950 = vrot.slane %v943, 6
        %v951 = vsel %vm793, %v948, %v950
        %v954 = vmax.f32 %v940, %v949
        %v955 = vmax.f32 %v941, %v951
        %956 = vst.msk [vmem:[#allocation3 + $0x51] sm:$0xff] %vm733, %v954
        %957 = vst.msk [vmem:[#allocation3 + $0x59] sm:$0x3f] %vm804, %v955
        %v958 = vld [vmem:[#allocation2 + $0x8c] sm:$0xff]
        %v959 = vld [vmem:[#allocation2 + $0x94] sm:$0xff]
        %v960 = vld [vmem:[#allocation2 + $0x9c] sm:$0xff]
        %v961 = vld [vmem:[#allocation2 + $0xa4] sm:$0xf]
        %966 = vrot.lane.b32.xlu0 %v958, 96
        %v967 = vpop.permute.xlu0 %966
        %968 = vrot.lane.b32.xlu0 %v959, 96
        %v969 = vpop.permute.xlu0 %968
        %970 = vrot.lane.b32.xlu0 %v960, 96
        %v971 = vpop.permute.xlu0 %970
        %972 = vrot.lane.b32.xlu0 %v961, 96
        %v973 = vpop.permute.xlu0 %972
        %v978 = vmax.f32 %v958, %v967
        %v979 = vmax.f32 %v959, %v969
        %v980 = vmax.f32 %v960, %v971
        %v981 = vmax.f32 %v961, %v973
        %v985 = vrot.slane %v979, 6
        %v986 = vrot.slane %v980, 6
        %v987 = vsel %vm793, %v985, %v986
        %v988 = vrot.slane %v981, 6
        %v989 = vsel %vm793, %v986, %v988
        %v992 = vmax.f32 %v978, %v987
        %v993 = vmax.f32 %v979, %v989
        %994 = vst.msk [vmem:[#allocation3 + $0x61] sm:$0xff] %vm733, %v992
        %995 = vst.msk [vmem:[#allocation3 + $0x69] sm:$0x3f] %vm804, %v993
        %v996 = vld [vmem:[#allocation2 + $0xa8] sm:$0xff]
        %v997 = vld [vmem:[#allocation2 + $0xb0] sm:$0xff]
        %v998 = vld [vmem:[#allocation2 + $0xb8] sm:$0xff]
        %v999 = vld [vmem:[#allocation2 + $0xc0] sm:$0xf]
        %1004 = vrot.lane.b32.xlu0 %v996, 96
        %v1005 = vpop.permute.xlu0 %1004
        %1006 = vrot.lane.b32.xlu0 %v997, 96
        %v1007 = vpop.permute.xlu0 %1006
        %1008 = vrot.lane.b32.xlu0 %v998, 96
        %v1009 = vpop.permute.xlu0 %1008
        %1010 = vrot.lane.b32.xlu0 %v999, 96
        %v1011 = vpop.permute.xlu0 %1010
        %v1016 = vmax.f32 %v996, %v1005
        %v1017 = vmax.f32 %v997, %v1007
        %v1018 = vmax.f32 %v998, %v1009
        %v1019 = vmax.f32 %v999, %v1011
        %v1023 = vrot.slane %v1017, 6
        %v1024 = vrot.slane %v1018, 6
        %v1025 = vsel %vm793, %v1023, %v1024
        %v1026 = vrot.slane %v1019, 6
        %v1027 = vsel %vm793, %v1024, %v1026
        %v1030 = vmax.f32 %v1016, %v1025
        %v1031 = vmax.f32 %v1017, %v1027
        %1032 = vst.msk [vmem:[#allocation3 + $0x71] sm:$0xff] %vm733, %v1030
        %1033 = vst.msk [vmem:[#allocation3 + $0x79] sm:$0x3f] %vm804, %v1031
        %v1034 = vld [vmem:[#allocation2 + $0xc4] sm:$0xff]
        %v1035 = vld [vmem:[#allocation2 + $0xcc] sm:$0xff]
        %v1036 = vld [vmem:[#allocation2 + $0xd4] sm:$0xff]
        %v1037 = vld [vmem:[#allocation2 + $0xdc] sm:$0xf]
        %1042 = vrot.lane.b32.xlu0 %v1034, 96
        %v1043 = vpop.permute.xlu0 %1042
        %1044 = vrot.lane.b32.xlu0 %v1035, 96
        %v1045 = vpop.permute.xlu0 %1044
        %1046 = vrot.lane.b32.xlu0 %v1036, 96
        %v1047 = vpop.permute.xlu0 %1046
        %1048 = vrot.lane.b32.xlu0 %v1037, 96
        %v1049 = vpop.permute.xlu0 %1048
        %v1054 = vmax.f32 %v1034, %v1043
        %v1055 = vmax.f32 %v1035, %v1045
        %v1056 = vmax.f32 %v1036, %v1047
        %v1057 = vmax.f32 %v1037, %v1049
        %v1061 = vrot.slane %v1055, 6
        %v1062 = vrot.slane %v1056, 6
        %v1063 = vsel %vm793, %v1061, %v1062
        %v1064 = vrot.slane %v1057, 6
        %v1065 = vsel %vm793, %v1062, %v1064
        %v1068 = vmax.f32 %v1054, %v1063
        %v1069 = vmax.f32 %v1055, %v1065
        %1070 = vst.msk [vmem:[#allocation3 + $0x81] sm:$0xff] %vm733, %v1068
        %1071 = vst.msk [vmem:[#allocation3 + $0x89] sm:$0x3f] %vm804, %v1069
        %v1072 = vld [vmem:[#allocation2 + $0xe0] sm:$0xff]
        %v1073 = vld [vmem:[#allocation2 + $0xe8] sm:$0xff]
        %v1074 = vld [vmem:[#allocation2 + $0xf0] sm:$0xff]
        %v1075 = vld [vmem:[#allocation2 + $0xf8] sm:$0xf]
        %1080 = vrot.lane.b32.xlu0 %v1072, 96
        %v1081 = vpop.permute.xlu0 %1080
        %1082 = vrot.lane.b32.xlu0 %v1073, 96
        %v1083 = vpop.permute.xlu0 %1082
        %1084 = vrot.lane.b32.xlu0 %v1074, 96
        %v1085 = vpop.permute.xlu0 %1084
        %1086 = vrot.lane.b32.xlu0 %v1075, 96
        %v1087 = vpop.permute.xlu0 %1086
        %v1092 = vmax.f32 %v1072, %v1081
        %v1093 = vmax.f32 %v1073, %v1083
        %v1094 = vmax.f32 %v1074, %v1085
        %v1095 = vmax.f32 %v1075, %v1087
        %v1099 = vrot.slane %v1093, 6
        %v1100 = vrot.slane %v1094, 6
        %v1101 = vsel %vm793, %v1099, %v1100
        %v1102 = vrot.slane %v1095, 6
        %v1103 = vsel %vm793, %v1100, %v1102
        %v1106 = vmax.f32 %v1092, %v1101
        %v1107 = vmax.f32 %v1093, %v1103
        %1108 = vst.msk [vmem:[#allocation3 + $0x91] sm:$0xff] %vm733, %v1106
        %1109 = vst.msk [vmem:[#allocation3 + $0x99] sm:$0x3f] %vm804, %v1107
        %v1110 = vld [vmem:[#allocation2 + $0xfc] sm:$0xff]
        %v1111 = vld [vmem:[#allocation2 + $0x104] sm:$0xff]
        %v1112 = vld [vmem:[#allocation2 + $0x10c] sm:$0xff]
        %v1113 = vld [vmem:[#allocation2 + $0x114] sm:$0xf]
        %1118 = vrot.lane.b32.xlu0 %v1110, 96
        %v1119 = vpop.permute.xlu0 %1118
        %1120 = vrot.lane.b32.xlu0 %v1111, 96
        %v1121 = vpop.permute.xlu0 %1120
        %1122 = vrot.lane.b32.xlu0 %v1112, 96
        %v1123 = vpop.permute.xlu0 %1122
        %1124 = vrot.lane.b32.xlu0 %v1113, 96
        %v1125 = vpop.permute.xlu0 %1124
        %v1130 = vmax.f32 %v1110, %v1119
        %v1131 = vmax.f32 %v1111, %v1121
        %v1132 = vmax.f32 %v1112, %v1123
        %v1133 = vmax.f32 %v1113, %v1125
        %v1137 = vrot.slane %v1131, 6
        %v1138 = vrot.slane %v1132, 6
        %v1139 = vsel %vm793, %v1137, %v1138
        %v1140 = vrot.slane %v1133, 6
        %v1141 = vsel %vm793, %v1138, %v1140
        %v1144 = vmax.f32 %v1130, %v1139
        %v1145 = vmax.f32 %v1131, %v1141
        %1146 = vst.msk [vmem:[#allocation3 + $0xa1] sm:$0xff] %vm733, %v1144
        %1147 = vst.msk [vmem:[#allocation3 + $0xa9] sm:$0x3f] %vm804, %v1145
        %v1148 = vld [vmem:[#allocation2 + $0x118] sm:$0xff]
        %v1149 = vld [vmem:[#allocation2 + $0x120] sm:$0xff]
        %v1150 = vld [vmem:[#allocation2 + $0x128] sm:$0xff]
        %v1151 = vld [vmem:[#allocation2 + $0x130] sm:$0xf]
        %1156 = vrot.lane.b32.xlu0 %v1148, 96
        %v1157 = vpop.permute.xlu0 %1156
        %1158 = vrot.lane.b32.xlu0 %v1149, 96
        %v1159 = vpop.permute.xlu0 %1158
        %1160 = vrot.lane.b32.xlu0 %v1150, 96
        %v1161 = vpop.permute.xlu0 %1160
        %1162 = vrot.lane.b32.xlu0 %v1151, 96
        %v1163 = vpop.permute.xlu0 %1162
        %v1168 = vmax.f32 %v1148, %v1157
        %v1169 = vmax.f32 %v1149, %v1159
        %v1170 = vmax.f32 %v1150, %v1161
        %v1171 = vmax.f32 %v1151, %v1163
        %v1175 = vrot.slane %v1169, 6
        %v1176 = vrot.slane %v1170, 6
        %v1177 = vsel %vm793, %v1175, %v1176
        %v1178 = vrot.slane %v1171, 6
        %v1179 = vsel %vm793, %v1176, %v1178
        %v1182 = vmax.f32 %v1168, %v1177
        %v1183 = vmax.f32 %v1169, %v1179
        %1184 = vst.msk [vmem:[#allocation3 + $0xb1] sm:$0xff] %vm733, %v1182
        %1185 = vst.msk [vmem:[#allocation3 + $0xb9] sm:$0x3f] %vm804, %v1183
        %v1186 = vld [vmem:[#allocation2 + $0x134] sm:$0xff]
        %v1187 = vld [vmem:[#allocation2 + $0x13c] sm:$0xff]
        %v1188 = vld [vmem:[#allocation2 + $0x144] sm:$0xff]
        %v1189 = vld [vmem:[#allocation2 + $0x14c] sm:$0xf]
        %1194 = vrot.lane.b32.xlu0 %v1186, 96
        %v1195 = vpop.permute.xlu0 %1194
        %1196 = vrot.lane.b32.xlu0 %v1187, 96
        %v1197 = vpop.permute.xlu0 %1196
        %1198 = vrot.lane.b32.xlu0 %v1188, 96
        %v1199 = vpop.permute.xlu0 %1198
        %1200 = vrot.lane.b32.xlu0 %v1189, 96
        %v1201 = vpop.permute.xlu0 %1200
        %v1206 = vmax.f32 %v1186, %v1195
        %v1207 = vmax.f32 %v1187, %v1197
        %v1208 = vmax.f32 %v1188, %v1199
        %v1209 = vmax.f32 %v1189, %v1201
        %v1213 = vrot.slane %v1207, 6
        %v1214 = vrot.slane %v1208, 6
        %v1215 = vsel %vm793, %v1213, %v1214
        %v1216 = vrot.slane %v1209, 6
        %v1217 = vsel %vm793, %v1214, %v1216
        %v1220 = vmax.f32 %v1206, %v1215
        %v1221 = vmax.f32 %v1207, %v1217
        %1222 = vst.msk [vmem:[#allocation3 + $0xc1] sm:$0xff] %vm733, %v1220
        %1223 = vst.msk [vmem:[#allocation3 + $0xc9] sm:$0x3f] %vm804, %v1221
        %v1224 = vld [vmem:[#allocation2 + $0x150] sm:$0xff]
        %v1225 = vld [vmem:[#allocation2 + $0x158] sm:$0xff]
        %v1226 = vld [vmem:[#allocation2 + $0x160] sm:$0xff]
        %v1227 = vld [vmem:[#allocation2 + $0x168] sm:$0xf]
        %1232 = vrot.lane.b32.xlu0 %v1224, 96
        %v1233 = vpop.permute.xlu0 %1232
        %1234 = vrot.lane.b32.xlu0 %v1225, 96
        %v1235 = vpop.permute.xlu0 %1234
        %1236 = vrot.lane.b32.xlu0 %v1226, 96
        %v1237 = vpop.permute.xlu0 %1236
        %1238 = vrot.lane.b32.xlu0 %v1227, 96
        %v1239 = vpop.permute.xlu0 %1238
        %v1244 = vmax.f32 %v1224, %v1233
        %v1245 = vmax.f32 %v1225, %v1235
        %v1246 = vmax.f32 %v1226, %v1237
        %v1247 = vmax.f32 %v1227, %v1239
        %v1251 = vrot.slane %v1245, 6
        %v1252 = vrot.slane %v1246, 6
        %v1253 = vsel %vm793, %v1251, %v1252
        %v1254 = vrot.slane %v1247, 6
        %v1255 = vsel %vm793, %v1252, %v1254
        %v1258 = vmax.f32 %v1244, %v1253
        %v1259 = vmax.f32 %v1245, %v1255
        %1260 = vst.msk [vmem:[#allocation3 + $0xd1] sm:$0xff] %vm733, %v1258
        %1261 = vst.msk [vmem:[#allocation3 + $0xd9] sm:$0x3f] %vm804, %v1259
        %v1262 = vld [vmem:[#allocation2 + $0x16c] sm:$0xff]
        %v1263 = vld [vmem:[#allocation2 + $0x174] sm:$0xff]
        %v1264 = vld [vmem:[#allocation2 + $0x17c] sm:$0xff]
        %v1265 = vld [vmem:[#allocation2 + $0x184] sm:$0xf]
        %1270 = vrot.lane.b32.xlu0 %v1262, 96
        %v1271 = vpop.permute.xlu0 %1270
        %1272 = vrot.lane.b32.xlu0 %v1263, 96
        %v1273 = vpop.permute.xlu0 %1272
        %1274 = vrot.lane.b32.xlu0 %v1264, 96
        %v1275 = vpop.permute.xlu0 %1274
        %1276 = vrot.lane.b32.xlu0 %v1265, 96
        %v1277 = vpop.permute.xlu0 %1276
        %v1282 = vmax.f32 %v1262, %v1271
        %v1283 = vmax.f32 %v1263, %v1273
        %v1284 = vmax.f32 %v1264, %v1275
        %v1285 = vmax.f32 %v1265, %v1277
        %v1289 = vrot.slane %v1283, 6
        %v1290 = vrot.slane %v1284, 6
        %v1291 = vsel %vm793, %v1289, %v1290
        %v1292 = vrot.slane %v1285, 6
        %v1293 = vsel %vm793, %v1290, %v1292
        %v1296 = vmax.f32 %v1282, %v1291
        %v1297 = vmax.f32 %v1283, %v1293
        %1298 = vst.msk [vmem:[#allocation3 + $0xe1] sm:$0xff] %vm733, %v1296
        %1299 = vst.msk [vmem:[#allocation3 + $0xe9] sm:$0x3f] %vm804, %v1297
        %v1300 = vld [vmem:[#allocation3] sm:$0xff]
        %v1301 = vld [vmem:[#allocation3 + $0x8] sm:$0xff]
        %v1302 = vld [vmem:[#allocation3 + $0x10] sm:$0xff]
        %v1303 = vld [vmem:[#allocation3 + $0x18] sm:$0xff]
        %v1304 = vld [vmem:[#allocation3 + $0x20] sm:$0xff]
        %v1305 = vld [vmem:[#allocation3 + $0x28] sm:$0xff]
        %v1306 = vld [vmem:[#allocation3 + $0x30] sm:$0xff]
        %v1307 = vld [vmem:[#allocation3 + $0x38] sm:$0xff]
        %v1308 = vld [vmem:[#allocation3 + $0x40] sm:$0xff]
        %v1309 = vld [vmem:[#allocation3 + $0x48] sm:$0xff]
        %v1310 = vld [vmem:[#allocation3 + $0x50] sm:$0xff]
        %v1311 = vld [vmem:[#allocation3 + $0x58] sm:$0xff]
        %v1312 = vld [vmem:[#allocation3 + $0x60] sm:$0xff]
        %v1313 = vld [vmem:[#allocation3 + $0x68] sm:$0xff]
        %v1314 = vld [vmem:[#allocation3 + $0x70] sm:$0xff]
        %v1315 = vld [vmem:[#allocation3 + $0x78] sm:$0xff]
        %v1316 = vld [vmem:[#allocation3 + $0x80] sm:$0xff]
        %v1317 = vld [vmem:[#allocation3 + $0x88] sm:$0xff]
        %v1318 = vld [vmem:[#allocation3 + $0x90] sm:$0xff]
        %v1319 = vld [vmem:[#allocation3 + $0x98] sm:$0xff]
        %v1320 = vld [vmem:[#allocation3 + $0xa0] sm:$0xff]
        %v1321 = vld [vmem:[#allocation3 + $0xa8] sm:$0xff]
        %v1322 = vld [vmem:[#allocation3 + $0xb0] sm:$0xff]
        %v1323 = vld [vmem:[#allocation3 + $0xb8] sm:$0xff]
        %v1324 = vld [vmem:[#allocation3 + $0xc0] sm:$0xff]
        %v1325 = vld [vmem:[#allocation3 + $0xc8] sm:$0xff]
        %v1326 = vld [vmem:[#allocation3 + $0xd0] sm:$0xff]
        %v1327 = vld [vmem:[#allocation3 + $0xd8] sm:$0x3f]
        %1328 = vst.msk [vmem:[#allocation4] sm:$0xff] %vm733, %v1300
        %1329 = vst.msk [vmem:[#allocation4 + $0x18] sm:$0xff] %vm733, %v1301
        %1330 = vst.msk [vmem:[#allocation4 + $0x30] sm:$0xff] %vm733, %v1302
        %1331 = vst.msk [vmem:[#allocation4 + $0x48] sm:$0xff] %vm733, %v1303
        %1332 = vst.msk [vmem:[#allocation4 + $0x60] sm:$0xff] %vm733, %v1304
        %1333 = vst.msk [vmem:[#allocation4 + $0x78] sm:$0xff] %vm733, %v1305
        %1334 = vst.msk [vmem:[#allocation4 + $0x90] sm:$0xff] %vm733, %v1306
        %1335 = vst.msk [vmem:[#allocation4 + $0xa8] sm:$0xff] %vm733, %v1307
        %1336 = vst.msk [vmem:[#allocation4 + $0xc0] sm:$0xff] %vm733, %v1308
        %1337 = vst.msk [vmem:[#allocation4 + $0xd8] sm:$0xff] %vm733, %v1309
        %1338 = vst.msk [vmem:[#allocation4 + $0xf0] sm:$0xff] %vm733, %v1310
        %1339 = vst.msk [vmem:[#allocation4 + $0x108] sm:$0xff] %vm733, %v1311
        %1340 = vst.msk [vmem:[#allocation4 + $0x120] sm:$0xff] %vm733, %v1312
        %1341 = vst.msk [vmem:[#allocation4 + $0x138] sm:$0xff] %vm733, %v1313
        %1342 = vst.msk [vmem:[#allocation4 + $0x150] sm:$0xff] %vm733, %v1314
        %1343 = vst.msk [vmem:[#allocation4 + $0x168] sm:$0xff] %vm733, %v1315
        %1344 = vst.msk [vmem:[#allocation4 + $0x180] sm:$0xff] %vm733, %v1316
        %1345 = vst.msk [vmem:[#allocation4 + $0x198] sm:$0xff] %vm733, %v1317
        %1346 = vst.msk [vmem:[#allocation4 + $0x1b0] sm:$0xff] %vm733, %v1318
        %1347 = vst.msk [vmem:[#allocation4 + $0x1c8] sm:$0xff] %vm733, %v1319
        %1348 = vst.msk [vmem:[#allocation4 + $0x1e0] sm:$0xff] %vm733, %v1320
        %1349 = vst.msk [vmem:[#allocation4 + $0x1f8] sm:$0xff] %vm733, %v1321
        %1350 = vst.msk [vmem:[#allocation4 + $0x210] sm:$0xff] %vm733, %v1322
        %1351 = vst.msk [vmem:[#allocation4 + $0x228] sm:$0xff] %vm733, %v1323
        %1352 = vst.msk [vmem:[#allocation4 + $0x240] sm:$0xff] %vm733, %v1324
        %1353 = vst.msk [vmem:[#allocation4 + $0x258] sm:$0xff] %vm733, %v1325
        %1354 = vst.msk [vmem:[#allocation4 + $0x270] sm:$0xff] %vm733, %v1326
        %1355 = vst.msk [vmem:[#allocation4 + $0x288] sm:$0x3f] %vm804, %v1327
        %v1356 = vld [vmem:[#allocation3 + $0x1] sm:$0xff]
        %v1357 = vld [vmem:[#allocation3 + $0x9] sm:$0xff]
        %v1358 = vld [vmem:[#allocation3 + $0x11] sm:$0xff]
        %v1359 = vld [vmem:[#allocation3 + $0x19] sm:$0xff]
        %v1360 = vld [vmem:[#allocation3 + $0x21] sm:$0xff]
        %v1361 = vld [vmem:[#allocation3 + $0x29] sm:$0xff]
        %v1362 = vld [vmem:[#allocation3 + $0x31] sm:$0xff]
        %v1363 = vld [vmem:[#allocation3 + $0x39] sm:$0xff]
        %v1364 = vld [vmem:[#allocation3 + $0x41] sm:$0xff]
        %v1365 = vld [vmem:[#allocation3 + $0x49] sm:$0xff]
        %v1366 = vld [vmem:[#allocation3 + $0x51] sm:$0xff]
        %v1367 = vld [vmem:[#allocation3 + $0x59] sm:$0xff]
        %v1368 = vld [vmem:[#allocation3 + $0x61] sm:$0xff]
        %v1369 = vld [vmem:[#allocation3 + $0x69] sm:$0xff]
        %v1370 = vld [vmem:[#allocation3 + $0x71] sm:$0xff]
        %v1371 = vld [vmem:[#allocation3 + $0x79] sm:$0xff]
        %v1372 = vld [vmem:[#allocation3 + $0x81] sm:$0xff]
        %v1373 = vld [vmem:[#allocation3 + $0x89] sm:$0xff]
        %v1374 = vld [vmem:[#allocation3 + $0x91] sm:$0xff]
        %v1375 = vld [vmem:[#allocation3 + $0x99] sm:$0xff]
        %v1376 = vld [vmem:[#allocation3 + $0xa1] sm:$0xff]
        %v1377 = vld [vmem:[#allocation3 + $0xa9] sm:$0xff]
        %v1378 = vld [vmem:[#allocation3 + $0xb1] sm:$0xff]
        %v1379 = vld [vmem:[#allocation3 + $0xb9] sm:$0xff]
        %v1380 = vld [vmem:[#allocation3 + $0xc1] sm:$0xff]
        %v1381 = vld [vmem:[#allocation3 + $0xc9] sm:$0xff]
        %v1382 = vld [vmem:[#allocation3 + $0xd1] sm:$0xff]
        %v1383 = vld [vmem:[#allocation3 + $0xd9] sm:$0x3f]
        %1412 = vrot.lane.b32.xlu0 %v1356, 32
        %v1413 = vpop.permute.xlu0 %1412
        %1414 = vrot.lane.b32.xlu0 %v1357, 32
        %v1415 = vpop.permute.xlu0 %1414
        %1416 = vrot.lane.b32.xlu0 %v1358, 32
        %v1417 = vpop.permute.xlu0 %1416
        %1418 = vrot.lane.b32.xlu0 %v1359, 32
        %v1419 = vpop.permute.xlu0 %1418
        %1420 = vrot.lane.b32.xlu0 %v1360, 32
        %v1421 = vpop.permute.xlu0 %1420
        %1422 = vrot.lane.b32.xlu0 %v1361, 32
        %v1423 = vpop.permute.xlu0 %1422
        %1424 = vrot.lane.b32.xlu0 %v1362, 32
        %v1425 = vpop.permute.xlu0 %1424
        %1426 = vrot.lane.b32.xlu0 %v1363, 32
        %v1427 = vpop.permute.xlu0 %1426
        %1428 = vrot.lane.b32.xlu0 %v1364, 32
        %v1429 = vpop.permute.xlu0 %1428
        %1430 = vrot.lane.b32.xlu0 %v1365, 32
        %v1431 = vpop.permute.xlu0 %1430
        %1432 = vrot.lane.b32.xlu0 %v1366, 32
        %v1433 = vpop.permute.xlu0 %1432
        %1434 = vrot.lane.b32.xlu0 %v1367, 32
        %v1435 = vpop.permute.xlu0 %1434
        %1436 = vrot.lane.b32.xlu0 %v1368, 32
        %v1437 = vpop.permute.xlu0 %1436
        %1438 = vrot.lane.b32.xlu0 %v1369, 32
        %v1439 = vpop.permute.xlu0 %1438
        %1440 = vrot.lane.b32.xlu0 %v1370, 32
        %v1441 = vpop.permute.xlu0 %1440
        %1442 = vrot.lane.b32.xlu0 %v1371, 32
        %v1443 = vpop.permute.xlu0 %1442
        %1444 = vrot.lane.b32.xlu0 %v1372, 32
        %v1445 = vpop.permute.xlu0 %1444
        %1446 = vrot.lane.b32.xlu0 %v1373, 32
        %v1447 = vpop.permute.xlu0 %1446
        %1448 = vrot.lane.b32.xlu0 %v1374, 32
        %v1449 = vpop.permute.xlu0 %1448
        %1450 = vrot.lane.b32.xlu0 %v1375, 32
        %v1451 = vpop.permute.xlu0 %1450
        %1452 = vrot.lane.b32.xlu0 %v1376, 32
        %v1453 = vpop.permute.xlu0 %1452
        %1454 = vrot.lane.b32.xlu0 %v1377, 32
        %v1455 = vpop.permute.xlu0 %1454
        %1456 = vrot.lane.b32.xlu0 %v1378, 32
        %v1457 = vpop.permute.xlu0 %1456
        %1458 = vrot.lane.b32.xlu0 %v1379, 32
        %v1459 = vpop.permute.xlu0 %1458
        %1460 = vrot.lane.b32.xlu0 %v1380, 32
        %v1461 = vpop.permute.xlu0 %1460
        %1462 = vrot.lane.b32.xlu0 %v1381, 32
        %v1463 = vpop.permute.xlu0 %1462
        %1464 = vrot.lane.b32.xlu0 %v1382, 32
        %v1465 = vpop.permute.xlu0 %1464
        %1466 = vrot.lane.b32.xlu0 %v1383, 32
        %v1467 = vpop.permute.xlu0 %1466
        %vm1496 = vcmask 523520
        %1497 = vst.msk [vmem:[#allocation4] sm:$0xff] %vm1496, %v1413
        %1498 = vst.msk [vmem:[#allocation4 + $0x18] sm:$0xff] %vm1496, %v1415
        %1499 = vst.msk [vmem:[#allocation4 + $0x30] sm:$0xff] %vm1496, %v1417
        %1500 = vst.msk [vmem:[#allocation4 + $0x48] sm:$0xff] %vm1496, %v1419
        %1501 = vst.msk [vmem:[#allocation4 + $0x60] sm:$0xff] %vm1496, %v1421
        %1502 = vst.msk [vmem:[#allocation4 + $0x78] sm:$0xff] %vm1496, %v1423
        %1503 = vst.msk [vmem:[#allocation4 + $0x90] sm:$0xff] %vm1496, %v1425
        %1504 = vst.msk [vmem:[#allocation4 + $0xa8] sm:$0xff] %vm1496, %v1427
        %1505 = vst.msk [vmem:[#allocation4 + $0xc0] sm:$0xff] %vm1496, %v1429
        %1506 = vst.msk [vmem:[#allocation4 + $0xd8] sm:$0xff] %vm1496, %v1431
        %1507 = vst.msk [vmem:[#allocation4 + $0xf0] sm:$0xff] %vm1496, %v1433
        %1508 = vst.msk [vmem:[#allocation4 + $0x108] sm:$0xff] %vm1496, %v1435
        %1509 = vst.msk [vmem:[#allocation4 + $0x120] sm:$0xff] %vm1496, %v1437
        %1510 = vst.msk [vmem:[#allocation4 + $0x138] sm:$0xff] %vm1496, %v1439
        %1511 = vst.msk [vmem:[#allocation4 + $0x150] sm:$0xff] %vm1496, %v1441
        %1512 = vst.msk [vmem:[#allocation4 + $0x168] sm:$0xff] %vm1496, %v1443
        %1513 = vst.msk [vmem:[#allocation4 + $0x180] sm:$0xff] %vm1496, %v1445
        %1514 = vst.msk [vmem:[#allocation4 + $0x198] sm:$0xff] %vm1496, %v1447
        %1515 = vst.msk [vmem:[#allocation4 + $0x1b0] sm:$0xff] %vm1496, %v1449
        %1516 = vst.msk [vmem:[#allocation4 + $0x1c8] sm:$0xff] %vm1496, %v1451
        %1517 = vst.msk [vmem:[#allocation4 + $0x1e0] sm:$0xff] %vm1496, %v1453
        %1518 = vst.msk [vmem:[#allocation4 + $0x1f8] sm:$0xff] %vm1496, %v1455
        %1519 = vst.msk [vmem:[#allocation4 + $0x210] sm:$0xff] %vm1496, %v1457
        %1520 = vst.msk [vmem:[#allocation4 + $0x228] sm:$0xff] %vm1496, %v1459
        %1521 = vst.msk [vmem:[#allocation4 + $0x240] sm:$0xff] %vm1496, %v1461
        %1522 = vst.msk [vmem:[#allocation4 + $0x258] sm:$0xff] %vm1496, %v1463
        %1523 = vst.msk [vmem:[#allocation4 + $0x270] sm:$0xff] %vm1496, %v1465
        %vm1524 = vcmask 521472
        %1525 = vst.msk [vmem:[#allocation4 + $0x288] sm:$0x3f] %vm1524, %v1467
        %v1526 = vld [vmem:[#allocation3 + $0x2] sm:$0xff]
        %v1527 = vld [vmem:[#allocation3 + $0xa] sm:$0xff]
        %v1528 = vld [vmem:[#allocation3 + $0x12] sm:$0xff]
        %v1529 = vld [vmem:[#allocation3 + $0x1a] sm:$0xff]
        %v1530 = vld [vmem:[#allocation3 + $0x22] sm:$0xff]
        %v1531 = vld [vmem:[#allocation3 + $0x2a] sm:$0xff]
        %v1532 = vld [vmem:[#allocation3 + $0x32] sm:$0xff]
        %v1533 = vld [vmem:[#allocation3 + $0x3a] sm:$0xff]
        %v1534 = vld [vmem:[#allocation3 + $0x42] sm:$0xff]
        %v1535 = vld [vmem:[#allocation3 + $0x4a] sm:$0xff]
        %v1536 = vld [vmem:[#allocation3 + $0x52] sm:$0xff]
        %v1537 = vld [vmem:[#allocation3 + $0x5a] sm:$0xff]
        %v1538 = vld [vmem:[#allocation3 + $0x62] sm:$0xff]
        %v1539 = vld [vmem:[#allocation3 + $0x6a] sm:$0xff]
        %v1540 = vld [vmem:[#allocation3 + $0x72] sm:$0xff]
        %v1541 = vld [vmem:[#allocation3 + $0x7a] sm:$0xff]
        %v1542 = vld [vmem:[#allocation3 + $0x82] sm:$0xff]
        %v1543 = vld [vmem:[#allocation3 + $0x8a] sm:$0xff]
        %v1544 = vld [vmem:[#allocation3 + $0x92] sm:$0xff]
        %v1545 = vld [vmem:[#allocation3 + $0x9a] sm:$0xff]
        %v1546 = vld [vmem:[#allocation3 + $0xa2] sm:$0xff]
        %v1547 = vld [vmem:[#allocation3 + $0xaa] sm:$0xff]
        %v1548 = vld [vmem:[#allocation3 + $0xb2] sm:$0xff]
        %v1549 = vld [vmem:[#allocation3 + $0xba] sm:$0xff]
        %v1550 = vld [vmem:[#allocation3 + $0xc2] sm:$0xff]
        %v1551 = vld [vmem:[#allocation3 + $0xca] sm:$0xff]
        %v1552 = vld [vmem:[#allocation3 + $0xd2] sm:$0xff]
        %v1553 = vld [vmem:[#allocation3 + $0xda] sm:$0x3f]
        %1582 = vrot.lane.b32.xlu0 %v1526, 64
        %v1583 = vpop.permute.xlu0 %1582
        %1584 = vrot.lane.b32.xlu0 %v1527, 64
        %v1585 = vpop.permute.xlu0 %1584
        %1586 = vrot.lane.b32.xlu0 %v1528, 64
        %v1587 = vpop.permute.xlu0 %1586
        %1588 = vrot.lane.b32.xlu0 %v1529, 64
        %v1589 = vpop.permute.xlu0 %1588
        %1590 = vrot.lane.b32.xlu0 %v1530, 64
        %v1591 = vpop.permute.xlu0 %1590
        %1592 = vrot.lane.b32.xlu0 %v1531, 64
        %v1593 = vpop.permute.xlu0 %1592
        %1594 = vrot.lane.b32.xlu0 %v1532, 64
        %v1595 = vpop.permute.xlu0 %1594
        %1596 = vrot.lane.b32.xlu0 %v1533, 64
        %v1597 = vpop.permute.xlu0 %1596
        %1598 = vrot.lane.b32.xlu0 %v1534, 64
        %v1599 = vpop.permute.xlu0 %1598
        %1600 = vrot.lane.b32.xlu0 %v1535, 64
        %v1601 = vpop.permute.xlu0 %1600
        %1602 = vrot.lane.b32.xlu0 %v1536, 64
        %v1603 = vpop.permute.xlu0 %1602
        %1604 = vrot.lane.b32.xlu0 %v1537, 64
        %v1605 = vpop.permute.xlu0 %1604
        %1606 = vrot.lane.b32.xlu0 %v1538, 64
        %v1607 = vpop.permute.xlu0 %1606
        %1608 = vrot.lane.b32.xlu0 %v1539, 64
        %v1609 = vpop.permute.xlu0 %1608
        %1610 = vrot.lane.b32.xlu0 %v1540, 64
        %v1611 = vpop.permute.xlu0 %1610
        %1612 = vrot.lane.b32.xlu0 %v1541, 64
        %v1613 = vpop.permute.xlu0 %1612
        %1614 = vrot.lane.b32.xlu0 %v1542, 64
        %v1615 = vpop.permute.xlu0 %1614
        %1616 = vrot.lane.b32.xlu0 %v1543, 64
        %v1617 = vpop.permute.xlu0 %1616
        %1618 = vrot.lane.b32.xlu0 %v1544, 64
        %v1619 = vpop.permute.xlu0 %1618
        %1620 = vrot.lane.b32.xlu0 %v1545, 64
        %v1621 = vpop.permute.xlu0 %1620
        %1622 = vrot.lane.b32.xlu0 %v1546, 64
        %v1623 = vpop.permute.xlu0 %1622
        %1624 = vrot.lane.b32.xlu0 %v1547, 64
        %v1625 = vpop.permute.xlu0 %1624
        %1626 = vrot.lane.b32.xlu0 %v1548, 64
        %v1627 = vpop.permute.xlu0 %1626
        %1628 = vrot.lane.b32.xlu0 %v1549, 64
        %v1629 = vpop.permute.xlu0 %1628
        %1630 = vrot.lane.b32.xlu0 %v1550, 64
        %v1631 = vpop.permute.xlu0 %1630
        %1632 = vrot.lane.b32.xlu0 %v1551, 64
        %v1633 = vpop.permute.xlu0 %1632
        %1634 = vrot.lane.b32.xlu0 %v1552, 64
        %v1635 = vpop.permute.xlu0 %1634
        %1636 = vrot.lane.b32.xlu0 %v1553, 64
        %v1637 = vpop.permute.xlu0 %1636
        %vm1666 = vcmask 785920
        %1667 = vst.msk [vmem:[#allocation4] sm:$0xff] %vm1666, %v1583
        %1668 = vst.msk [vmem:[#allocation4 + $0x18] sm:$0xff] %vm1666, %v1585
        %1669 = vst.msk [vmem:[#allocation4 + $0x30] sm:$0xff] %vm1666, %v1587
        %1670 = vst.msk [vmem:[#allocation4 + $0x48] sm:$0xff] %vm1666, %v1589
        %1671 = vst.msk [vmem:[#allocation4 + $0x60] sm:$0xff] %vm1666, %v1591
        %1672 = vst.msk [vmem:[#allocation4 + $0x78] sm:$0xff] %vm1666, %v1593
        %1673 = vst.msk [vmem:[#allocation4 + $0x90] sm:$0xff] %vm1666, %v1595
        %1674 = vst.msk [vmem:[#allocation4 + $0xa8] sm:$0xff] %vm1666, %v1597
        %1675 = vst.msk [vmem:[#allocation4 + $0xc0] sm:$0xff] %vm1666, %v1599
        %1676 = vst.msk [vmem:[#allocation4 + $0xd8] sm:$0xff] %vm1666, %v1601
        %1677 = vst.msk [vmem:[#allocation4 + $0xf0] sm:$0xff] %vm1666, %v1603
        %1678 = vst.msk [vmem:[#allocation4 + $0x108] sm:$0xff] %vm1666, %v1605
        %1679 = vst.msk [vmem:[#allocation4 + $0x120] sm:$0xff] %vm1666, %v1607
        %1680 = vst.msk [vmem:[#allocation4 + $0x138] sm:$0xff] %vm1666, %v1609
        %1681 = vst.msk [vmem:[#allocation4 + $0x150] sm:$0xff] %vm1666, %v1611
        %1682 = vst.msk [vmem:[#allocation4 + $0x168] sm:$0xff] %vm1666, %v1613
        %1683 = vst.msk [vmem:[#allocation4 + $0x180] sm:$0xff] %vm1666, %v1615
        %1684 = vst.msk [vmem:[#allocation4 + $0x198] sm:$0xff] %vm1666, %v1617
        %1685 = vst.msk [vmem:[#allocation4 + $0x1b0] sm:$0xff] %vm1666, %v1619
        %1686 = vst.msk [vmem:[#allocation4 + $0x1c8] sm:$0xff] %vm1666, %v1621
        %1687 = vst.msk [vmem:[#allocation4 + $0x1e0] sm:$0xff] %vm1666, %v1623
        %1688 = vst.msk [vmem:[#allocation4 + $0x1f8] sm:$0xff] %vm1666, %v1625
        %1689 = vst.msk [vmem:[#allocation4 + $0x210] sm:$0xff] %vm1666, %v1627
        %1690 = vst.msk [vmem:[#allocation4 + $0x228] sm:$0xff] %vm1666, %v1629
        %1691 = vst.msk [vmem:[#allocation4 + $0x240] sm:$0xff] %vm1666, %v1631
        %1692 = vst.msk [vmem:[#allocation4 + $0x258] sm:$0xff] %vm1666, %v1633
        %1693 = vst.msk [vmem:[#allocation4 + $0x270] sm:$0xff] %vm1666, %v1635
        %vm1694 = vcmask 783872
        %1695 = vst.msk [vmem:[#allocation4 + $0x288] sm:$0x3f] %vm1694, %v1637
        %v1696 = vld [vmem:[#allocation3 + $0x10] sm:$0xff]
        %v1697 = vld [vmem:[#allocation3 + $0x18] sm:$0xff]
        %v1698 = vld [vmem:[#allocation3 + $0x20] sm:$0xff]
        %v1699 = vld [vmem:[#allocation3 + $0x28] sm:$0xff]
        %v1700 = vld [vmem:[#allocation3 + $0x30] sm:$0xff]
        %v1701 = vld [vmem:[#allocation3 + $0x38] sm:$0xff]
        %v1702 = vld [vmem:[#allocation3 + $0x40] sm:$0xff]
        %v1703 = vld [vmem:[#allocation3 + $0x48] sm:$0xff]
        %v1704 = vld [vmem:[#allocation3 + $0x50] sm:$0xff]
        %v1705 = vld [vmem:[#allocation3 + $0x58] sm:$0xff]
        %v1706 = vld [vmem:[#allocation3 + $0x60] sm:$0xff]
        %v1707 = vld [vmem:[#allocation3 + $0x68] sm:$0xff]
        %v1708 = vld [vmem:[#allocation3 + $0x70] sm:$0xff]
        %v1709 = vld [vmem:[#allocation3 + $0x78] sm:$0xff]
        %v1710 = vld [vmem:[#allocation3 + $0x80] sm:$0xff]
        %v1711 = vld [vmem:[#allocation3 + $0x88] sm:$0xff]
        %v1712 = vld [vmem:[#allocation3 + $0x90] sm:$0xff]
        %v1713 = vld [vmem:[#allocation3 + $0x98] sm:$0xff]
        %v1714 = vld [vmem:[#allocation3 + $0xa0] sm:$0xff]
        %v1715 = vld [vmem:[#allocation3 + $0xa8] sm:$0xff]
        %v1716 = vld [vmem:[#allocation3 + $0xb0] sm:$0xff]
        %v1717 = vld [vmem:[#allocation3 + $0xb8] sm:$0xff]
        %v1718 = vld [vmem:[#allocation3 + $0xc0] sm:$0xff]
        %v1719 = vld [vmem:[#allocation3 + $0xc8] sm:$0xff]
        %v1720 = vld [vmem:[#allocation3 + $0xd0] sm:$0xff]
        %v1721 = vld [vmem:[#allocation3 + $0xd8] sm:$0xff]
        %v1722 = vld [vmem:[#allocation3 + $0xe0] sm:$0xff]
        %v1723 = vld [vmem:[#allocation3 + $0xe8] sm:$0x3f]
        %1752 = vrot.lane.b32.xlu0 %v1696, 96
        %v1753 = vpop.permute.xlu0 %1752
        %1754 = vrot.lane.b32.xlu0 %v1697, 96
        %v1755 = vpop.permute.xlu0 %1754
        %1756 = vrot.lane.b32.xlu0 %v1698, 96
        %v1757 = vpop.permute.xlu0 %1756
        %1758 = vrot.lane.b32.xlu0 %v1699, 96
        %v1759 = vpop.permute.xlu0 %1758
        %1760 = vrot.lane.b32.xlu0 %v1700, 96
        %v1761 = vpop.permute.xlu0 %1760
        %1762 = vrot.lane.b32.xlu0 %v1701, 96
        %v1763 = vpop.permute.xlu0 %1762
        %1764 = vrot.lane.b32.xlu0 %v1702, 96
        %v1765 = vpop.permute.xlu0 %1764
        %1766 = vrot.lane.b32.xlu0 %v1703, 96
        %v1767 = vpop.permute.xlu0 %1766
        %1768 = vrot.lane.b32.xlu0 %v1704, 96
        %v1769 = vpop.permute.xlu0 %1768
        %1770 = vrot.lane.b32.xlu0 %v1705, 96
        %v1771 = vpop.permute.xlu0 %1770
        %1772 = vrot.lane.b32.xlu0 %v1706, 96
        %v1773 = vpop.permute.xlu0 %1772
        %1774 = vrot.lane.b32.xlu0 %v1707, 96
        %v1775 = vpop.permute.xlu0 %1774
        %1776 = vrot.lane.b32.xlu0 %v1708, 96
        %v1777 = vpop.permute.xlu0 %1776
        %1778 = vrot.lane.b32.xlu0 %v1709, 96
        %v1779 = vpop.permute.xlu0 %1778
        %1780 = vrot.lane.b32.xlu0 %v1710, 96
        %v1781 = vpop.permute.xlu0 %1780
        %1782 = vrot.lane.b32.xlu0 %v1711, 96
        %v1783 = vpop.permute.xlu0 %1782
        %1784 = vrot.lane.b32.xlu0 %v1712, 96
        %v1785 = vpop.permute.xlu0 %1784
        %1786 = vrot.lane.b32.xlu0 %v1713, 96
        %v1787 = vpop.permute.xlu0 %1786
        %1788 = vrot.lane.b32.xlu0 %v1714, 96
        %v1789 = vpop.permute.xlu0 %1788
        %1790 = vrot.lane.b32.xlu0 %v1715, 96
        %v1791 = vpop.permute.xlu0 %1790
        %1792 = vrot.lane.b32.xlu0 %v1716, 96
        %v1793 = vpop.permute.xlu0 %1792
        %1794 = vrot.lane.b32.xlu0 %v1717, 96
        %v1795 = vpop.permute.xlu0 %1794
        %1796 = vrot.lane.b32.xlu0 %v1718, 96
        %v1797 = vpop.permute.xlu0 %1796
        %1798 = vrot.lane.b32.xlu0 %v1719, 96
        %v1799 = vpop.permute.xlu0 %1798
        %1800 = vrot.lane.b32.xlu0 %v1720, 96
        %v1801 = vpop.permute.xlu0 %1800
        %1802 = vrot.lane.b32.xlu0 %v1721, 96
        %v1803 = vpop.permute.xlu0 %1802
        %1804 = vrot.lane.b32.xlu0 %v1722, 96
        %v1805 = vpop.permute.xlu0 %1804
        %1806 = vrot.lane.b32.xlu0 %v1723, 96
        %v1807 = vpop.permute.xlu0 %1806
        %vm1836 = vcmask 1048320
        %1837 = vst.msk [vmem:[#allocation4] sm:$0xff] %vm1836, %v1753
        %1838 = vst.msk [vmem:[#allocation4 + $0x18] sm:$0xff] %vm1836, %v1755
        %1839 = vst.msk [vmem:[#allocation4 + $0x30] sm:$0xff] %vm1836, %v1757
        %1840 = vst.msk [vmem:[#allocation4 + $0x48] sm:$0xff] %vm1836, %v1759
        %1841 = vst.msk [vmem:[#allocation4 + $0x60] sm:$0xff] %vm1836, %v1761
        %1842 = vst.msk [vmem:[#allocation4 + $0x78] sm:$0xff] %vm1836, %v1763
        %1843 = vst.msk [vmem:[#allocation4 + $0x90] sm:$0xff] %vm1836, %v1765
        %1844 = vst.msk [vmem:[#allocation4 + $0xa8] sm:$0xff] %vm1836, %v1767
        %1845 = vst.msk [vmem:[#allocation4 + $0xc0] sm:$0xff] %vm1836, %v1769
        %1846 = vst.msk [vmem:[#allocation4 + $0xd8] sm:$0xff] %vm1836, %v1771
        %1847 = vst.msk [vmem:[#allocation4 + $0xf0] sm:$0xff] %vm1836, %v1773
        %1848 = vst.msk [vmem:[#allocation4 + $0x108] sm:$0xff] %vm1836, %v1775
        %1849 = vst.msk [vmem:[#allocation4 + $0x120] sm:$0xff] %vm1836, %v1777
        %1850 = vst.msk [vmem:[#allocation4 + $0x138] sm:$0xff] %vm1836, %v1779
        %1851 = vst.msk [vmem:[#allocation4 + $0x150] sm:$0xff] %vm1836, %v1781
        %1852 = vst.msk [vmem:[#allocation4 + $0x168] sm:$0xff] %vm1836, %v1783
        %1853 = vst.msk [vmem:[#allocation4 + $0x180] sm:$0xff] %vm1836, %v1785
        %1854 = vst.msk [vmem:[#allocation4 + $0x198] sm:$0xff] %vm1836, %v1787
        %1855 = vst.msk [vmem:[#allocation4 + $0x1b0] sm:$0xff] %vm1836, %v1789
        %1856 = vst.msk [vmem:[#allocation4 + $0x1c8] sm:$0xff] %vm1836, %v1791
        %1857 = vst.msk [vmem:[#allocation4 + $0x1e0] sm:$0xff] %vm1836, %v1793
        %1858 = vst.msk [vmem:[#allocation4 + $0x1f8] sm:$0xff] %vm1836, %v1795
        %1859 = vst.msk [vmem:[#allocation4 + $0x210] sm:$0xff] %vm1836, %v1797
        %1860 = vst.msk [vmem:[#allocation4 + $0x228] sm:$0xff] %vm1836, %v1799
        %1861 = vst.msk [vmem:[#allocation4 + $0x240] sm:$0xff] %vm1836, %v1801
        %1862 = vst.msk [vmem:[#allocation4 + $0x258] sm:$0xff] %vm1836, %v1803
        %1863 = vst.msk [vmem:[#allocation4 + $0x270] sm:$0xff] %vm1836, %v1805
        %vm1864 = vcmask 1046272
        %1865 = vst.msk [vmem:[#allocation4 + $0x288] sm:$0x3f] %vm1864, %v1807
        %v1866 = vld [vmem:[#allocation3 + $0x11] sm:$0xff]
        %v1867 = vld [vmem:[#allocation3 + $0x19] sm:$0xff]
        %v1868 = vld [vmem:[#allocation3 + $0x21] sm:$0xff]
        %v1869 = vld [vmem:[#allocation3 + $0x29] sm:$0xff]
        %v1870 = vld [vmem:[#allocation3 + $0x31] sm:$0xff]
        %v1871 = vld [vmem:[#allocation3 + $0x39] sm:$0xff]
        %v1872 = vld [vmem:[#allocation3 + $0x41] sm:$0xff]
        %v1873 = vld [vmem:[#allocation3 + $0x49] sm:$0xff]
        %v1874 = vld [vmem:[#allocation3 + $0x51] sm:$0xff]
        %v1875 = vld [vmem:[#allocation3 + $0x59] sm:$0xff]
        %v1876 = vld [vmem:[#allocation3 + $0x61] sm:$0xff]
        %v1877 = vld [vmem:[#allocation3 + $0x69] sm:$0xff]
        %v1878 = vld [vmem:[#allocation3 + $0x71] sm:$0xff]
        %v1879 = vld [vmem:[#allocation3 + $0x79] sm:$0xff]
        %v1880 = vld [vmem:[#allocation3 + $0x81] sm:$0xff]
        %v1881 = vld [vmem:[#allocation3 + $0x89] sm:$0xff]
        %v1882 = vld [vmem:[#allocation3 + $0x91] sm:$0xff]
        %v1883 = vld [vmem:[#allocation3 + $0x99] sm:$0xff]
        %v1884 = vld [vmem:[#allocation3 + $0xa1] sm:$0xff]
        %v1885 = vld [vmem:[#allocation3 + $0xa9] sm:$0xff]
        %v1886 = vld [vmem:[#allocation3 + $0xb1] sm:$0xff]
        %v1887 = vld [vmem:[#allocation3 + $0xb9] sm:$0xff]
        %v1888 = vld [vmem:[#allocation3 + $0xc1] sm:$0xff]
        %v1889 = vld [vmem:[#allocation3 + $0xc9] sm:$0xff]
        %v1890 = vld [vmem:[#allocation3 + $0xd1] sm:$0xff]
        %v1891 = vld [vmem:[#allocation3 + $0xd9] sm:$0xff]
        %v1892 = vld [vmem:[#allocation3 + $0xe1] sm:$0xff]
        %v1893 = vld [vmem:[#allocation3 + $0xe9] sm:$0x3f]
        %1894 = vst.msk [vmem:[#allocation4 + $0x8] sm:$0xff] %vm733, %v1866
        %1895 = vst.msk [vmem:[#allocation4 + $0x20] sm:$0xff] %vm733, %v1867
        %1896 = vst.msk [vmem:[#allocation4 + $0x38] sm:$0xff] %vm733, %v1868
        %1897 = vst.msk [vmem:[#allocation4 + $0x50] sm:$0xff] %vm733, %v1869
        %1898 = vst.msk [vmem:[#allocation4 + $0x68] sm:$0xff] %vm733, %v1870
        %1899 = vst.msk [vmem:[#allocation4 + $0x80] sm:$0xff] %vm733, %v1871
        %1900 = vst.msk [vmem:[#allocation4 + $0x98] sm:$0xff] %vm733, %v1872
        %1901 = vst.msk [vmem:[#allocation4 + $0xb0] sm:$0xff] %vm733, %v1873
        %1902 = vst.msk [vmem:[#allocation4 + $0xc8] sm:$0xff] %vm733, %v1874
        %1903 = vst.msk [vmem:[#allocation4 + $0xe0] sm:$0xff] %vm733, %v1875
        %1904 = vst.msk [vmem:[#allocation4 + $0xf8] sm:$0xff] %vm733, %v1876
        %1905 = vst.msk [vmem:[#allocation4 + $0x110] sm:$0xff] %vm733, %v1877
        %1906 = vst.msk [vmem:[#allocation4 + $0x128] sm:$0xff] %vm733, %v1878
        %1907 = vst.msk [vmem:[#allocation4 + $0x140] sm:$0xff] %vm733, %v1879
        %1908 = vst.msk [vmem:[#allocation4 + $0x158] sm:$0xff] %vm733, %v1880
        %1909 = vst.msk [vmem:[#allocation4 + $0x170] sm:$0xff] %vm733, %v1881
        %1910 = vst.msk [vmem:[#allocation4 + $0x188] sm:$0xff] %vm733, %v1882
        %1911 = vst.msk [vmem:[#allocation4 + $0x1a0] sm:$0xff] %vm733, %v1883
        %1912 = vst.msk [vmem:[#allocation4 + $0x1b8] sm:$0xff] %vm733, %v1884
        %1913 = vst.msk [vmem:[#allocation4 + $0x1d0] sm:$0xff] %vm733, %v1885
        %1914 = vst.msk [vmem:[#allocation4 + $0x1e8] sm:$0xff] %vm733, %v1886
        %1915 = vst.msk [vmem:[#allocation4 + $0x200] sm:$0xff] %vm733, %v1887
        %1916 = vst.msk [vmem:[#allocation4 + $0x218] sm:$0xff] %vm733, %v1888
        %1917 = vst.msk [vmem:[#allocation4 + $0x230] sm:$0xff] %vm733, %v1889
        %1918 = vst.msk [vmem:[#allocation4 + $0x248] sm:$0xff] %vm733, %v1890
        %1919 = vst.msk [vmem:[#allocation4 + $0x260] sm:$0xff] %vm733, %v1891
        %1920 = vst.msk [vmem:[#allocation4 + $0x278] sm:$0xff] %vm733, %v1892
        %1921 = vst.msk [vmem:[#allocation4 + $0x290] sm:$0x3f] %vm804, %v1893
        %v1922 = vld [vmem:[#allocation3 + $0x12] sm:$0xff]
        %v1923 = vld [vmem:[#allocation3 + $0x1a] sm:$0xff]
        %v1924 = vld [vmem:[#allocation3 + $0x22] sm:$0xff]
        %v1925 = vld [vmem:[#allocation3 + $0x2a] sm:$0xff]
        %v1926 = vld [vmem:[#allocation3 + $0x32] sm:$0xff]
        %v1927 = vld [vmem:[#allocation3 + $0x3a] sm:$0xff]
        %v1928 = vld [vmem:[#allocation3 + $0x42] sm:$0xff]
        %v1929 = vld [vmem:[#allocation3 + $0x4a] sm:$0xff]
        %v1930 = vld [vmem:[#allocation3 + $0x52] sm:$0xff]
        %v1931 = vld [vmem:[#allocation3 + $0x5a] sm:$0xff]
        %v1932 = vld [vmem:[#allocation3 + $0x62] sm:$0xff]
        %v1933 = vld [vmem:[#allocation3 + $0x6a] sm:$0xff]
        %v1934 = vld [vmem:[#allocation3 + $0x72] sm:$0xff]
        %v1935 = vld [vmem:[#allocation3 + $0x7a] sm:$0xff]
        %v1936 = vld [vmem:[#allocation3 + $0x82] sm:$0xff]
        %v1937 = vld [vmem:[#allocation3 + $0x8a] sm:$0xff]
        %v1938 = vld [vmem:[#allocation3 + $0x92] sm:$0xff]
        %v1939 = vld [vmem:[#allocation3 + $0x9a] sm:$0xff]
        %v1940 = vld [vmem:[#allocation3 + $0xa2] sm:$0xff]
        %v1941 = vld [vmem:[#allocation3 + $0xaa] sm:$0xff]
        %v1942 = vld [vmem:[#allocation3 + $0xb2] sm:$0xff]
        %v1943 = vld [vmem:[#allocation3 + $0xba] sm:$0xff]
        %v1944 = vld [vmem:[#allocation3 + $0xc2] sm:$0xff]
        %v1945 = vld [vmem:[#allocation3 + $0xca] sm:$0xff]
        %v1946 = vld [vmem:[#allocation3 + $0xd2] sm:$0xff]
        %v1947 = vld [vmem:[#allocation3 + $0xda] sm:$0xff]
        %v1948 = vld [vmem:[#allocation3 + $0xe2] sm:$0xff]
        %v1949 = vld [vmem:[#allocation3 + $0xea] sm:$0x3f]
        %1978 = vrot.lane.b32.xlu0 %v1922, 32
        %v1979 = vpop.permute.xlu0 %1978
        %1980 = vrot.lane.b32.xlu0 %v1923, 32
        %v1981 = vpop.permute.xlu0 %1980
        %1982 = vrot.lane.b32.xlu0 %v1924, 32
        %v1983 = vpop.permute.xlu0 %1982
        %1984 = vrot.lane.b32.xlu0 %v1925, 32
        %v1985 = vpop.permute.xlu0 %1984
        %1986 = vrot.lane.b32.xlu0 %v1926, 32
        %v1987 = vpop.permute.xlu0 %1986
        %1988 = vrot.lane.b32.xlu0 %v1927, 32
        %v1989 = vpop.permute.xlu0 %1988
        %1990 = vrot.lane.b32.xlu0 %v1928, 32
        %v1991 = vpop.permute.xlu0 %1990
        %1992 = vrot.lane.b32.xlu0 %v1929, 32
        %v1993 = vpop.permute.xlu0 %1992
        %1994 = vrot.lane.b32.xlu0 %v1930, 32
        %v1995 = vpop.permute.xlu0 %1994
        %1996 = vrot.lane.b32.xlu0 %v1931, 32
        %v1997 = vpop.permute.xlu0 %1996
        %1998 = vrot.lane.b32.xlu0 %v1932, 32
        %v1999 = vpop.permute.xlu0 %1998
        %2000 = vrot.lane.b32.xlu0 %v1933, 32
        %v2001 = vpop.permute.xlu0 %2000
        %2002 = vrot.lane.b32.xlu0 %v1934, 32
        %v2003 = vpop.permute.xlu0 %2002
        %2004 = vrot.lane.b32.xlu0 %v1935, 32
        %v2005 = vpop.permute.xlu0 %2004
        %2006 = vrot.lane.b32.xlu0 %v1936, 32
        %v2007 = vpop.permute.xlu0 %2006
        %2008 = vrot.lane.b32.xlu0 %v1937, 32
        %v2009 = vpop.permute.xlu0 %2008
        %2010 = vrot.lane.b32.xlu0 %v1938, 32
        %v2011 = vpop.permute.xlu0 %2010
        %2012 = vrot.lane.b32.xlu0 %v1939, 32
        %v2013 = vpop.permute.xlu0 %2012
        %2014 = vrot.lane.b32.xlu0 %v1940, 32
        %v2015 = vpop.permute.xlu0 %2014
        %2016 = vrot.lane.b32.xlu0 %v1941, 32
        %v2017 = vpop.permute.xlu0 %2016
        %2018 = vrot.lane.b32.xlu0 %v1942, 32
        %v2019 = vpop.permute.xlu0 %2018
        %2020 = vrot.lane.b32.xlu0 %v1943, 32
        %v2021 = vpop.permute.xlu0 %2020
        %2022 = vrot.lane.b32.xlu0 %v1944, 32
        %v2023 = vpop.permute.xlu0 %2022
        %2024 = vrot.lane.b32.xlu0 %v1945, 32
        %v2025 = vpop.permute.xlu0 %2024
        %2026 = vrot.lane.b32.xlu0 %v1946, 32
        %v2027 = vpop.permute.xlu0 %2026
        %2028 = vrot.lane.b32.xlu0 %v1947, 32
        %v2029 = vpop.permute.xlu0 %2028
        %2030 = vrot.lane.b32.xlu0 %v1948, 32
        %v2031 = vpop.permute.xlu0 %2030
        %2032 = vrot.lane.b32.xlu0 %v1949, 32
        %v2033 = vpop.permute.xlu0 %2032
        %2062 = vst.msk [vmem:[#allocation4 + $0x8] sm:$0xff] %vm1496, %v1979
        %2063 = vst.msk [vmem:[#allocation4 + $0x20] sm:$0xff] %vm1496, %v1981
        %2064 = vst.msk [vmem:[#allocation4 + $0x38] sm:$0xff] %vm1496, %v1983
        %2065 = vst.msk [vmem:[#allocation4 + $0x50] sm:$0xff] %vm1496, %v1985
        %2066 = vst.msk [vmem:[#allocation4 + $0x68] sm:$0xff] %vm1496, %v1987
        %2067 = vst.msk [vmem:[#allocation4 + $0x80] sm:$0xff] %vm1496, %v1989
        %2068 = vst.msk [vmem:[#allocation4 + $0x98] sm:$0xff] %vm1496, %v1991
        %2069 = vst.msk [vmem:[#allocation4 + $0xb0] sm:$0xff] %vm1496, %v1993
        %2070 = vst.msk [vmem:[#allocation4 + $0xc8] sm:$0xff] %vm1496, %v1995
        %2071 = vst.msk [vmem:[#allocation4 + $0xe0] sm:$0xff] %vm1496, %v1997
        %2072 = vst.msk [vmem:[#allocation4 + $0xf8] sm:$0xff] %vm1496, %v1999
        %2073 = vst.msk [vmem:[#allocation4 + $0x110] sm:$0xff] %vm1496, %v2001
        %2074 = vst.msk [vmem:[#allocation4 + $0x128] sm:$0xff] %vm1496, %v2003
        %2075 = vst.msk [vmem:[#allocation4 + $0x140] sm:$0xff] %vm1496, %v2005
        %2076 = vst.msk [vmem:[#allocation4 + $0x158] sm:$0xff] %vm1496, %v2007
        %2077 = vst.msk [vmem:[#allocation4 + $0x170] sm:$0xff] %vm1496, %v2009
        %2078 = vst.msk [vmem:[#allocation4 + $0x188] sm:$0xff] %vm1496, %v2011
        %2079 = vst.msk [vmem:[#allocation4 + $0x1a0] sm:$0xff] %vm1496, %v2013
        %2080 = vst.msk [vmem:[#allocation4 + $0x1b8] sm:$0xff] %vm1496, %v2015
        %2081 = vst.msk [vmem:[#allocation4 + $0x1d0] sm:$0xff] %vm1496, %v2017
        %2082 = vst.msk [vmem:[#allocation4 + $0x1e8] sm:$0xff] %vm1496, %v2019
        %2083 = vst.msk [vmem:[#allocation4 + $0x200] sm:$0xff] %vm1496, %v2021
        %2084 = vst.msk [vmem:[#allocation4 + $0x218] sm:$0xff] %vm1496, %v2023
        %2085 = vst.msk [vmem:[#allocation4 + $0x230] sm:$0xff] %vm1496, %v2025
        %2086 = vst.msk [vmem:[#allocation4 + $0x248] sm:$0xff] %vm1496, %v2027
        %2087 = vst.msk [vmem:[#allocation4 + $0x260] sm:$0xff] %vm1496, %v2029
        %2088 = vst.msk [vmem:[#allocation4 + $0x278] sm:$0xff] %vm1496, %v2031
        %2089 = vst.msk [vmem:[#allocation4 + $0x290] sm:$0x3f] %vm1524, %v2033
        %v2090 = vld [vmem:[#allocation3 + $0x20] sm:$0xff]
        %v2091 = vld [vmem:[#allocation3 + $0x28] sm:$0xff]
        %v2092 = vld [vmem:[#allocation3 + $0x30] sm:$0xff]
        %v2093 = vld [vmem:[#allocation3 + $0x38] sm:$0xff]
        %v2094 = vld [vmem:[#allocation3 + $0x40] sm:$0xff]
        %v2095 = vld [vmem:[#allocation3 + $0x48] sm:$0xff]
        %v2096 = vld [vmem:[#allocation3 + $0x50] sm:$0xff]
        %v2097 = vld [vmem:[#allocation3 + $0x58] sm:$0xff]
        %v2098 = vld [vmem:[#allocation3 + $0x60] sm:$0xff]
        %v2099 = vld [vmem:[#allocation3 + $0x68] sm:$0xff]
        %v2100 = vld [vmem:[#allocation3 + $0x70] sm:$0xff]
        %v2101 = vld [vmem:[#allocation3 + $0x78] sm:$0xff]
        %v2102 = vld [vmem:[#allocation3 + $0x80] sm:$0xff]
        %v2103 = vld [vmem:[#allocation3 + $0x88] sm:$0xff]
        %v2104 = vld [vmem:[#allocation3 + $0x90] sm:$0xff]
        %v2105 = vld [vmem:[#allocation3 + $0x98] sm:$0xff]
        %v2106 = vld [vmem:[#allocation3 + $0xa0] sm:$0xff]
        %v2107 = vld [vmem:[#allocation3 + $0xa8] sm:$0xff]
        %v2108 = vld [vmem:[#allocation3 + $0xb0] sm:$0xff]
        %v2109 = vld [vmem:[#allocation3 + $0xb8] sm:$0xff]
        %v2110 = vld [vmem:[#allocation3 + $0xc0] sm:$0xff]
        %v2111 = vld [vmem:[#allocation3 + $0xc8] sm:$0xff]
        %v2112 = vld [vmem:[#allocation3 + $0xd0] sm:$0xff]
        %v2113 = vld [vmem:[#allocation3 + $0xd8] sm:$0xff]
        %v2114 = vld [vmem:[#allocation3 + $0xe0] sm:$0xff]
        %v2115 = vld [vmem:[#allocation3 + $0xe8] sm:$0xff]
        %v2116 = vld [vmem:[#allocation3 + $0xf0] sm:$0xff]
        %v2117 = vld [vmem:[#allocation3 + $0xf8] sm:$0x3f]
        %2146 = vrot.lane.b32.xlu0 %v2090, 64
        %v2147 = vpop.permute.xlu0 %2146
        %2148 = vrot.lane.b32.xlu0 %v2091, 64
        %v2149 = vpop.permute.xlu0 %2148
        %2150 = vrot.lane.b32.xlu0 %v2092, 64
        %v2151 = vpop.permute.xlu0 %2150
        %2152 = vrot.lane.b32.xlu0 %v2093, 64
        %v2153 = vpop.permute.xlu0 %2152
        %2154 = vrot.lane.b32.xlu0 %v2094, 64
        %v2155 = vpop.permute.xlu0 %2154
        %2156 = vrot.lane.b32.xlu0 %v2095, 64
        %v2157 = vpop.permute.xlu0 %2156
        %2158 = vrot.lane.b32.xlu0 %v2096, 64
        %v2159 = vpop.permute.xlu0 %2158
        %2160 = vrot.lane.b32.xlu0 %v2097, 64
        %v2161 = vpop.permute.xlu0 %2160
        %2162 = vrot.lane.b32.xlu0 %v2098, 64
        %v2163 = vpop.permute.xlu0 %2162
        %2164 = vrot.lane.b32.xlu0 %v2099, 64
        %v2165 = vpop.permute.xlu0 %2164
        %2166 = vrot.lane.b32.xlu0 %v2100, 64
        %v2167 = vpop.permute.xlu0 %2166
        %2168 = vrot.lane.b32.xlu0 %v2101, 64
        %v2169 = vpop.permute.xlu0 %2168
        %2170 = vrot.lane.b32.xlu0 %v2102, 64
        %v2171 = vpop.permute.xlu0 %2170
        %2172 = vrot.lane.b32.xlu0 %v2103, 64
        %v2173 = vpop.permute.xlu0 %2172
        %2174 = vrot.lane.b32.xlu0 %v2104, 64
        %v2175 = vpop.permute.xlu0 %2174
        %2176 = vrot.lane.b32.xlu0 %v2105, 64
        %v2177 = vpop.permute.xlu0 %2176
        %2178 = vrot.lane.b32.xlu0 %v2106, 64
        %v2179 = vpop.permute.xlu0 %2178
        %2180 = vrot.lane.b32.xlu0 %v2107, 64
        %v2181 = vpop.permute.xlu0 %2180
        %2182 = vrot.lane.b32.xlu0 %v2108, 64
        %v2183 = vpop.permute.xlu0 %2182
        %2184 = vrot.lane.b32.xlu0 %v2109, 64
        %v2185 = vpop.permute.xlu0 %2184
        %2186 = vrot.lane.b32.xlu0 %v2110, 64
        %v2187 = vpop.permute.xlu0 %2186
        %2188 = vrot.lane.b32.xlu0 %v2111, 64
        %v2189 = vpop.permute.xlu0 %2188
        %2190 = vrot.lane.b32.xlu0 %v2112, 64
        %v2191 = vpop.permute.xlu0 %2190
        %2192 = vrot.lane.b32.xlu0 %v2113, 64
        %v2193 = vpop.permute.xlu0 %2192
        %2194 = vrot.lane.b32.xlu0 %v2114, 64
        %v2195 = vpop.permute.xlu0 %2194
        %2196 = vrot.lane.b32.xlu0 %v2115, 64
        %v2197 = vpop.permute.xlu0 %2196
        %2198 = vrot.lane.b32.xlu0 %v2116, 64
        %v2199 = vpop.permute.xlu0 %2198
        %2200 = vrot.lane.b32.xlu0 %v2117, 64
        %v2201 = vpop.permute.xlu0 %2200
        %2230 = vst.msk [vmem:[#allocation4 + $0x8] sm:$0xff] %vm1666, %v2147
        %2231 = vst.msk [vmem:[#allocation4 + $0x20] sm:$0xff] %vm1666, %v2149
        %2232 = vst.msk [vmem:[#allocation4 + $0x38] sm:$0xff] %vm1666, %v2151
        %2233 = vst.msk [vmem:[#allocation4 + $0x50] sm:$0xff] %vm1666, %v2153
        %2234 = vst.msk [vmem:[#allocation4 + $0x68] sm:$0xff] %vm1666, %v2155
        %2235 = vst.msk [vmem:[#allocation4 + $0x80] sm:$0xff] %vm1666, %v2157
        %2236 = vst.msk [vmem:[#allocation4 + $0x98] sm:$0xff] %vm1666, %v2159
        %2237 = vst.msk [vmem:[#allocation4 + $0xb0] sm:$0xff] %vm1666, %v2161
        %2238 = vst.msk [vmem:[#allocation4 + $0xc8] sm:$0xff] %vm1666, %v2163
        %2239 = vst.msk [vmem:[#allocation4 + $0xe0] sm:$0xff] %vm1666, %v2165
        %2240 = vst.msk [vmem:[#allocation4 + $0xf8] sm:$0xff] %vm1666, %v2167
        %2241 = vst.msk [vmem:[#allocation4 + $0x110] sm:$0xff] %vm1666, %v2169
        %2242 = vst.msk [vmem:[#allocation4 + $0x128] sm:$0xff] %vm1666, %v2171
        %2243 = vst.msk [vmem:[#allocation4 + $0x140] sm:$0xff] %vm1666, %v2173
        %2244 = vst.msk [vmem:[#allocation4 + $0x158] sm:$0xff] %vm1666, %v2175
        %2245 = vst.msk [vmem:[#allocation4 + $0x170] sm:$0xff] %vm1666, %v2177
        %2246 = vst.msk [vmem:[#allocation4 + $0x188] sm:$0xff] %vm1666, %v2179
        %2247 = vst.msk [vmem:[#allocation4 + $0x1a0] sm:$0xff] %vm1666, %v2181
        %2248 = vst.msk [vmem:[#allocation4 + $0x1b8] sm:$0xff] %vm1666, %v2183
        %2249 = vst.msk [vmem:[#allocation4 + $0x1d0] sm:$0xff] %vm1666, %v2185
        %2250 = vst.msk [vmem:[#allocation4 + $0x1e8] sm:$0xff] %vm1666, %v2187
        %2251 = vst.msk [vmem:[#allocation4 + $0x200] sm:$0xff] %vm1666, %v2189
        %2252 = vst.msk [vmem:[#allocation4 + $0x218] sm:$0xff] %vm1666, %v2191
        %2253 = vst.msk [vmem:[#allocation4 + $0x230] sm:$0xff] %vm1666, %v2193
        %2254 = vst.msk [vmem:[#allocation4 + $0x248] sm:$0xff] %vm1666, %v2195
        %2255 = vst.msk [vmem:[#allocation4 + $0x260] sm:$0xff] %vm1666, %v2197
        %2256 = vst.msk [vmem:[#allocation4 + $0x278] sm:$0xff] %vm1666, %v2199
        %2257 = vst.msk [vmem:[#allocation4 + $0x290] sm:$0x3f] %vm1694, %v2201
        %v2258 = vld [vmem:[#allocation3 + $0x21] sm:$0xff]
        %v2259 = vld [vmem:[#allocation3 + $0x29] sm:$0xff]
        %v2260 = vld [vmem:[#allocation3 + $0x31] sm:$0xff]
        %v2261 = vld [vmem:[#allocation3 + $0x39] sm:$0xff]
        %v2262 = vld [vmem:[#allocation3 + $0x41] sm:$0xff]
        %v2263 = vld [vmem:[#allocation3 + $0x49] sm:$0xff]
        %v2264 = vld [vmem:[#allocation3 + $0x51] sm:$0xff]
        %v2265 = vld [vmem:[#allocation3 + $0x59] sm:$0xff]
        %v2266 = vld [vmem:[#allocation3 + $0x61] sm:$0xff]
        %v2267 = vld [vmem:[#allocation3 + $0x69] sm:$0xff]
        %v2268 = vld [vmem:[#allocation3 + $0x71] sm:$0xff]
        %v2269 = vld [vmem:[#allocation3 + $0x79] sm:$0xff]
        %v2270 = vld [vmem:[#allocation3 + $0x81] sm:$0xff]
        %v2271 = vld [vmem:[#allocation3 + $0x89] sm:$0xff]
        %v2272 = vld [vmem:[#allocation3 + $0x91] sm:$0xff]
        %v2273 = vld [vmem:[#allocation3 + $0x99] sm:$0xff]
        %v2274 = vld [vmem:[#allocation3 + $0xa1] sm:$0xff]
        %v2275 = vld [vmem:[#allocation3 + $0xa9] sm:$0xff]
        %v2276 = vld [vmem:[#allocation3 + $0xb1] sm:$0xff]
        %v2277 = vld [vmem:[#allocation3 + $0xb9] sm:$0xff]
        %v2278 = vld [vmem:[#allocation3 + $0xc1] sm:$0xff]
        %v2279 = vld [vmem:[#allocation3 + $0xc9] sm:$0xff]
        %v2280 = vld [vmem:[#allocation3 + $0xd1] sm:$0xff]
        %v2281 = vld [vmem:[#allocation3 + $0xd9] sm:$0xff]
        %v2282 = vld [vmem:[#allocation3 + $0xe1] sm:$0xff]
        %v2283 = vld [vmem:[#allocation3 + $0xe9] sm:$0xff]
        %v2284 = vld [vmem:[#allocation3 + $0xf1] sm:$0xff]
        %v2285 = vld [vmem:[#allocation3 + $0xf9] sm:$0x3f]
        %2314 = vrot.lane.b32.xlu0 %v2258, 96
        %v2315 = vpop.permute.xlu0 %2314
        %2316 = vrot.lane.b32.xlu0 %v2259, 96
        %v2317 = vpop.permute.xlu0 %2316
        %2318 = vrot.lane.b32.xlu0 %v2260, 96
        %v2319 = vpop.permute.xlu0 %2318
        %2320 = vrot.lane.b32.xlu0 %v2261, 96
        %v2321 = vpop.permute.xlu0 %2320
        %2322 = vrot.lane.b32.xlu0 %v2262, 96
        %v2323 = vpop.permute.xlu0 %2322
        %2324 = vrot.lane.b32.xlu0 %v2263, 96
        %v2325 = vpop.permute.xlu0 %2324
        %2326 = vrot.lane.b32.xlu0 %v2264, 96
        %v2327 = vpop.permute.xlu0 %2326
        %2328 = vrot.lane.b32.xlu0 %v2265, 96
        %v2329 = vpop.permute.xlu0 %2328
        %2330 = vrot.lane.b32.xlu0 %v2266, 96
        %v2331 = vpop.permute.xlu0 %2330
        %2332 = vrot.lane.b32.xlu0 %v2267, 96
        %v2333 = vpop.permute.xlu0 %2332
        %2334 = vrot.lane.b32.xlu0 %v2268, 96
        %v2335 = vpop.permute.xlu0 %2334
        %2336 = vrot.lane.b32.xlu0 %v2269, 96
        %v2337 = vpop.permute.xlu0 %2336
        %2338 = vrot.lane.b32.xlu0 %v2270, 96
        %v2339 = vpop.permute.xlu0 %2338
        %2340 = vrot.lane.b32.xlu0 %v2271, 96
        %v2341 = vpop.permute.xlu0 %2340
        %2342 = vrot.lane.b32.xlu0 %v2272, 96
        %v2343 = vpop.permute.xlu0 %2342
        %2344 = vrot.lane.b32.xlu0 %v2273, 96
        %v2345 = vpop.permute.xlu0 %2344
        %2346 = vrot.lane.b32.xlu0 %v2274, 96
        %v2347 = vpop.permute.xlu0 %2346
        %2348 = vrot.lane.b32.xlu0 %v2275, 96
        %v2349 = vpop.permute.xlu0 %2348
        %2350 = vrot.lane.b32.xlu0 %v2276, 96
        %v2351 = vpop.permute.xlu0 %2350
        %2352 = vrot.lane.b32.xlu0 %v2277, 96
        %v2353 = vpop.permute.xlu0 %2352
        %2354 = vrot.lane.b32.xlu0 %v2278, 96
        %v2355 = vpop.permute.xlu0 %2354
        %2356 = vrot.lane.b32.xlu0 %v2279, 96
        %v2357 = vpop.permute.xlu0 %2356
        %2358 = vrot.lane.b32.xlu0 %v2280, 96
        %v2359 = vpop.permute.xlu0 %2358
        %2360 = vrot.lane.b32.xlu0 %v2281, 96
        %v2361 = vpop.permute.xlu0 %2360
        %2362 = vrot.lane.b32.xlu0 %v2282, 96
        %v2363 = vpop.permute.xlu0 %2362
        %2364 = vrot.lane.b32.xlu0 %v2283, 96
        %v2365 = vpop.permute.xlu0 %2364
        %2366 = vrot.lane.b32.xlu0 %v2284, 96
        %v2367 = vpop.permute.xlu0 %2366
        %2368 = vrot.lane.b32.xlu0 %v2285, 96
        %v2369 = vpop.permute.xlu0 %2368
        %2398 = vst.msk [vmem:[#allocation4 + $0x8] sm:$0xff] %vm1836, %v2315
        %2399 = vst.msk [vmem:[#allocation4 + $0x20] sm:$0xff] %vm1836, %v2317
        %2400 = vst.msk [vmem:[#allocation4 + $0x38] sm:$0xff] %vm1836, %v2319
        %2401 = vst.msk [vmem:[#allocation4 + $0x50] sm:$0xff] %vm1836, %v2321
        %2402 = vst.msk [vmem:[#allocation4 + $0x68] sm:$0xff] %vm1836, %v2323
        %2403 = vst.msk [vmem:[#allocation4 + $0x80] sm:$0xff] %vm1836, %v2325
        %2404 = vst.msk [vmem:[#allocation4 + $0x98] sm:$0xff] %vm1836, %v2327
        %2405 = vst.msk [vmem:[#allocation4 + $0xb0] sm:$0xff] %vm1836, %v2329
        %2406 = vst.msk [vmem:[#allocation4 + $0xc8] sm:$0xff] %vm1836, %v2331
        %2407 = vst.msk [vmem:[#allocation4 + $0xe0] sm:$0xff] %vm1836, %v2333
        %2408 = vst.msk [vmem:[#allocation4 + $0xf8] sm:$0xff] %vm1836, %v2335
        %2409 = vst.msk [vmem:[#allocation4 + $0x110] sm:$0xff] %vm1836, %v2337
        %2410 = vst.msk [vmem:[#allocation4 + $0x128] sm:$0xff] %vm1836, %v2339
        %2411 = vst.msk [vmem:[#allocation4 + $0x140] sm:$0xff] %vm1836, %v2341
        %2412 = vst.msk [vmem:[#allocation4 + $0x158] sm:$0xff] %vm1836, %v2343
        %2413 = vst.msk [vmem:[#allocation4 + $0x170] sm:$0xff] %vm1836, %v2345
        %2414 = vst.msk [vmem:[#allocation4 + $0x188] sm:$0xff] %vm1836, %v2347
        %2415 = vst.msk [vmem:[#allocation4 + $0x1a0] sm:$0xff] %vm1836, %v2349
        %2416 = vst.msk [vmem:[#allocation4 + $0x1b8] sm:$0xff] %vm1836, %v2351
        %2417 = vst.msk [vmem:[#allocation4 + $0x1d0] sm:$0xff] %vm1836, %v2353
        %2418 = vst.msk [vmem:[#allocation4 + $0x1e8] sm:$0xff] %vm1836, %v2355
        %2419 = vst.msk [vmem:[#allocation4 + $0x200] sm:$0xff] %vm1836, %v2357
        %2420 = vst.msk [vmem:[#allocation4 + $0x218] sm:$0xff] %vm1836, %v2359
        %2421 = vst.msk [vmem:[#allocation4 + $0x230] sm:$0xff] %vm1836, %v2361
        %2422 = vst.msk [vmem:[#allocation4 + $0x248] sm:$0xff] %vm1836, %v2363
        %2423 = vst.msk [vmem:[#allocation4 + $0x260] sm:$0xff] %vm1836, %v2365
        %2424 = vst.msk [vmem:[#allocation4 + $0x278] sm:$0xff] %vm1836, %v2367
        %2425 = vst.msk [vmem:[#allocation4 + $0x290] sm:$0x3f] %vm1864, %v2369
        %v2426 = vld [vmem:[#allocation3 + $0x22] sm:$0xff]
        %v2427 = vld [vmem:[#allocation3 + $0x2a] sm:$0xff]
        %v2428 = vld [vmem:[#allocation3 + $0x32] sm:$0xff]
        %v2429 = vld [vmem:[#allocation3 + $0x3a] sm:$0xff]
        %v2430 = vld [vmem:[#allocation3 + $0x42] sm:$0xff]
        %v2431 = vld [vmem:[#allocation3 + $0x4a] sm:$0xff]
        %v2432 = vld [vmem:[#allocation3 + $0x52] sm:$0xff]
        %v2433 = vld [vmem:[#allocation3 + $0x5a] sm:$0xff]
        %v2434 = vld [vmem:[#allocation3 + $0x62] sm:$0xff]
        %v2435 = vld [vmem:[#allocation3 + $0x6a] sm:$0xff]
        %v2436 = vld [vmem:[#allocation3 + $0x72] sm:$0xff]
        %v2437 = vld [vmem:[#allocation3 + $0x7a] sm:$0xff]
        %v2438 = vld [vmem:[#allocation3 + $0x82] sm:$0xff]
        %v2439 = vld [vmem:[#allocation3 + $0x8a] sm:$0xff]
        %v2440 = vld [vmem:[#allocation3 + $0x92] sm:$0xff]
        %v2441 = vld [vmem:[#allocation3 + $0x9a] sm:$0xff]
        %v2442 = vld [vmem:[#allocation3 + $0xa2] sm:$0xff]
        %v2443 = vld [vmem:[#allocation3 + $0xaa] sm:$0xff]
        %v2444 = vld [vmem:[#allocation3 + $0xb2] sm:$0xff]
        %v2445 = vld [vmem:[#allocation3 + $0xba] sm:$0xff]
        %v2446 = vld [vmem:[#allocation3 + $0xc2] sm:$0xff]
        %v2447 = vld [vmem:[#allocation3 + $0xca] sm:$0xff]
        %v2448 = vld [vmem:[#allocation3 + $0xd2] sm:$0xff]
        %v2449 = vld [vmem:[#allocation3 + $0xda] sm:$0xff]
        %v2450 = vld [vmem:[#allocation3 + $0xe2] sm:$0xff]
        %v2451 = vld [vmem:[#allocation3 + $0xea] sm:$0xff]
        %v2452 = vld [vmem:[#allocation3 + $0xf2] sm:$0xff]
        %v2453 = vld [vmem:[#allocation3 + $0xfa] sm:$0x3f]
        %2454 = vst.msk [vmem:[#allocation4 + $0x10] sm:$0xff] %vm733, %v2426
        %2455 = vst.msk [vmem:[#allocation4 + $0x28] sm:$0xff] %vm733, %v2427
        %2456 = vst.msk [vmem:[#allocation4 + $0x40] sm:$0xff] %vm733, %v2428
        %2457 = vst.msk [vmem:[#allocation4 + $0x58] sm:$0xff] %vm733, %v2429
        %2458 = vst.msk [vmem:[#allocation4 + $0x70] sm:$0xff] %vm733, %v2430
        %2459 = vst.msk [vmem:[#allocation4 + $0x88] sm:$0xff] %vm733, %v2431
        %2460 = vst.msk [vmem:[#allocation4 + $0xa0] sm:$0xff] %vm733, %v2432
        %2461 = vst.msk [vmem:[#allocation4 + $0xb8] sm:$0xff] %vm733, %v2433
        %2462 = vst.msk [vmem:[#allocation4 + $0xd0] sm:$0xff] %vm733, %v2434
        %2463 = vst.msk [vmem:[#allocation4 + $0xe8] sm:$0xff] %vm733, %v2435
        %2464 = vst.msk [vmem:[#allocation4 + $0x100] sm:$0xff] %vm733, %v2436
        %2465 = vst.msk [vmem:[#allocation4 + $0x118] sm:$0xff] %vm733, %v2437
        %2466 = vst.msk [vmem:[#allocation4 + $0x130] sm:$0xff] %vm733, %v2438
        %2467 = vst.msk [vmem:[#allocation4 + $0x148] sm:$0xff] %vm733, %v2439
        %2468 = vst.msk [vmem:[#allocation4 + $0x160] sm:$0xff] %vm733, %v2440
        %2469 = vst.msk [vmem:[#allocation4 + $0x178] sm:$0xff] %vm733, %v2441
        %2470 = vst.msk [vmem:[#allocation4 + $0x190] sm:$0xff] %vm733, %v2442
        %2471 = vst.msk [vmem:[#allocation4 + $0x1a8] sm:$0xff] %vm733, %v2443
        %2472 = vst.msk [vmem:[#allocation4 + $0x1c0] sm:$0xff] %vm733, %v2444
        %2473 = vst.msk [vmem:[#allocation4 + $0x1d8] sm:$0xff] %vm733, %v2445
        %2474 = vst.msk [vmem:[#allocation4 + $0x1f0] sm:$0xff] %vm733, %v2446
        %2475 = vst.msk [vmem:[#allocation4 + $0x208] sm:$0xff] %vm733, %v2447
        %2476 = vst.msk [vmem:[#allocation4 + $0x220] sm:$0xff] %vm733, %v2448
        %2477 = vst.msk [vmem:[#allocation4 + $0x238] sm:$0xff] %vm733, %v2449
        %2478 = vst.msk [vmem:[#allocation4 + $0x250] sm:$0xff] %vm733, %v2450
        %2479 = vst.msk [vmem:[#allocation4 + $0x268] sm:$0xff] %vm733, %v2451
        %2480 = vst.msk [vmem:[#allocation4 + $0x280] sm:$0xff] %vm733, %v2452
        %2481 = vst.msk [vmem:[#allocation4 + $0x298] sm:$0x3f] %vm804, %v2453
        %v2482 = vld [vmem:[#allocation4] sm:$0xff]
        %v2483 = vld [vmem:[#allocation4 + $0x8] sm:$0xff]
        %v2484 = vld [vmem:[#allocation4 + $0x10] sm:$0xff]
        %v2485 = vld [vmem:[#allocation4 + $0x18] sm:$0xff]
        %v2486 = vld [vmem:[#allocation4 + $0x20] sm:$0xff]
        %v2487 = vld [vmem:[#allocation4 + $0x28] sm:$0xff]
        %v2488 = vld [vmem:[#allocation4 + $0x30] sm:$0xff]
        %v2489 = vld [vmem:[#allocation4 + $0x38] sm:$0xff]
        %v2490 = vld [vmem:[#allocation4 + $0x40] sm:$0xff]
        %v2491 = vld [vmem:[#allocation4 + $0x48] sm:$0xff]
        %v2492 = vld [vmem:[#allocation4 + $0x50] sm:$0xff]
        %v2493 = vld [vmem:[#allocation4 + $0x58] sm:$0xff]
        %v2494 = vld [vmem:[#allocation4 + $0x60] sm:$0xff]
        %v2495 = vld [vmem:[#allocation4 + $0x68] sm:$0xff]
        %v2496 = vld [vmem:[#allocation4 + $0x70] sm:$0xff]
        %v2497 = vld [vmem:[#allocation4 + $0x78] sm:$0xff]
        %v2498 = vld [vmem:[#allocation4 + $0x80] sm:$0xff]
        %v2499 = vld [vmem:[#allocation4 + $0x88] sm:$0xff]
        %v2500 = vld [vmem:[#allocation4 + $0x90] sm:$0xff]
        %v2501 = vld [vmem:[#allocation4 + $0x98] sm:$0xff]
        %v2502 = vld [vmem:[#allocation4 + $0xa0] sm:$0xff]
        %v2503 = vld [vmem:[#allocation4 + $0xa8] sm:$0xff]
        %v2504 = vld [vmem:[#allocation4 + $0xb0] sm:$0xff]
        %v2505 = vld [vmem:[#allocation4 + $0xb8] sm:$0xff]
        %v2506 = vld [vmem:[#allocation4 + $0xc0] sm:$0xff]
        %v2507 = vld [vmem:[#allocation4 + $0xc8] sm:$0xff]
        %v2508 = vld [vmem:[#allocation4 + $0xd0] sm:$0xff]
        %v2509 = vld [vmem:[#allocation4 + $0xd8] sm:$0xff]
        %v2510 = vld [vmem:[#allocation4 + $0xe0] sm:$0xff]
        %v2511 = vld [vmem:[#allocation4 + $0xe8] sm:$0xff]
        %v2512 = vld [vmem:[#allocation4 + $0xf0] sm:$0xff]
        %v2513 = vld [vmem:[#allocation4 + $0xf8] sm:$0xff]
        %v2514 = vld [vmem:[#allocation4 + $0x100] sm:$0xff]
        %v2515 = vld [vmem:[#allocation4 + $0x108] sm:$0xff]
        %v2516 = vld [vmem:[#allocation4 + $0x110] sm:$0xff]
        %v2517 = vld [vmem:[#allocation4 + $0x118] sm:$0xff]
        %v2518 = vld [vmem:[#allocation4 + $0x120] sm:$0xff]
        %v2519 = vld [vmem:[#allocation4 + $0x128] sm:$0xff]
        %v2520 = vld [vmem:[#allocation4 + $0x130] sm:$0xff]
        %v2521 = vld [vmem:[#allocation4 + $0x138] sm:$0xff]
        %v2522 = vld [vmem:[#allocation4 + $0x140] sm:$0xff]
        %v2523 = vld [vmem:[#allocation4 + $0x148] sm:$0xff]
        %v2524 = vld [vmem:[#allocation4 + $0x150] sm:$0xff]
        %v2525 = vld [vmem:[#allocation4 + $0x158] sm:$0xff]
        %v2526 = vld [vmem:[#allocation4 + $0x160] sm:$0xff]
        %v2527 = vld [vmem:[#allocation4 + $0x168] sm:$0xff]
        %v2528 = vld [vmem:[#allocation4 + $0x170] sm:$0xff]
        %v2529 = vld [vmem:[#allocation4 + $0x178] sm:$0xff]
        %v2530 = vld [vmem:[#allocation4 + $0x180] sm:$0xff]
        %v2531 = vld [vmem:[#allocation4 + $0x188] sm:$0xff]
        %v2532 = vld [vmem:[#allocation4 + $0x190] sm:$0xff]
        %v2533 = vld [vmem:[#allocation4 + $0x198] sm:$0xff]
        %v2534 = vld [vmem:[#allocation4 + $0x1a0] sm:$0xff]
        %v2535 = vld [vmem:[#allocation4 + $0x1a8] sm:$0xff]
        %v2536 = vld [vmem:[#allocation4 + $0x1b0] sm:$0xff]
        %v2537 = vld [vmem:[#allocation4 + $0x1b8] sm:$0xff]
        %v2538 = vld [vmem:[#allocation4 + $0x1c0] sm:$0xff]
        %v2539 = vld [vmem:[#allocation4 + $0x1c8] sm:$0xff]
        %v2540 = vld [vmem:[#allocation4 + $0x1d0] sm:$0xff]
        %v2541 = vld [vmem:[#allocation4 + $0x1d8] sm:$0xff]
        %v2542 = vld [vmem:[#allocation4 + $0x1e0] sm:$0xff]
        %v2543 = vld [vmem:[#allocation4 + $0x1e8] sm:$0xff]
        %v2544 = vld [vmem:[#allocation4 + $0x1f0] sm:$0xff]
        %v2545 = vld [vmem:[#allocation4 + $0x1f8] sm:$0xff]
        %v2546 = vld [vmem:[#allocation4 + $0x200] sm:$0xff]
        %v2547 = vld [vmem:[#allocation4 + $0x208] sm:$0xff]
        %v2548 = vld [vmem:[#allocation4 + $0x210] sm:$0xff]
        %v2549 = vld [vmem:[#allocation4 + $0x218] sm:$0xff]
        %v2550 = vld [vmem:[#allocation4 + $0x220] sm:$0xff]
        %v2551 = vld [vmem:[#allocation4 + $0x228] sm:$0xff]
        %v2552 = vld [vmem:[#allocation4 + $0x230] sm:$0xff]
        %v2553 = vld [vmem:[#allocation4 + $0x238] sm:$0xff]
        %v2554 = vld [vmem:[#allocation4 + $0x240] sm:$0xff]
        %v2555 = vld [vmem:[#allocation4 + $0x248] sm:$0xff]
        %v2556 = vld [vmem:[#allocation4 + $0x250] sm:$0xff]
        %v2557 = vld [vmem:[#allocation4 + $0x258] sm:$0xff]
        %v2558 = vld [vmem:[#allocation4 + $0x260] sm:$0xff]
        %v2559 = vld [vmem:[#allocation4 + $0x268] sm:$0xff]
        %v2560 = vld [vmem:[#allocation4 + $0x270] sm:$0xff]
        %v2561 = vld [vmem:[#allocation4 + $0x278] sm:$0xff]
        %v2562 = vld [vmem:[#allocation4 + $0x280] sm:$0xff]
        %v2563 = vld [vmem:[#allocation4 + $0x288] sm:$0x3f]
        %v2564 = vld [vmem:[#allocation4 + $0x290] sm:$0x3f]
        %v2565 = vld [vmem:[#allocation4 + $0x298] sm:$0x3f]
        %v2566 = vpack.c.bf16 %v2485, %v2482
        %v2567 = vpack.c.bf16 %v2486, %v2483
        %v2568 = vpack.c.bf16 %v2487, %v2484
        %v2569 = vpack.c.bf16 %v2491, %v2488
        %v2570 = vpack.c.bf16 %v2492, %v2489
        %v2571 = vpack.c.bf16 %v2493, %v2490
        %v2572 = vpack.c.bf16 %v2497, %v2494
        %v2573 = vpack.c.bf16 %v2498, %v2495
        %v2574 = vpack.c.bf16 %v2499, %v2496
        %v2575 = vpack.c.bf16 %v2503, %v2500
        %v2576 = vpack.c.bf16 %v2504, %v2501
        %v2577 = vpack.c.bf16 %v2505, %v2502
        %v2578 = vpack.c.bf16 %v2509, %v2506
        %v2579 = vpack.c.bf16 %v2510, %v2507
        %v2580 = vpack.c.bf16 %v2511, %v2508
        %v2581 = vpack.c.bf16 %v2515, %v2512
        %v2582 = vpack.c.bf16 %v2516, %v2513
        %v2583 = vpack.c.bf16 %v2517, %v2514
        %v2584 = vpack.c.bf16 %v2521, %v2518
        %v2585 = vpack.c.bf16 %v2522, %v2519
        %v2586 = vpack.c.bf16 %v2523, %v2520
        %v2587 = vpack.c.bf16 %v2527, %v2524
        %v2588 = vpack.c.bf16 %v2528, %v2525
        %v2589 = vpack.c.bf16 %v2529, %v2526
        %v2590 = vpack.c.bf16 %v2533, %v2530
        %v2591 = vpack.c.bf16 %v2534, %v2531
        %v2592 = vpack.c.bf16 %v2535, %v2532
        %v2593 = vpack.c.bf16 %v2539, %v2536
        %v2594 = vpack.c.bf16 %v2540, %v2537
        %v2595 = vpack.c.bf16 %v2541, %v2538
        %v2596 = vpack.c.bf16 %v2545, %v2542
        %v2597 = vpack.c.bf16 %v2546, %v2543
        %v2598 = vpack.c.bf16 %v2547, %v2544
        %v2599 = vpack.c.bf16 %v2551, %v2548
        %v2600 = vpack.c.bf16 %v2552, %v2549
        %v2601 = vpack.c.bf16 %v2553, %v2550
        %v2602 = vpack.c.bf16 %v2557, %v2554
        %v2603 = vpack.c.bf16 %v2558, %v2555
        %v2604 = vpack.c.bf16 %v2559, %v2556
        %v2605 = vpack.c.bf16 %v2563, %v2560
        %v2606 = vpack.c.bf16 %v2564, %v2561
        %v2607 = vpack.c.bf16 %v2565, %v2562
        %v2608 = vld [vmem:[%s3] sm:$0xf]
        %v2609 = vld [vmem:[%s3 + $0x4] sm:$0xf]
        %v2610 = vld [vmem:[%s3 + $0x8] sm:$0xf]
        %v2611 = vld [vmem:[%s3 + $0xc] sm:$0xf]
        %v2612 = vld [vmem:[%s3 + $0x10] sm:$0xf]
        %v2613 = vld [vmem:[%s3 + $0x14] sm:$0xf]
        %v2614 = vld [vmem:[%s3 + $0x18] sm:$0xf]
        %v2615 = vld [vmem:[%s3 + $0x1c] sm:$0xf]
        %v2616 = vld [vmem:[%s3 + $0x20] sm:$0xf]
        %v2617 = vld [vmem:[%s3 + $0x24] sm:$0xf]
        %v2618 = vld [vmem:[%s3 + $0x28] sm:$0xf]
        %v2619 = vld [vmem:[%s3 + $0x2c] sm:$0xf]
        %v2620 = vld [vmem:[%s3 + $0x30] sm:$0xf]
        %v2621 = vld [vmem:[%s3 + $0x34] sm:$0xf]
        %v2622 = vld [vmem:[%s3 + $0x38] sm:$0xf]
        %v2623 = vld [vmem:[%s3 + $0x3c] sm:$0xf]
        %v2624 = vld [vmem:[%s3 + $0x40] sm:$0xf]
        %v2625 = vld [vmem:[%s3 + $0x44] sm:$0xf]
        %v2626 = vld [vmem:[%s3 + $0x48] sm:$0xf]
        %v2627 = vld [vmem:[%s3 + $0x4c] sm:$0xf]
        %v2628 = vld [vmem:[%s3 + $0x50] sm:$0xf]
        %v2629 = vld [vmem:[%s3 + $0x54] sm:$0xf]
        %v2630 = vld [vmem:[%s3 + $0x58] sm:$0xf]
        %v2631 = vld [vmem:[%s3 + $0x5c] sm:$0xf]
        %v2632 = vld [vmem:[%s3 + $0x60] sm:$0xf]
        %v2633 = vld [vmem:[%s3 + $0x64] sm:$0xf]
        %v2634 = vld [vmem:[%s3 + $0x68] sm:$0xf]
        %v2635 = vld [vmem:[%s3 + $0x6c] sm:$0xf]
        %v2636 = vld [vmem:[%s3 + $0x70] sm:$0xf]
        %v2637 = vld [vmem:[%s3 + $0x74] sm:$0xf]
        %v2638 = vld [vmem:[%s3 + $0x78] sm:$0xf]
        %v2639 = vld [vmem:[%s3 + $0x7c] sm:$0xf]
        %v2640 = vld [vmem:[%s3 + $0x80] sm:$0xf]
        %v2641 = vld [vmem:[%s3 + $0x84] sm:$0xf]
        %v2642 = vld [vmem:[%s3 + $0x88] sm:$0xf]
        %v2643 = vld [vmem:[%s3 + $0x8c] sm:$0xf]
        %v2644 = vld [vmem:[%s4] sm:$0x1]
        %v2646 = vperm.slane %v2644, 0
        %v2684 = vunpack.c.l.b16 %v2608
        %v2685 = vunpack.c.l.b16 %v2609
        %v2686 = vunpack.c.l.b16 %v2610
        %v2687 = vunpack.c.l.b16 %v2611
        %v2688 = vunpack.c.l.b16 %v2612
        %v2689 = vunpack.c.l.b16 %v2613
        %v2690 = vunpack.c.l.b16 %v2614
        %v2691 = vunpack.c.l.b16 %v2615
        %v2692 = vunpack.c.l.b16 %v2616
        %v2693 = vunpack.c.l.b16 %v2617
        %v2694 = vunpack.c.l.b16 %v2618
        %v2695 = vunpack.c.l.b16 %v2619
        %v2696 = vunpack.c.l.b16 %v2620
        %v2697 = vunpack.c.l.b16 %v2621
        %v2698 = vunpack.c.l.b16 %v2622
        %v2699 = vunpack.c.l.b16 %v2623
        %v2700 = vunpack.c.l.b16 %v2624
        %v2701 = vunpack.c.l.b16 %v2625
        %v2702 = vunpack.c.l.b16 %v2626
        %v2703 = vunpack.c.l.b16 %v2627
        %v2704 = vunpack.c.l.b16 %v2628
        %v2705 = vunpack.c.l.b16 %v2629
        %v2706 = vunpack.c.l.b16 %v2630
        %v2707 = vunpack.c.l.b16 %v2631
        %v2708 = vunpack.c.l.b16 %v2632
        %v2709 = vunpack.c.l.b16 %v2633
        %v2710 = vunpack.c.l.b16 %v2634
        %v2711 = vunpack.c.l.b16 %v2635
        %v2712 = vunpack.c.l.b16 %v2636
        %v2713 = vunpack.c.l.b16 %v2637
        %v2714 = vunpack.c.l.b16 %v2638
        %v2715 = vunpack.c.l.b16 %v2639
        %v2716 = vunpack.c.l.b16 %v2640
        %v2717 = vunpack.c.l.b16 %v2641
        %v2718 = vunpack.c.l.b16 %v2642
        %v2719 = vunpack.c.l.b16 %v2643
        %v2720 = vpack.c.b16 %v2685, %v2684
        %v2721 = vpack.c.b16 %v2687, %v2686
        %v2722 = vpack.c.b16 %v2689, %v2688
        %v2723 = vpack.c.b16 %v2691, %v2690
        %v2724 = vpack.c.b16 %v2693, %v2692
        %v2725 = vpack.c.b16 %v2695, %v2694
        %v2726 = vpack.c.b16 %v2697, %v2696
        %v2727 = vpack.c.b16 %v2699, %v2698
        %v2728 = vpack.c.b16 %v2701, %v2700
        %v2729 = vpack.c.b16 %v2703, %v2702
        %v2730 = vpack.c.b16 %v2705, %v2704
        %v2731 = vpack.c.b16 %v2707, %v2706
        %v2732 = vpack.c.b16 %v2709, %v2708
        %v2733 = vpack.c.b16 %v2711, %v2710
        %v2734 = vpack.c.b16 %v2713, %v2712
        %v2735 = vpack.c.b16 %v2715, %v2714
        %v2736 = vpack.c.b16 %v2717, %v2716
        %v2737 = vpack.c.b16 %v2719, %v2718
        %v2757 = vsel %vm733, %v2568, 0
        %v2760 = vsel %vm733, %v2571, 0
        %v2763 = vsel %vm733, %v2574, 0
        %v2766 = vsel %vm733, %v2577, 0
        %v2769 = vsel %vm733, %v2580, 0
        %v2772 = vsel %vm733, %v2583, 0
        %v2775 = vsel %vm733, %v2586, 0
        %v2778 = vsel %vm733, %v2589, 0
        %v2781 = vsel %vm733, %v2592, 0
        %v2784 = vsel %vm733, %v2595, 0
        %v2787 = vsel %vm733, %v2598, 0
        %v2790 = vsel %vm733, %v2601, 0
        %v2793 = vsel %vm733, %v2604, 0
        %v2796 = vsel %vm733, %v2607, 0
        %2798 = vmatpush.bf16.msra.mxu0 %v2727
        %2799 = vmatpush.bf16.msra.mxu0 %v2726
        %2800 = vmatpush.bf16.msra.mxu0 %v2725
        %2801 = vmatpush.bf16.msra.mxu0 %v2724
        %2802 = vmatpush.bf16.msra.mxu0 %v2723
        %2803 = vmatpush.bf16.msra.mxu0 %v2722
        %2804 = vmatpush.bf16.msra.mxu0 %v2721
        %2805 = vmatpush.bf16.msra.mxu0 %v2720
        %2806 = vmatmul.bf16.gmra.mxu0 %v2566
        %v2807 = vpop.f32.mrf.mxu0
        %v2808 = vadd.f32 %v2646, %v2807
        %v2809 = vpop.f32.mrf.mxu0
        %v2810 = vadd.f32 %v2646, %v2809
        %2811 = vmatmul.bf16.gmra.mxu0 %v2569
        %v2812 = vpop.f32.mrf.mxu0
        %v2813 = vadd.f32 %v2646, %v2812
        %v2814 = vpop.f32.mrf.mxu0
        %v2815 = vadd.f32 %v2646, %v2814
        %2816 = vmatmul.bf16.gmra.mxu0 %v2572
        %v2817 = vpop.f32.mrf.mxu0
        %v2818 = vadd.f32 %v2646, %v2817
        %v2819 = vpop.f32.mrf.mxu0
        %v2820 = vadd.f32 %v2646, %v2819
        %2821 = vmatmul.bf16.gmra.mxu0 %v2575
        %v2822 = vpop.f32.mrf.mxu0
        %v2823 = vadd.f32 %v2646, %v2822
        %v2824 = vpop.f32.mrf.mxu0
        %v2825 = vadd.f32 %v2646, %v2824
        %2826 = vmatmul.bf16.gmra.mxu0 %v2578
        %v2827 = vpop.f32.mrf.mxu0
        %v2828 = vadd.f32 %v2646, %v2827
        %v2829 = vpop.f32.mrf.mxu0
        %v2830 = vadd.f32 %v2646, %v2829
        %2831 = vmatmul.bf16.gmra.mxu0 %v2581
        %v2832 = vpop.f32.mrf.mxu0
        %v2833 = vadd.f32 %v2646, %v2832
        %v2834 = vpop.f32.mrf.mxu0
        %v2835 = vadd.f32 %v2646, %v2834
        %2836 = vmatmul.bf16.gmra.mxu0 %v2584
        %v2837 = vpop.f32.mrf.mxu0
        %v2838 = vadd.f32 %v2646, %v2837
        %v2839 = vpop.f32.mrf.mxu0
        %v2840 = vadd.f32 %v2646, %v2839
        %2841 = vmatmul.bf16.gmra.mxu0 %v2587
        %v2842 = vpop.f32.mrf.mxu0
        %v2843 = vadd.f32 %v2646, %v2842
        %v2844 = vpop.f32.mrf.mxu0
        %v2845 = vadd.f32 %v2646, %v2844
        %2846 = vmatmul.bf16.gmra.mxu0 %v2590
        %v2847 = vpop.f32.mrf.mxu0
        %v2848 = vadd.f32 %v2646, %v2847
        %v2849 = vpop.f32.mrf.mxu0
        %v2850 = vadd.f32 %v2646, %v2849
        %2851 = vmatmul.bf16.gmra.mxu0 %v2593
        %v2852 = vpop.f32.mrf.mxu0
        %v2853 = vadd.f32 %v2646, %v2852
        %v2854 = vpop.f32.mrf.mxu0
        %v2855 = vadd.f32 %v2646, %v2854
        %2856 = vmatmul.bf16.gmra.mxu0 %v2596
        %v2857 = vpop.f32.mrf.mxu0
        %v2858 = vadd.f32 %v2646, %v2857
        %v2859 = vpop.f32.mrf.mxu0
        %v2860 = vadd.f32 %v2646, %v2859
        %2861 = vmatmul.bf16.gmra.mxu0 %v2599
        %v2862 = vpop.f32.mrf.mxu0
        %v2863 = vadd.f32 %v2646, %v2862
        %v2864 = vpop.f32.mrf.mxu0
        %v2865 = vadd.f32 %v2646, %v2864
        %2866 = vmatmul.bf16.gmra.mxu0 %v2602
        %v2867 = vpop.f32.mrf.mxu0
        %v2868 = vadd.f32 %v2646, %v2867
        %v2869 = vpop.f32.mrf.mxu0
        %v2870 = vadd.f32 %v2646, %v2869
        %2871 = vmatmul.bf16.gmra.mxu0 %v2605
        %v2872 = vpop.f32.mrf.mxu0
        %v2873 = vadd.f32 %v2646, %v2872
        %v2874 = vpop.f32.mrf.mxu0
        %v2875 = vadd.f32 %v2646, %v2874
        %2876 = vdwg.mxu0
        %2877 = vmatpush.bf16.msra.mxu0 %v2735
        %2878 = vmatpush.bf16.msra.mxu0 %v2734
        %2879 = vmatpush.bf16.msra.mxu0 %v2733
        %2880 = vmatpush.bf16.msra.mxu0 %v2732
        %2881 = vmatpush.bf16.msra.mxu0 %v2731
        %2882 = vmatpush.bf16.msra.mxu0 %v2730
        %2883 = vmatpush.bf16.msra.mxu0 %v2729
        %2884 = vmatpush.bf16.msra.mxu0 %v2728
        %2885 = vmatmul.bf16.gmra.mxu0 %v2567
        %v2886 = vpop.f32.mrf.mxu0
        %v2887 = vadd.f32 %v2808, %v2886
        %v2888 = vpop.f32.mrf.mxu0
        %v2889 = vadd.f32 %v2810, %v2888
        %2890 = vmatmul.bf16.gmra.mxu0 %v2570
        %v2891 = vpop.f32.mrf.mxu0
        %v2892 = vadd.f32 %v2813, %v2891
        %v2893 = vpop.f32.mrf.mxu0
        %v2894 = vadd.f32 %v2815, %v2893
        %2895 = vmatmul.bf16.gmra.mxu0 %v2573
        %v2896 = vpop.f32.mrf.mxu0
        %v2897 = vadd.f32 %v2818, %v2896
        %v2898 = vpop.f32.mrf.mxu0
        %v2899 = vadd.f32 %v2820, %v2898
        %2900 = vmatmul.bf16.gmra.mxu0 %v2576
        %v2901 = vpop.f32.mrf.mxu0
        %v2902 = vadd.f32 %v2823, %v2901
        %v2903 = vpop.f32.mrf.mxu0
        %v2904 = vadd.f32 %v2825, %v2903
        %2905 = vmatmul.bf16.gmra.mxu0 %v2579
        %v2906 = vpop.f32.mrf.mxu0
        %v2907 = vadd.f32 %v2828, %v2906
        %v2908 = vpop.f32.mrf.mxu0
        %v2909 = vadd.f32 %v2830, %v2908
        %2910 = vmatmul.bf16.gmra.mxu0 %v2582
        %v2911 = vpop.f32.mrf.mxu0
        %v2912 = vadd.f32 %v2833, %v2911
        %v2913 = vpop.f32.mrf.mxu0
        %v2914 = vadd.f32 %v2835, %v2913
        %2915 = vmatmul.bf16.gmra.mxu0 %v2585
        %v2916 = vpop.f32.mrf.mxu0
        %v2917 = vadd.f32 %v2838, %v2916
        %v2918 = vpop.f32.mrf.mxu0
        %v2919 = vadd.f32 %v2840, %v2918
        %2920 = vmatmul.bf16.gmra.mxu0 %v2588
        %v2921 = vpop.f32.mrf.mxu0
        %v2922 = vadd.f32 %v2843, %v2921
        %v2923 = vpop.f32.mrf.mxu0
        %v2924 = vadd.f32 %v2845, %v2923
        %2925 = vmatmul.bf16.gmra.mxu0 %v2591
        %v2926 = vpop.f32.mrf.mxu0
        %v2927 = vadd.f32 %v2848, %v2926
        %v2928 = vpop.f32.mrf.mxu0
        %v2929 = vadd.f32 %v2850, %v2928
        %2930 = vmatmul.bf16.gmra.mxu0 %v2594
        %v2931 = vpop.f32.mrf.mxu0
        %v2932 = vadd.f32 %v2853, %v2931
        %v2933 = vpop.f32.mrf.mxu0
        %v2934 = vadd.f32 %v2855, %v2933
        %2935 = vmatmul.bf16.gmra.mxu0 %v2597
        %v2936 = vpop.f32.mrf.mxu0
        %v2937 = vadd.f32 %v2858, %v2936
        %v2938 = vpop.f32.mrf.mxu0
        %v2939 = vadd.f32 %v2860, %v2938
        %2940 = vmatmul.bf16.gmra.mxu0 %v2600
        %v2941 = vpop.f32.mrf.mxu0
        %v2942 = vadd.f32 %v2863, %v2941
        %v2943 = vpop.f32.mrf.mxu0
        %v2944 = vadd.f32 %v2865, %v2943
        %2945 = vmatmul.bf16.gmra.mxu0 %v2603
        %v2946 = vpop.f32.mrf.mxu0
        %v2947 = vadd.f32 %v2868, %v2946
        %v2948 = vpop.f32.mrf.mxu0
        %v2949 = vadd.f32 %v2870, %v2948
        %2950 = vmatmul.bf16.gmra.mxu0 %v2606
        %v2951 = vpop.f32.mrf.mxu0
        %v2952 = vadd.f32 %v2873, %v2951
        %v2953 = vpop.f32.mrf.mxu0
        %v2954 = vadd.f32 %v2875, %v2953
        %2955 = vdwg.mxu0
        %2956 = vmatpush.bf16.msra.mxu0 0
        %2957 = vmatpush.bf16.msra.mxu0 0
        %2958 = vmatpush.bf16.msra.mxu0 0
        %2959 = vmatpush.bf16.msra.mxu0 0
        %2960 = vmatpush.bf16.msra.mxu0 0
        %2961 = vmatpush.bf16.msra.mxu0 0
        %2962 = vmatpush.bf16.msra.mxu0 %v2737
        %2963 = vmatpush.bf16.msra.mxu0 %v2736
        %2964 = vmatmul.bf16.gmra.mxu0 %v2757
        %v2965 = vpop.f32.mrf.mxu0
        %v2966 = vadd.f32 %v2887, %v2965
        %v2967 = vpop.f32.mrf.mxu0
        %v2968 = vadd.f32 %v2889, %v2967
        %2969 = vmatmul.bf16.gmra.mxu0 %v2760
        %v2970 = vpop.f32.mrf.mxu0
        %v2971 = vadd.f32 %v2892, %v2970
        %v2972 = vpop.f32.mrf.mxu0
        %v2973 = vadd.f32 %v2894, %v2972
        %2974 = vmatmul.bf16.gmra.mxu0 %v2763
        %v2975 = vpop.f32.mrf.mxu0
        %v2976 = vadd.f32 %v2897, %v2975
        %v2977 = vpop.f32.mrf.mxu0
        %v2978 = vadd.f32 %v2899, %v2977
        %2979 = vmatmul.bf16.gmra.mxu0 %v2766
        %v2980 = vpop.f32.mrf.mxu0
        %v2981 = vadd.f32 %v2902, %v2980
        %v2982 = vpop.f32.mrf.mxu0
        %v2983 = vadd.f32 %v2904, %v2982
        %2984 = vmatmul.bf16.gmra.mxu0 %v2769
        %v2985 = vpop.f32.mrf.mxu0
        %v2986 = vadd.f32 %v2907, %v2985
        %v2987 = vpop.f32.mrf.mxu0
        %v2988 = vadd.f32 %v2909, %v2987
        %2989 = vmatmul.bf16.gmra.mxu0 %v2772
        %v2990 = vpop.f32.mrf.mxu0
        %v2991 = vadd.f32 %v2912, %v2990
        %v2992 = vpop.f32.mrf.mxu0
        %v2993 = vadd.f32 %v2914, %v2992
        %2994 = vmatmul.bf16.gmra.mxu0 %v2775
        %v2995 = vpop.f32.mrf.mxu0
        %v2996 = vadd.f32 %v2917, %v2995
        %v2997 = vpop.f32.mrf.mxu0
        %v2998 = vadd.f32 %v2919, %v2997
        %2999 = vmatmul.bf16.gmra.mxu0 %v2778
        %v3000 = vpop.f32.mrf.mxu0
        %v3001 = vadd.f32 %v2922, %v3000
        %v3002 = vpop.f32.mrf.mxu0
        %v3003 = vadd.f32 %v2924, %v3002
        %3004 = vmatmul.bf16.gmra.mxu0 %v2781
        %v3005 = vpop.f32.mrf.mxu0
        %v3006 = vadd.f32 %v2927, %v3005
        %v3007 = vpop.f32.mrf.mxu0
        %v3008 = vadd.f32 %v2929, %v3007
        %3009 = vmatmul.bf16.gmra.mxu0 %v2784
        %v3010 = vpop.f32.mrf.mxu0
        %v3011 = vadd.f32 %v2932, %v3010
        %v3012 = vpop.f32.mrf.mxu0
        %v3013 = vadd.f32 %v2934, %v3012
        %3014 = vmatmul.bf16.gmra.mxu0 %v2787
        %v3015 = vpop.f32.mrf.mxu0
        %v3016 = vadd.f32 %v2937, %v3015
        %v3017 = vpop.f32.mrf.mxu0
        %v3018 = vadd.f32 %v2939, %v3017
        %3019 = vmatmul.bf16.gmra.mxu0 %v2790
        %v3020 = vpop.f32.mrf.mxu0
        %v3021 = vadd.f32 %v2942, %v3020
        %v3022 = vpop.f32.mrf.mxu0
        %v3023 = vadd.f32 %v2944, %v3022
        %3024 = vmatmul.bf16.gmra.mxu0 %v2793
        %v3025 = vpop.f32.mrf.mxu0
        %v3026 = vadd.f32 %v2947, %v3025
        %v3027 = vpop.f32.mrf.mxu0
        %v3028 = vadd.f32 %v2949, %v3027
        %3029 = vmatmul.bf16.gmra.mxu0 %v2796
        %v3030 = vpop.f32.mrf.mxu0
        %v3031 = vadd.f32 %v2952, %v3030
        %v3032 = vpop.f32.mrf.mxu0
        %v3033 = vadd.f32 %v2954, %v3032
        %3034 = vdwg.mxu0
        %v3035 = vmax.f32 %v2966, 0.0
        %v3036 = vmax.f32 %v2968, 0.0
        %v3037 = vmax.f32 %v2971, 0.0
        %v3038 = vmax.f32 %v2973, 0.0
        %v3039 = vmax.f32 %v2976, 0.0
        %v3040 = vmax.f32 %v2978, 0.0
        %v3041 = vmax.f32 %v2981, 0.0
        %v3042 = vmax.f32 %v2983, 0.0
        %v3043 = vmax.f32 %v2986, 0.0
        %v3044 = vmax.f32 %v2988, 0.0
        %v3045 = vmax.f32 %v2991, 0.0
        %v3046 = vmax.f32 %v2993, 0.0
        %v3047 = vmax.f32 %v2996, 0.0
        %v3048 = vmax.f32 %v2998, 0.0
        %v3049 = vmax.f32 %v3001, 0.0
        %v3050 = vmax.f32 %v3003, 0.0
        %v3051 = vmax.f32 %v3006, 0.0
        %v3052 = vmax.f32 %v3008, 0.0
        %v3053 = vmax.f32 %v3011, 0.0
        %v3054 = vmax.f32 %v3013, 0.0
        %v3055 = vmax.f32 %v3016, 0.0
        %v3056 = vmax.f32 %v3018, 0.0
        %v3057 = vmax.f32 %v3021, 0.0
        %v3058 = vmax.f32 %v3023, 0.0
        %v3059 = vmax.f32 %v3026, 0.0
        %v3060 = vmax.f32 %v3028, 0.0
        %v3061 = vmax.f32 %v3031, 0.0
        %v3062 = vmax.f32 %v3033, 0.0
        %3063 = vst.msk [vmem:[#allocation5] sm:$0xff] %vm683, %v3035
        %3064 = vst.msk [vmem:[#allocation5 + $0x8] sm:$0xff] %vm683, %v3036
        %3065 = vst.msk [vmem:[#allocation5 + $0x10] sm:$0xff] %vm683, %v3037
        %3066 = vst.msk [vmem:[#allocation5 + $0x18] sm:$0xff] %vm683, %v3038
        %3067 = vst.msk [vmem:[#allocation5 + $0x20] sm:$0xff] %vm683, %v3039
        %3068 = vst.msk [vmem:[#allocation5 + $0x28] sm:$0xff] %vm683, %v3040
        %3069 = vst.msk [vmem:[#allocation5 + $0x30] sm:$0xff] %vm683, %v3041
        %3070 = vst.msk [vmem:[#allocation5 + $0x38] sm:$0xff] %vm683, %v3042
        %3071 = vst.msk [vmem:[#allocation5 + $0x40] sm:$0xff] %vm683, %v3043
        %3072 = vst.msk [vmem:[#allocation5 + $0x48] sm:$0xff] %vm683, %v3044
        %3073 = vst.msk [vmem:[#allocation5 + $0x50] sm:$0xff] %vm683, %v3045
        %3074 = vst.msk [vmem:[#allocation5 + $0x58] sm:$0xff] %vm683, %v3046
        %3075 = vst.msk [vmem:[#allocation5 + $0x60] sm:$0xff] %vm683, %v3047
        %3076 = vst.msk [vmem:[#allocation5 + $0x68] sm:$0xff] %vm683, %v3048
        %3077 = vst.msk [vmem:[#allocation5 + $0x70] sm:$0xff] %vm683, %v3049
        %3078 = vst.msk [vmem:[#allocation5 + $0x78] sm:$0xff] %vm683, %v3050
        %3079 = vst.msk [vmem:[#allocation5 + $0x80] sm:$0xff] %vm683, %v3051
        %3080 = vst.msk [vmem:[#allocation5 + $0x88] sm:$0xff] %vm683, %v3052
        %3081 = vst.msk [vmem:[#allocation5 + $0x90] sm:$0xff] %vm683, %v3053
        %3082 = vst.msk [vmem:[#allocation5 + $0x98] sm:$0xff] %vm683, %v3054
        %3083 = vst.msk [vmem:[#allocation5 + $0xa0] sm:$0xff] %vm683, %v3055
        %3084 = vst.msk [vmem:[#allocation5 + $0xa8] sm:$0xff] %vm683, %v3056
        %3085 = vst.msk [vmem:[#allocation5 + $0xb0] sm:$0xff] %vm683, %v3057
        %3086 = vst.msk [vmem:[#allocation5 + $0xb8] sm:$0xff] %vm683, %v3058
        %3087 = vst.msk [vmem:[#allocation5 + $0xc0] sm:$0xff] %vm683, %v3059
        %3088 = vst.msk [vmem:[#allocation5 + $0xc8] sm:$0xff] %vm683, %v3060
        %3089 = vst.msk [vmem:[#allocation5 + $0xd0] sm:$0xff] %vm683, %v3061
        %vm3090 = vcmask 521216
        %3091 = vst.msk [vmem:[#allocation5 + $0xd8] sm:$0x3f] %vm3090, %v3062
        %v3092 = vld [vmem:[#allocation5] sm:$0xff]
        %v3093 = vld [vmem:[#allocation5 + $0x8] sm:$0xff]
        %v3094 = vld [vmem:[#allocation5 + $0x10] sm:$0xff]
        %v3095 = vld [vmem:[#allocation5 + $0x20] sm:$0xff]
        %v3096 = vld [vmem:[#allocation5 + $0x28] sm:$0xff]
        %v3097 = vld [vmem:[#allocation5 + $0x30] sm:$0xff]
        %v3098 = vld [vmem:[#allocation5 + $0x40] sm:$0xff]
        %v3099 = vld [vmem:[#allocation5 + $0x48] sm:$0xff]
        %v3100 = vld [vmem:[#allocation5 + $0x50] sm:$0xff]
        %v3101 = vld [vmem:[#allocation5 + $0x60] sm:$0xff]
        %v3102 = vld [vmem:[#allocation5 + $0x68] sm:$0xff]
        %v3103 = vld [vmem:[#allocation5 + $0x70] sm:$0xff]
        %v3104 = vld [vmem:[#allocation5 + $0x80] sm:$0xff]
        %v3105 = vld [vmem:[#allocation5 + $0x88] sm:$0xff]
        %v3106 = vld [vmem:[#allocation5 + $0x90] sm:$0xff]
        %v3107 = vld [vmem:[#allocation5 + $0xa0] sm:$0xff]
        %v3108 = vld [vmem:[#allocation5 + $0xa8] sm:$0xff]
        %v3109 = vld [vmem:[#allocation5 + $0xb0] sm:$0xff]
        %v3110 = vld [vmem:[#allocation5 + $0xc0] sm:$0xff]
        %v3111 = vld [vmem:[#allocation5 + $0xc8] sm:$0x3f]
        %v3112 = vld [vmem:[#allocation5 + $0x18] sm:$0xff]
        %v3113 = vld [vmem:[#allocation5 + $0x38] sm:$0xff]
        %v3114 = vld [vmem:[#allocation5 + $0x58] sm:$0xff]
        %v3115 = vld [vmem:[#allocation5 + $0x78] sm:$0xff]
        %v3116 = vld [vmem:[#allocation5 + $0x98] sm:$0xff]
        %v3117 = vld [vmem:[#allocation5 + $0xb8] sm:$0xff]
        %v3118 = vld [vmem:[#allocation5 + $0xd0] sm:$0xff]
        %v3119 = vld [vmem:[#allocation5 + $0xd8] sm:$0x3f]
        %v3120 = vmax.f32 %v3092, %v3094
        %v3121 = vmax.f32 %v3093, %v3112
        %v3122 = vmax.f32 %v3094, %v3095
        %v3123 = vmax.f32 %v3095, %v3097
        %v3124 = vmax.f32 %v3096, %v3113
        %v3125 = vmax.f32 %v3097, %v3098
        %v3126 = vmax.f32 %v3098, %v3100
        %v3127 = vmax.f32 %v3099, %v3114
        %v3128 = vmax.f32 %v3100, %v3101
        %v3129 = vmax.f32 %v3101, %v3103
        %v3130 = vmax.f32 %v3102, %v3115
        %v3131 = vmax.f32 %v3103, %v3104
        %v3132 = vmax.f32 %v3104, %v3106
        %v3133 = vmax.f32 %v3105, %v3116
        %v3134 = vmax.f32 %v3106, %v3107
        %v3135 = vmax.f32 %v3107, %v3109
        %v3136 = vmax.f32 %v3108, %v3117
        %v3137 = vmax.f32 %v3109, %v3110
        %v3138 = vmax.f32 %v3110, %v3118
        %v3139 = vmax.f32 %v3111, %v3119
        %vm3160 = vcmask 1046528
        %v3161 = vrot.slane %v3120, 1
        %v3162 = vrot.slane %v3121, 1
        %v3163 = vsel %vm3160, %v3161, %v3162
        %v3164 = vrot.slane %v3122, 1
        %v3165 = vsel %vm3160, %v3162, %v3164
        %v3166 = vrot.slane %v3123, 1
        %v3167 = vrot.slane %v3124, 1
        %v3168 = vsel %vm3160, %v3166, %v3167
        %v3169 = vrot.slane %v3125, 1
        %v3170 = vsel %vm3160, %v3167, %v3169
        %v3171 = vrot.slane %v3126, 1
        %v3172 = vrot.slane %v3127, 1
        %v3173 = vsel %vm3160, %v3171, %v3172
        %v3174 = vrot.slane %v3128, 1
        %v3175 = vsel %vm3160, %v3172, %v3174
        %v3176 = vrot.slane %v3129, 1
        %v3177 = vrot.slane %v3130, 1
        %v3178 = vsel %vm3160, %v3176, %v3177
        %v3179 = vrot.slane %v3131, 1
        %v3180 = vsel %vm3160, %v3177, %v3179
        %v3181 = vrot.slane %v3132, 1
        %v3182 = vrot.slane %v3133, 1
        %v3183 = vsel %vm3160, %v3181, %v3182
        %v3184 = vrot.slane %v3134, 1
        %v3185 = vsel %vm3160, %v3182, %v3184
        %v3186 = vrot.slane %v3135, 1
        %v3187 = vrot.slane %v3136, 1
        %v3188 = vsel %vm3160, %v3186, %v3187
        %v3189 = vrot.slane %v3137, 1
        %v3190 = vsel %vm3160, %v3187, %v3189
        %v3191 = vrot.slane %v3138, 1
        %v3192 = vrot.slane %v3139, 1
        %v3193 = vsel %vm3160, %v3191, %v3192
        %v3208 = vmax.f32 %v3120, %v3163
        %v3209 = vmax.f32 %v3121, %v3165
        %v3210 = vmax.f32 %v3123, %v3168
        %v3211 = vmax.f32 %v3124, %v3170
        %v3212 = vmax.f32 %v3126, %v3173
        %v3213 = vmax.f32 %v3127, %v3175
        %v3214 = vmax.f32 %v3129, %v3178
        %v3215 = vmax.f32 %v3130, %v3180
        %v3216 = vmax.f32 %v3132, %v3183
        %v3217 = vmax.f32 %v3133, %v3185
        %v3218 = vmax.f32 %v3135, %v3188
        %v3219 = vmax.f32 %v3136, %v3190
        %v3220 = vmax.f32 %v3138, %v3193
        %v3221 = vmax.f32 %v3139, %v3192
        %v3222 = vlaneseq
        %vm3223 = vcmp.ge.s32.totalorder %v3222, 0
        %vm3224 = vcmp.lt.s32.totalorder %v3222, 64
        %vm3225 = vmand %vm3223, %vm3224
        %3226 = vst.msk [vmem:[#allocation6] sm:$0x1] %vm3225, %v3208
        %3228 = vst [vmem:[#allocation1] sm:$0xff] %v3208
        %s3229 = scalar_lea.vmem [#allocation1], 2
        %v3230 = vld [vmem:[%s3229] ss:$9 sm:$0xff]
        %3231 = vrot.lane.b32.xlu0 %v3230, 64
        %v3232 = vpop.permute.xlu0 %3231
        %vm3234 = vcmp.ge.s32.totalorder %v3222, 64
        %vm3235 = vcmp.lt.s32.totalorder %v3222, 128
        %vm3236 = vmand %vm3234, %vm3235
        %3237 = vst.msk [vmem:[#allocation6] sm:$0x1] %vm3236, %v3232
        %3238 = vst [vmem:[#allocation1] sm:$0xff] %v3208
        %s3239 = scalar_lea.vmem [#allocation1], 4
        %v3240 = vld [vmem:[%s3239] ss:$9 sm:$0xff]
        %3242 = vst.msk [vmem:[#allocation6 + $0x1] sm:$0x1] %vm3225, %v3240
        %3243 = vst [vmem:[#allocation1] sm:$0xff] %v3208
        %s3244 = scalar_lea.vmem [#allocation1], 6
        %v3245 = vld [vmem:[%s3244] ss:$9 sm:$0xff]
        %3246 = vrot.lane.b32.xlu0 %v3245, 64
        %v3247 = vpop.permute.xlu0 %3246
        %3249 = vst.msk [vmem:[#allocation6 + $0x1] sm:$0x1] %vm3236, %v3247
        %3250 = vst.msk [vmem:[#allocation6 + $0x2] sm:$0x1] %vm3225, %v3209
        %3252 = vst [vmem:[#allocation1] sm:$0xff] %v3209
        %s3253 = scalar_lea.vmem [#allocation1], 2
        %v3254 = vld [vmem:[%s3253] ss:$9 sm:$0xff]
        %3255 = vrot.lane.b32.xlu0 %v3254, 64
        %v3256 = vpop.permute.xlu0 %3255
        %3258 = vst.msk [vmem:[#allocation6 + $0x2] sm:$0x1] %vm3236, %v3256
        %3259 = vst [vmem:[#allocation1] sm:$0xff] %v3209
        %s3260 = scalar_lea.vmem [#allocation1], 4
        %v3261 = vld [vmem:[%s3260] ss:$9 sm:$0xff]
        %3263 = vst.msk [vmem:[#allocation6 + $0x3] sm:$0x1] %vm3225, %v3261
        %3265 = vrot.lane.b32.xlu0 %v3210, 64
        %v3266 = vpop.permute.xlu0 %3265
        %3268 = vst.msk [vmem:[#allocation6 + $0x3] sm:$0x1] %vm3236, %v3266
        %3269 = vst [vmem:[#allocation1] sm:$0xff] %v3210
        %s3270 = scalar_lea.vmem [#allocation1], 2
        %v3271 = vld [vmem:[%s3270] ss:$9 sm:$0xff]
        %3273 = vst.msk [vmem:[#allocation6 + $0x4] sm:$0x1] %vm3225, %v3271
        %3274 = vst [vmem:[#allocation1] sm:$0xff] %v3210
        %s3275 = scalar_lea.vmem [#allocation1], 4
        %v3276 = vld [vmem:[%s3275] ss:$9 sm:$0xff]
        %3277 = vrot.lane.b32.xlu0 %v3276, 64
        %v3278 = vpop.permute.xlu0 %3277
        %3280 = vst.msk [vmem:[#allocation6 + $0x4] sm:$0x1] %vm3236, %v3278
        %3281 = vst [vmem:[#allocation1] sm:$0xff] %v3210
        %s3282 = scalar_lea.vmem [#allocation1], 6
        %v3283 = vld [vmem:[%s3282] ss:$9 sm:$0xff]
        %3285 = vst.msk [vmem:[#allocation6 + $0x5] sm:$0x1] %vm3225, %v3283
        %3287 = vrot.lane.b32.xlu0 %v3211, 64
        %v3288 = vpop.permute.xlu0 %3287
        %3290 = vst.msk [vmem:[#allocation6 + $0x5] sm:$0x1] %vm3236, %v3288
        %3291 = vst [vmem:[#allocation1] sm:$0xff] %v3211
        %s3292 = scalar_lea.vmem [#allocation1], 2
        %v3293 = vld [vmem:[%s3292] ss:$9 sm:$0xff]
        %3295 = vst.msk [vmem:[#allocation6 + $0x6] sm:$0x1] %vm3225, %v3293
        %3296 = vst [vmem:[#allocation1] sm:$0xff] %v3211
        %s3297 = scalar_lea.vmem [#allocation1], 4
        %v3298 = vld [vmem:[%s3297] ss:$9 sm:$0xff]
        %3299 = vrot.lane.b32.xlu0 %v3298, 64
        %v3300 = vpop.permute.xlu0 %3299
        %3302 = vst.msk [vmem:[#allocation6 + $0x6] sm:$0x1] %vm3236, %v3300
        %3303 = vst.msk [vmem:[#allocation6 + $0x7] sm:$0x1] %vm3225, %v3212
        %3305 = vst [vmem:[#allocation1] sm:$0xff] %v3212
        %s3306 = scalar_lea.vmem [#allocation1], 2
        %v3307 = vld [vmem:[%s3306] ss:$9 sm:$0xff]
        %3308 = vrot.lane.b32.xlu0 %v3307, 64
        %v3309 = vpop.permute.xlu0 %3308
        %3311 = vst.msk [vmem:[#allocation6 + $0x7] sm:$0x1] %vm3236, %v3309
        %3312 = vst [vmem:[#allocation1] sm:$0xff] %v3212
        %s3313 = scalar_lea.vmem [#allocation1], 4
        %v3314 = vld [vmem:[%s3313] ss:$9 sm:$0xff]
        %3316 = vst.msk [vmem:[#allocation6 + $0x8] sm:$0x1] %vm3225, %v3314
        %3317 = vst [vmem:[#allocation1] sm:$0xff] %v3212
        %s3318 = scalar_lea.vmem [#allocation1], 6
        %v3319 = vld [vmem:[%s3318] ss:$9 sm:$0xff]
        %3320 = vrot.lane.b32.xlu0 %v3319, 64
        %v3321 = vpop.permute.xlu0 %3320
        %3323 = vst.msk [vmem:[#allocation6 + $0x8] sm:$0x1] %vm3236, %v3321
        %3324 = vst.msk [vmem:[#allocation6 + $0x9] sm:$0x1] %vm3225, %v3213
        %3326 = vst [vmem:[#allocation1] sm:$0xff] %v3213
        %s3327 = scalar_lea.vmem [#allocation1], 2
        %v3328 = vld [vmem:[%s3327] ss:$9 sm:$0xff]
        %3329 = vrot.lane.b32.xlu0 %v3328, 64
        %v3330 = vpop.permute.xlu0 %3329
        %3332 = vst.msk [vmem:[#allocation6 + $0x9] sm:$0x1] %vm3236, %v3330
        %3333 = vst [vmem:[#allocation1] sm:$0xff] %v3213
        %s3334 = scalar_lea.vmem [#allocation1], 4
        %v3335 = vld [vmem:[%s3334] ss:$9 sm:$0xff]
        %3337 = vst.msk [vmem:[#allocation6 + $0xa] sm:$0x1] %vm3225, %v3335
        %3339 = vrot.lane.b32.xlu0 %v3214, 64
        %v3340 = vpop.permute.xlu0 %3339
        %3342 = vst.msk [vmem:[#allocation6 + $0xa] sm:$0x1] %vm3236, %v3340
        %3343 = vst [vmem:[#allocation1] sm:$0xff] %v3214
        %s3344 = scalar_lea.vmem [#allocation1], 2
        %v3345 = vld [vmem:[%s3344] ss:$9 sm:$0xff]
        %3347 = vst.msk [vmem:[#allocation6 + $0xb] sm:$0x1] %vm3225, %v3345
        %3348 = vst [vmem:[#allocation1] sm:$0xff] %v3214
        %s3349 = scalar_lea.vmem [#allocation1], 4
        %v3350 = vld [vmem:[%s3349] ss:$9 sm:$0xff]
        %3351 = vrot.lane.b32.xlu0 %v3350, 64
        %v3352 = vpop.permute.xlu0 %3351
        %3354 = vst.msk [vmem:[#allocation6 + $0xb] sm:$0x1] %vm3236, %v3352
        %3355 = vst [vmem:[#allocation1] sm:$0xff] %v3214
        %s3356 = scalar_lea.vmem [#allocation1], 6
        %v3357 = vld [vmem:[%s3356] ss:$9 sm:$0xff]
        %3359 = vst.msk [vmem:[#allocation6 + $0xc] sm:$0x1] %vm3225, %v3357
        %3361 = vrot.lane.b32.xlu0 %v3215, 64
        %v3362 = vpop.permute.xlu0 %3361
        %3364 = vst.msk [vmem:[#allocation6 + $0xc] sm:$0x1] %vm3236, %v3362
        %3365 = vst [vmem:[#allocation1] sm:$0xff] %v3215
        %s3366 = scalar_lea.vmem [#allocation1], 2
        %v3367 = vld [vmem:[%s3366] ss:$9 sm:$0xff]
        %3369 = vst.msk [vmem:[#allocation6 + $0xd] sm:$0x1] %vm3225, %v3367
        %3370 = vst [vmem:[#allocation1] sm:$0xff] %v3215
        %s3371 = scalar_lea.vmem [#allocation1], 4
        %v3372 = vld [vmem:[%s3371] ss:$9 sm:$0xff]
        %3373 = vrot.lane.b32.xlu0 %v3372, 64
        %v3374 = vpop.permute.xlu0 %3373
        %3376 = vst.msk [vmem:[#allocation6 + $0xd] sm:$0x1] %vm3236, %v3374
        %3377 = vst.msk [vmem:[#allocation6 + $0xe] sm:$0x1] %vm3225, %v3216
        %3379 = vst [vmem:[#allocation1] sm:$0xff] %v3216
        %s3380 = scalar_lea.vmem [#allocation1], 2
        %v3381 = vld [vmem:[%s3380] ss:$9 sm:$0xff]
        %3382 = vrot.lane.b32.xlu0 %v3381, 64
        %v3383 = vpop.permute.xlu0 %3382
        %3385 = vst.msk [vmem:[#allocation6 + $0xe] sm:$0x1] %vm3236, %v3383
        %3386 = vst [vmem:[#allocation1] sm:$0xff] %v3216
        %s3387 = scalar_lea.vmem [#allocation1], 4
        %v3388 = vld [vmem:[%s3387] ss:$9 sm:$0xff]
        %3390 = vst.msk [vmem:[#allocation6 + $0xf] sm:$0x1] %vm3225, %v3388
        %3391 = vst [vmem:[#allocation1] sm:$0xff] %v3216
        %s3392 = scalar_lea.vmem [#allocation1], 6
        %v3393 = vld [vmem:[%s3392] ss:$9 sm:$0xff]
        %3394 = vrot.lane.b32.xlu0 %v3393, 64
        %v3395 = vpop.permute.xlu0 %3394
        %3397 = vst.msk [vmem:[#allocation6 + $0xf] sm:$0x1] %vm3236, %v3395
        %3398 = vst.msk [vmem:[#allocation6 + $0x10] sm:$0x1] %vm3225, %v3217
        %3400 = vst [vmem:[#allocation1] sm:$0xff] %v3217
        %s3401 = scalar_lea.vmem [#allocation1], 2
        %v3402 = vld [vmem:[%s3401] ss:$9 sm:$0xff]
        %3403 = vrot.lane.b32.xlu0 %v3402, 64
        %v3404 = vpop.permute.xlu0 %3403
        %3406 = vst.msk [vmem:[#allocation6 + $0x10] sm:$0x1] %vm3236, %v3404
        %3407 = vst [vmem:[#allocation1] sm:$0xff] %v3217
        %s3408 = scalar_lea.vmem [#allocation1], 4
        %v3409 = vld [vmem:[%s3408] ss:$9 sm:$0xff]
        %3411 = vst.msk [vmem:[#allocation6 + $0x11] sm:$0x1] %vm3225, %v3409
        %3413 = vrot.lane.b32.xlu0 %v3218, 64
        %v3414 = vpop.permute.xlu0 %3413
        %3416 = vst.msk [vmem:[#allocation6 + $0x11] sm:$0x1] %vm3236, %v3414
        %3417 = vst [vmem:[#allocation1] sm:$0xff] %v3218
        %s3418 = scalar_lea.vmem [#allocation1], 2
        %v3419 = vld [vmem:[%s3418] ss:$9 sm:$0xff]
        %3421 = vst.msk [vmem:[#allocation6 + $0x12] sm:$0x1] %vm3225, %v3419
        %3422 = vst [vmem:[#allocation1] sm:$0xff] %v3218
        %s3423 = scalar_lea.vmem [#allocation1], 4
        %v3424 = vld [vmem:[%s3423] ss:$9 sm:$0xff]
        %3425 = vrot.lane.b32.xlu0 %v3424, 64
        %v3426 = vpop.permute.xlu0 %3425
        %3428 = vst.msk [vmem:[#allocation6 + $0x12] sm:$0x1] %vm3236, %v3426
        %3429 = vst [vmem:[#allocation1] sm:$0xff] %v3218
        %s3430 = scalar_lea.vmem [#allocation1], 6
        %v3431 = vld [vmem:[%s3430] ss:$9 sm:$0xff]
        %3433 = vst.msk [vmem:[#allocation6 + $0x13] sm:$0x1] %vm3225, %v3431
        %3435 = vrot.lane.b32.xlu0 %v3219, 64
        %v3436 = vpop.permute.xlu0 %3435
        %3438 = vst.msk [vmem:[#allocation6 + $0x13] sm:$0x1] %vm3236, %v3436
        %3439 = vst [vmem:[#allocation1] sm:$0xff] %v3219
        %s3440 = scalar_lea.vmem [#allocation1], 2
        %v3441 = vld [vmem:[%s3440] ss:$9 sm:$0xff]
        %3443 = vst.msk [vmem:[#allocation6 + $0x14] sm:$0x1] %vm3225, %v3441
        %3444 = vst [vmem:[#allocation1] sm:$0xff] %v3219
        %s3445 = scalar_lea.vmem [#allocation1], 4
        %v3446 = vld [vmem:[%s3445] ss:$9 sm:$0xff]
        %3447 = vrot.lane.b32.xlu0 %v3446, 64
        %v3448 = vpop.permute.xlu0 %3447
        %3450 = vst.msk [vmem:[#allocation6 + $0x14] sm:$0x1] %vm3236, %v3448
        %3451 = vst.msk [vmem:[#allocation6 + $0x15] sm:$0x1] %vm3225, %v3220
        %3453 = vst [vmem:[#allocation1] sm:$0xff] %v3220
        %s3454 = scalar_lea.vmem [#allocation1], 2
        %v3455 = vld [vmem:[%s3454] ss:$9 sm:$0xff]
        %3456 = vrot.lane.b32.xlu0 %v3455, 64
        %v3457 = vpop.permute.xlu0 %3456
        %3459 = vst.msk [vmem:[#allocation6 + $0x15] sm:$0x1] %vm3236, %v3457
        %3460 = vst [vmem:[#allocation1] sm:$0xff] %v3220
        %s3461 = scalar_lea.vmem [#allocation1], 4
        %v3462 = vld [vmem:[%s3461] ss:$9 sm:$0xff]
        %3464 = vst.msk [vmem:[#allocation6 + $0x16] sm:$0x1] %vm3225, %v3462
        %3465 = vst [vmem:[#allocation1] sm:$0xff] %v3220
        %s3466 = scalar_lea.vmem [#allocation1], 6
        %v3467 = vld [vmem:[%s3466] ss:$9 sm:$0xff]
        %3468 = vrot.lane.b32.xlu0 %v3467, 64
        %v3469 = vpop.permute.xlu0 %3468
        %3471 = vst.msk [vmem:[#allocation6 + $0x16] sm:$0x1] %vm3236, %v3469
        %3472 = vst.msk [vmem:[#allocation6 + $0x17] sm:$0x1] %vm3225, %v3221
        %3474 = vst [vmem:[#allocation1] sm:$0xff] %v3221
        %s3475 = scalar_lea.vmem [#allocation1], 2
        %v3476 = vld [vmem:[%s3475] ss:$9 sm:$0xff]
        %3477 = vrot.lane.b32.xlu0 %v3476, 64
        %v3478 = vpop.permute.xlu0 %3477
        %3480 = vst.msk [vmem:[#allocation6 + $0x17] sm:$0x1] %vm3236, %v3478
        %3481 = vst [vmem:[#allocation1] sm:$0xff] %v3221
        %s3482 = scalar_lea.vmem [#allocation1], 4
        %v3483 = vld [vmem:[%s3482] ss:$9 sm:$0xff]
        %3485 = vst.msk [vmem:[#allocation6 + $0x18] sm:$0x1] %vm3225, %v3483
        %v3486 = vld [vmem:[#allocation6] sm:$0xff]
        %v3487 = vld [vmem:[#allocation6 + $0x8] sm:$0xff]
        %v3488 = vld [vmem:[#allocation6 + $0x10] sm:$0xff]
        %v3489 = vld [vmem:[#allocation6 + $0x18] sm:$0x1]
        %v3494 = vperm.slane %v3486, 0
        %v3495 = vperm.slane %v3486, 1
        %v3496 = vperm.slane %v3486, 2
        %v3497 = vperm.slane %v3486, 3
        %v3498 = vperm.slane %v3486, 4
        %v3499 = vperm.slane %v3486, 5
        %v3500 = vperm.slane %v3486, 6
        %v3501 = vperm.slane %v3486, 7
        %v3502 = vperm.slane %v3487, 0
        %v3503 = vperm.slane %v3487, 1
        %v3504 = vperm.slane %v3487, 2
        %v3505 = vperm.slane %v3487, 3
        %v3506 = vperm.slane %v3487, 4
        %v3507 = vperm.slane %v3487, 5
        %v3508 = vperm.slane %v3487, 6
        %v3509 = vperm.slane %v3487, 7
        %v3510 = vperm.slane %v3488, 0
        %v3511 = vperm.slane %v3488, 1
        %v3512 = vperm.slane %v3488, 2
        %v3513 = vperm.slane %v3488, 3
        %v3514 = vperm.slane %v3488, 4
        %v3515 = vperm.slane %v3488, 5
        %v3516 = vperm.slane %v3488, 6
        %v3517 = vperm.slane %v3488, 7
        %v3518 = vperm.slane %v3489, 0
        %v3544 = vpack.c.bf16 %v3494, %v3494
        %v3545 = vpack.c.bf16 %v3495, %v3495
        %v3546 = vpack.c.bf16 %v3496, %v3496
        %v3547 = vpack.c.bf16 %v3497, %v3497
        %v3548 = vpack.c.bf16 %v3498, %v3498
        %v3549 = vpack.c.bf16 %v3499, %v3499
        %v3550 = vpack.c.bf16 %v3500, %v3500
        %v3551 = vpack.c.bf16 %v3501, %v3501
        %v3552 = vpack.c.bf16 %v3502, %v3502
        %v3553 = vpack.c.bf16 %v3503, %v3503
        %v3554 = vpack.c.bf16 %v3504, %v3504
        %v3555 = vpack.c.bf16 %v3505, %v3505
        %v3556 = vpack.c.bf16 %v3506, %v3506
        %v3557 = vpack.c.bf16 %v3507, %v3507
        %v3558 = vpack.c.bf16 %v3508, %v3508
        %v3559 = vpack.c.bf16 %v3509, %v3509
        %v3560 = vpack.c.bf16 %v3510, %v3510
        %v3561 = vpack.c.bf16 %v3511, %v3511
        %v3562 = vpack.c.bf16 %v3512, %v3512
        %v3563 = vpack.c.bf16 %v3513, %v3513
        %v3564 = vpack.c.bf16 %v3514, %v3514
        %v3565 = vpack.c.bf16 %v3515, %v3515
        %v3566 = vpack.c.bf16 %v3516, %v3516
        %v3567 = vpack.c.bf16 %v3517, %v3517
        %v3568 = vpack.c.bf16 %v3518, %v3518
        %v3569 = vld [vmem:[%s5] sm:$0xf]
        %v3570 = vld [vmem:[%s5 + $0x4] sm:$0xf]
        %v3571 = vld [vmem:[%s5 + $0x8] sm:$0xf]
        %v3572 = vld [vmem:[%s5 + $0xc] sm:$0xf]
        %v3573 = vld [vmem:[%s5 + $0x10] sm:$0xf]
        %v3574 = vld [vmem:[%s5 + $0x14] sm:$0xf]
        %v3575 = vld [vmem:[%s5 + $0x18] sm:$0xf]
        %v3576 = vld [vmem:[%s5 + $0x1c] sm:$0xf]
        %v3577 = vld [vmem:[%s5 + $0x20] sm:$0xf]
        %v3578 = vld [vmem:[%s5 + $0x24] sm:$0xf]
        %v3579 = vld [vmem:[%s5 + $0x28] sm:$0xf]
        %v3580 = vld [vmem:[%s5 + $0x2c] sm:$0xf]
        %v3581 = vld [vmem:[%s5 + $0x30] sm:$0xf]
        %v3582 = vld [vmem:[%s5 + $0x34] sm:$0xf]
        %v3583 = vld [vmem:[%s5 + $0x38] sm:$0xf]
        %v3584 = vld [vmem:[%s5 + $0x3c] sm:$0xf]
        %v3585 = vld [vmem:[%s5 + $0x40] sm:$0xf]
        %v3586 = vld [vmem:[%s5 + $0x44] sm:$0xf]
        %v3587 = vld [vmem:[%s5 + $0x48] sm:$0xf]
        %v3588 = vld [vmem:[%s5 + $0x4c] sm:$0xf]
        %v3589 = vld [vmem:[%s5 + $0x50] sm:$0xf]
        %v3590 = vld [vmem:[%s5 + $0x54] sm:$0xf]
        %v3591 = vld [vmem:[%s5 + $0x58] sm:$0xf]
        %v3592 = vld [vmem:[%s5 + $0x5c] sm:$0xf]
        %v3593 = vld [vmem:[%s5 + $0x60] sm:$0xf]
        %v3594 = vld [vmem:[%s5 + $0x64] sm:$0xf]
        %v3595 = vld [vmem:[%s5 + $0x68] sm:$0xf]
        %v3596 = vld [vmem:[%s5 + $0x6c] sm:$0xf]
        %v3597 = vld [vmem:[%s5 + $0x70] sm:$0xf]
        %v3598 = vld [vmem:[%s5 + $0x74] sm:$0xf]
        %v3599 = vld [vmem:[%s5 + $0x78] sm:$0xf]
        %v3600 = vld [vmem:[%s5 + $0x7c] sm:$0xf]
        %v3601 = vld [vmem:[%s5 + $0x80] sm:$0xf]
        %v3602 = vld [vmem:[%s5 + $0x84] sm:$0xf]
        %v3603 = vld [vmem:[%s5 + $0x88] sm:$0xf]
        %v3604 = vld [vmem:[%s5 + $0x8c] sm:$0xf]
        %v3605 = vld [vmem:[%s5 + $0x90] sm:$0xf]
        %v3606 = vld [vmem:[%s5 + $0x94] sm:$0xf]
        %v3607 = vld [vmem:[%s5 + $0x98] sm:$0xf]
        %v3608 = vld [vmem:[%s5 + $0x9c] sm:$0xf]
        %v3609 = vld [vmem:[%s5 + $0xa0] sm:$0xf]
        %v3610 = vld [vmem:[%s5 + $0xa4] sm:$0xf]
        %v3611 = vld [vmem:[%s5 + $0xa8] sm:$0xf]
        %v3612 = vld [vmem:[%s5 + $0xac] sm:$0xf]
        %v3613 = vld [vmem:[%s5 + $0xb0] sm:$0xf]
        %v3614 = vld [vmem:[%s5 + $0xb4] sm:$0xf]
        %v3615 = vld [vmem:[%s5 + $0xb8] sm:$0xf]
        %v3616 = vld [vmem:[%s5 + $0xbc] sm:$0xf]
        %v3617 = vld [vmem:[%s5 + $0xc0] sm:$0xf]
        %v3618 = vld [vmem:[%s5 + $0xc4] sm:$0xf]
        %v3619 = vld [vmem:[%s5 + $0xc8] sm:$0xf]
        %v3620 = vld [vmem:[%s5 + $0xcc] sm:$0xf]
        %v3621 = vld [vmem:[%s5 + $0xd0] sm:$0xf]
        %v3622 = vld [vmem:[%s5 + $0xd4] sm:$0xf]
        %v3623 = vld [vmem:[%s5 + $0xd8] sm:$0xf]
        %v3624 = vld [vmem:[%s5 + $0xdc] sm:$0xf]
        %v3625 = vld [vmem:[%s5 + $0xe0] sm:$0xf]
        %v3626 = vld [vmem:[%s5 + $0xe4] sm:$0xf]
        %v3627 = vld [vmem:[%s5 + $0xe8] sm:$0xf]
        %v3628 = vld [vmem:[%s5 + $0xec] sm:$0xf]
        %v3629 = vld [vmem:[%s5 + $0xf0] sm:$0xf]
        %v3630 = vld [vmem:[%s5 + $0xf4] sm:$0xf]
        %v3631 = vld [vmem:[%s5 + $0xf8] sm:$0xf]
        %v3632 = vld [vmem:[%s5 + $0xfc] sm:$0xf]
        %v3633 = vld [vmem:[%s5 + $0x100] sm:$0xf]
        %v3634 = vld [vmem:[%s5 + $0x104] sm:$0xf]
        %v3635 = vld [vmem:[%s5 + $0x108] sm:$0xf]
        %v3636 = vld [vmem:[%s5 + $0x10c] sm:$0xf]
        %v3637 = vld [vmem:[%s5 + $0x110] sm:$0xf]
        %v3638 = vld [vmem:[%s5 + $0x114] sm:$0xf]
        %v3639 = vld [vmem:[%s5 + $0x118] sm:$0xf]
        %v3640 = vld [vmem:[%s5 + $0x11c] sm:$0xf]
        %v3641 = vld [vmem:[%s5 + $0x120] sm:$0xf]
        %v3642 = vld [vmem:[%s5 + $0x124] sm:$0xf]
        %v3643 = vld [vmem:[%s5 + $0x128] sm:$0xf]
        %v3644 = vld [vmem:[%s5 + $0x12c] sm:$0xf]
        %v3645 = vld [vmem:[%s5 + $0x130] sm:$0xf]
        %v3646 = vld [vmem:[%s5 + $0x134] sm:$0xf]
        %v3647 = vld [vmem:[%s5 + $0x138] sm:$0xf]
        %v3648 = vld [vmem:[%s5 + $0x13c] sm:$0xf]
        %v3649 = vld [vmem:[%s5 + $0x140] sm:$0xf]
        %v3650 = vld [vmem:[%s5 + $0x144] sm:$0xf]
        %v3651 = vld [vmem:[%s5 + $0x148] sm:$0xf]
        %v3652 = vld [vmem:[%s5 + $0x14c] sm:$0xf]
        %v3653 = vld [vmem:[%s5 + $0x150] sm:$0xf]
        %v3654 = vld [vmem:[%s5 + $0x154] sm:$0xf]
        %v3655 = vld [vmem:[%s5 + $0x158] sm:$0xf]
        %v3656 = vld [vmem:[%s5 + $0x15c] sm:$0xf]
        %v3657 = vld [vmem:[%s5 + $0x160] sm:$0xf]
        %v3658 = vld [vmem:[%s5 + $0x164] sm:$0xf]
        %v3659 = vld [vmem:[%s5 + $0x168] sm:$0xf]
        %v3660 = vld [vmem:[%s5 + $0x16c] sm:$0xf]
        %v3661 = vld [vmem:[%s5 + $0x170] sm:$0xf]
        %v3662 = vld [vmem:[%s5 + $0x174] sm:$0xf]
        %v3663 = vld [vmem:[%s5 + $0x178] sm:$0xf]
        %v3664 = vld [vmem:[%s5 + $0x17c] sm:$0xf]
        %v3665 = vld [vmem:[%s5 + $0x180] sm:$0xf]
        %v3666 = vld [vmem:[%s5 + $0x184] sm:$0xf]
        %v3667 = vld [vmem:[%s5 + $0x188] sm:$0xf]
        %v3668 = vld [vmem:[%s5 + $0x18c] sm:$0xf]
        %v3669 = vld [vmem:[%s5 + $0x190] sm:$0xf]
        %v3670 = vld [vmem:[%s5 + $0x194] sm:$0xf]
        %v3671 = vld [vmem:[%s5 + $0x198] sm:$0xf]
        %v3672 = vld [vmem:[%s5 + $0x19c] sm:$0xf]
        %v3673 = vld [vmem:[%s5 + $0x1a0] sm:$0xf]
        %v3674 = vld [vmem:[%s5 + $0x1a4] sm:$0xf]
        %v3675 = vld [vmem:[%s5 + $0x1a8] sm:$0xf]
        %v3676 = vld [vmem:[%s5 + $0x1ac] sm:$0xf]
        %v3677 = vld [vmem:[%s5 + $0x1b0] sm:$0xf]
        %v3678 = vld [vmem:[%s5 + $0x1b4] sm:$0xf]
        %v3679 = vld [vmem:[%s5 + $0x1b8] sm:$0xf]
        %v3680 = vld [vmem:[%s5 + $0x1bc] sm:$0xf]
        %v3681 = vld [vmem:[%s5 + $0x1c0] sm:$0xf]
        %v3682 = vld [vmem:[%s5 + $0x1c4] sm:$0xf]
        %v3683 = vld [vmem:[%s5 + $0x1c8] sm:$0xf]
        %v3684 = vld [vmem:[%s5 + $0x1cc] sm:$0xf]
        %v3685 = vld [vmem:[%s5 + $0x1d0] sm:$0xf]
        %v3686 = vld [vmem:[%s5 + $0x1d4] sm:$0xf]
        %v3687 = vld [vmem:[%s5 + $0x1d8] sm:$0xf]
        %v3688 = vld [vmem:[%s5 + $0x1dc] sm:$0xf]
        %v3689 = vld [vmem:[%s5 + $0x1e0] sm:$0xf]
        %v3690 = vld [vmem:[%s5 + $0x1e4] sm:$0xf]
        %v3691 = vld [vmem:[%s5 + $0x1e8] sm:$0xf]
        %v3692 = vld [vmem:[%s5 + $0x1ec] sm:$0xf]
        %v3693 = vld [vmem:[%s5 + $0x1f0] sm:$0xf]
        %v3694 = vld [vmem:[%s5 + $0x1f4] sm:$0xf]
        %v3695 = vld [vmem:[%s5 + $0x1f8] sm:$0xf]
        %v3696 = vld [vmem:[%s5 + $0x1fc] sm:$0xf]
        %v3697 = vld [vmem:[%s5 + $0x200] sm:$0xf]
        %v3698 = vld [vmem:[%s5 + $0x204] sm:$0xf]
        %v3699 = vld [vmem:[%s5 + $0x208] sm:$0xf]
        %v3700 = vld [vmem:[%s5 + $0x20c] sm:$0xf]
        %v3701 = vld [vmem:[%s5 + $0x210] sm:$0xf]
        %v3702 = vld [vmem:[%s5 + $0x214] sm:$0xf]
        %v3703 = vld [vmem:[%s5 + $0x218] sm:$0xf]
        %v3704 = vld [vmem:[%s5 + $0x21c] sm:$0xf]
        %v3705 = vld [vmem:[%s5 + $0x220] sm:$0xf]
        %v3706 = vld [vmem:[%s5 + $0x224] sm:$0xf]
        %v3707 = vld [vmem:[%s5 + $0x228] sm:$0xf]
        %v3708 = vld [vmem:[%s5 + $0x22c] sm:$0xf]
        %v3709 = vld [vmem:[%s5 + $0x230] sm:$0xf]
        %v3710 = vld [vmem:[%s5 + $0x234] sm:$0xf]
        %v3711 = vld [vmem:[%s5 + $0x238] sm:$0xf]
        %v3712 = vld [vmem:[%s5 + $0x23c] sm:$0xf]
        %v3713 = vld [vmem:[%s5 + $0x240] sm:$0xf]
        %v3714 = vld [vmem:[%s5 + $0x244] sm:$0xf]
        %v3715 = vld [vmem:[%s5 + $0x248] sm:$0xf]
        %v3716 = vld [vmem:[%s5 + $0x24c] sm:$0xf]
        %v3717 = vld [vmem:[%s5 + $0x250] sm:$0xf]
        %v3718 = vld [vmem:[%s5 + $0x254] sm:$0xf]
        %v3719 = vld [vmem:[%s5 + $0x258] sm:$0xf]
        %v3720 = vld [vmem:[%s5 + $0x25c] sm:$0xf]
        %v3721 = vld [vmem:[%s5 + $0x260] sm:$0xf]
        %v3722 = vld [vmem:[%s5 + $0x264] sm:$0xf]
        %v3723 = vld [vmem:[%s5 + $0x268] sm:$0xf]
        %v3724 = vld [vmem:[%s5 + $0x26c] sm:$0xf]
        %v3725 = vld [vmem:[%s5 + $0x270] sm:$0xf]
        %v3726 = vld [vmem:[%s5 + $0x274] sm:$0xf]
        %v3727 = vld [vmem:[%s5 + $0x278] sm:$0xf]
        %v3728 = vld [vmem:[%s5 + $0x27c] sm:$0xf]
        %v3729 = vld [vmem:[%s5 + $0x280] sm:$0xf]
        %v3730 = vld [vmem:[%s5 + $0x284] sm:$0xf]
        %v3731 = vld [vmem:[%s5 + $0x288] sm:$0xf]
        %v3732 = vld [vmem:[%s5 + $0x28c] sm:$0xf]
        %v3733 = vld [vmem:[%s5 + $0x290] sm:$0xf]
        %v3734 = vld [vmem:[%s5 + $0x294] sm:$0xf]
        %v3735 = vld [vmem:[%s5 + $0x298] sm:$0xf]
        %v3736 = vld [vmem:[%s5 + $0x29c] sm:$0xf]
        %v3737 = vld [vmem:[%s5 + $0x2a0] sm:$0xf]
        %v3738 = vld [vmem:[%s5 + $0x2a4] sm:$0xf]
        %v3739 = vld [vmem:[%s5 + $0x2a8] sm:$0xf]
        %v3740 = vld [vmem:[%s5 + $0x2ac] sm:$0xf]
        %v3741 = vld [vmem:[%s5 + $0x2b0] sm:$0xf]
        %v3742 = vld [vmem:[%s5 + $0x2b4] sm:$0xf]
        %v3743 = vld [vmem:[%s5 + $0x2b8] sm:$0xf]
        %v3744 = vld [vmem:[%s5 + $0x2bc] sm:$0xf]
        %v3745 = vld [vmem:[%s5 + $0x2c0] sm:$0xf]
        %v3746 = vld [vmem:[%s5 + $0x2c4] sm:$0xf]
        %v3747 = vld [vmem:[%s5 + $0x2c8] sm:$0xf]
        %v3748 = vld [vmem:[%s5 + $0x2cc] sm:$0xf]
        %v3749 = vld [vmem:[%s5 + $0x2d0] sm:$0xf]
        %v3750 = vld [vmem:[%s5 + $0x2d4] sm:$0xf]
        %v3751 = vld [vmem:[%s5 + $0x2d8] sm:$0xf]
        %v3752 = vld [vmem:[%s5 + $0x2dc] sm:$0xf]
        %v3753 = vld [vmem:[%s5 + $0x2e0] sm:$0xf]
        %v3754 = vld [vmem:[%s5 + $0x2e4] sm:$0xf]
        %v3755 = vld [vmem:[%s5 + $0x2e8] sm:$0xf]
        %v3756 = vld [vmem:[%s5 + $0x2ec] sm:$0xf]
        %v3757 = vld [vmem:[%s5 + $0x2f0] sm:$0xf]
        %v3758 = vld [vmem:[%s5 + $0x2f4] sm:$0xf]
        %v3759 = vld [vmem:[%s5 + $0x2f8] sm:$0xf]
        %v3760 = vld [vmem:[%s5 + $0x2fc] sm:$0xf]
        %v3761 = vld [vmem:[%s5 + $0x300] sm:$0xf]
        %v3762 = vld [vmem:[%s5 + $0x304] sm:$0xf]
        %v3763 = vld [vmem:[%s5 + $0x308] sm:$0xf]
        %v3764 = vld [vmem:[%s5 + $0x30c] sm:$0xf]
        %v3765 = vld [vmem:[%s5 + $0x310] sm:$0xf]
        %v3766 = vld [vmem:[%s5 + $0x314] sm:$0xf]
        %v3767 = vld [vmem:[%s5 + $0x318] sm:$0xf]
        %v3768 = vld [vmem:[%s5 + $0x31c] sm:$0xf]
        %v3769 = vld [vmem:[%s5 + $0x320] sm:$0xf]
        %v3770 = vld [vmem:[%s5 + $0x324] sm:$0xf]
        %v3771 = vld [vmem:[%s5 + $0x328] sm:$0xf]
        %v3772 = vld [vmem:[%s5 + $0x32c] sm:$0xf]
        %v3773 = vld [vmem:[%s5 + $0x330] sm:$0xf]
        %v3774 = vld [vmem:[%s5 + $0x334] sm:$0xf]
        %v3775 = vld [vmem:[%s5 + $0x338] sm:$0xf]
        %v3776 = vld [vmem:[%s5 + $0x33c] sm:$0xf]
        %v3777 = vld [vmem:[%s5 + $0x340] sm:$0xf]
        %v3778 = vld [vmem:[%s5 + $0x344] sm:$0xf]
        %v3779 = vld [vmem:[%s5 + $0x348] sm:$0xf]
        %v3780 = vld [vmem:[%s5 + $0x34c] sm:$0xf]
        %v3781 = vld [vmem:[%s5 + $0x350] sm:$0xf]
        %v3782 = vld [vmem:[%s5 + $0x354] sm:$0xf]
        %v3783 = vld [vmem:[%s5 + $0x358] sm:$0xf]
        %v3784 = vld [vmem:[%s5 + $0x35c] sm:$0xf]
        %v3785 = vld [vmem:[%s5 + $0x360] sm:$0xf]
        %v3786 = vld [vmem:[%s5 + $0x364] sm:$0xf]
        %v3787 = vld [vmem:[%s5 + $0x368] sm:$0xf]
        %v3788 = vld [vmem:[%s5 + $0x36c] sm:$0xf]
        %v3789 = vld [vmem:[%s5 + $0x370] sm:$0xf]
        %v3790 = vld [vmem:[%s5 + $0x374] sm:$0xf]
        %v3791 = vld [vmem:[%s5 + $0x378] sm:$0xf]
        %v3792 = vld [vmem:[%s5 + $0x37c] sm:$0xf]
        %v3793 = vld [vmem:[%s5 + $0x380] sm:$0xf]
        %v3794 = vld [vmem:[%s5 + $0x384] sm:$0xf]
        %v3795 = vld [vmem:[%s5 + $0x388] sm:$0xf]
        %v3796 = vld [vmem:[%s5 + $0x38c] sm:$0xf]
        %v3797 = vld [vmem:[%s5 + $0x390] sm:$0xf]
        %v3798 = vld [vmem:[%s5 + $0x394] sm:$0xf]
        %v3799 = vld [vmem:[%s5 + $0x398] sm:$0xf]
        %v3800 = vld [vmem:[%s5 + $0x39c] sm:$0xf]
        %v3801 = vld [vmem:[%s5 + $0x3a0] sm:$0xf]
        %v3802 = vld [vmem:[%s5 + $0x3a4] sm:$0xf]
        %v3803 = vld [vmem:[%s5 + $0x3a8] sm:$0xf]
        %v3804 = vld [vmem:[%s5 + $0x3ac] sm:$0xf]
        %v3805 = vld [vmem:[%s5 + $0x3b0] sm:$0xf]
        %v3806 = vld [vmem:[%s5 + $0x3b4] sm:$0xf]
        %v3807 = vld [vmem:[%s5 + $0x3b8] sm:$0xf]
        %v3808 = vld [vmem:[%s5 + $0x3bc] sm:$0xf]
        %v3809 = vld [vmem:[%s5 + $0x3c0] sm:$0xf]
        %v3810 = vld [vmem:[%s5 + $0x3c4] sm:$0xf]
        %v3811 = vld [vmem:[%s5 + $0x3c8] sm:$0xf]
        %v3812 = vld [vmem:[%s5 + $0x3cc] sm:$0xf]
        %v3813 = vld [vmem:[%s5 + $0x3d0] sm:$0xf]
        %v3814 = vld [vmem:[%s5 + $0x3d4] sm:$0xf]
        %v3815 = vld [vmem:[%s5 + $0x3d8] sm:$0xf]
        %v3816 = vld [vmem:[%s5 + $0x3dc] sm:$0xf]
        %v3817 = vld [vmem:[%s5 + $0x3e0] sm:$0xf]
        %v3818 = vld [vmem:[%s5 + $0x3e4] sm:$0xf]
        %v3819 = vld [vmem:[%s5 + $0x3e8] sm:$0xf]
        %v3820 = vld [vmem:[%s5 + $0x3ec] sm:$0xf]
        %v3821 = vld [vmem:[%s5 + $0x3f0] sm:$0xf]
        %v3822 = vld [vmem:[%s5 + $0x3f4] sm:$0xf]
        %v3823 = vld [vmem:[%s5 + $0x3f8] sm:$0xf]
        %v3824 = vld [vmem:[%s5 + $0x3fc] sm:$0xf]
        %v3825 = vld [vmem:[%s5 + $0x400] sm:$0xf]
        %v3826 = vld [vmem:[%s5 + $0x404] sm:$0xf]
        %v3827 = vld [vmem:[%s5 + $0x408] sm:$0xf]
        %v3828 = vld [vmem:[%s5 + $0x40c] sm:$0xf]
        %v3829 = vld [vmem:[%s5 + $0x410] sm:$0xf]
        %v3830 = vld [vmem:[%s5 + $0x414] sm:$0xf]
        %v3831 = vld [vmem:[%s5 + $0x418] sm:$0xf]
        %v3832 = vld [vmem:[%s5 + $0x41c] sm:$0xf]
        %v3833 = vld [vmem:[%s5 + $0x420] sm:$0xf]
        %v3834 = vld [vmem:[%s5 + $0x424] sm:$0xf]
        %v3835 = vld [vmem:[%s5 + $0x428] sm:$0xf]
        %v3836 = vld [vmem:[%s5 + $0x42c] sm:$0xf]
        %v3837 = vld [vmem:[%s5 + $0x430] sm:$0xf]
        %v3838 = vld [vmem:[%s5 + $0x434] sm:$0xf]
        %v3839 = vld [vmem:[%s5 + $0x438] sm:$0xf]
        %v3840 = vld [vmem:[%s5 + $0x43c] sm:$0xf]
        %v3841 = vld [vmem:[%s5 + $0x440] sm:$0xf]
        %v3842 = vld [vmem:[%s5 + $0x444] sm:$0xf]
        %v3843 = vld [vmem:[%s5 + $0x448] sm:$0xf]
        %v3844 = vld [vmem:[%s5 + $0x44c] sm:$0xf]
        %v3845 = vld [vmem:[%s5 + $0x450] sm:$0xf]
        %v3846 = vld [vmem:[%s5 + $0x454] sm:$0xf]
        %v3847 = vld [vmem:[%s5 + $0x458] sm:$0xf]
        %v3848 = vld [vmem:[%s5 + $0x45c] sm:$0xf]
        %v3849 = vld [vmem:[%s5 + $0x460] sm:$0xf]
        %v3850 = vld [vmem:[%s5 + $0x464] sm:$0xf]
        %v3851 = vld [vmem:[%s5 + $0x468] sm:$0xf]
        %v3852 = vld [vmem:[%s5 + $0x46c] sm:$0xf]
        %v3853 = vld [vmem:[%s5 + $0x470] sm:$0xf]
        %v3854 = vld [vmem:[%s5 + $0x474] sm:$0xf]
        %v3855 = vld [vmem:[%s5 + $0x478] sm:$0xf]
        %v3856 = vld [vmem:[%s5 + $0x47c] sm:$0xf]
        %v3857 = vld [vmem:[%s5 + $0x480] sm:$0xf]
        %v3858 = vld [vmem:[%s5 + $0x484] sm:$0xf]
        %v3859 = vld [vmem:[%s5 + $0x488] sm:$0xf]
        %v3860 = vld [vmem:[%s5 + $0x48c] sm:$0xf]
        %v3861 = vld [vmem:[%s5 + $0x490] sm:$0xf]
        %v3862 = vld [vmem:[%s5 + $0x494] sm:$0xf]
        %v3863 = vld [vmem:[%s5 + $0x498] sm:$0xf]
        %v3864 = vld [vmem:[%s5 + $0x49c] sm:$0xf]
        %v3865 = vld [vmem:[%s5 + $0x4a0] sm:$0xf]
        %v3866 = vld [vmem:[%s5 + $0x4a4] sm:$0xf]
        %v3867 = vld [vmem:[%s5 + $0x4a8] sm:$0xf]
        %v3868 = vld [vmem:[%s5 + $0x4ac] sm:$0xf]
        %v3869 = vld [vmem:[%s5 + $0x4b0] sm:$0xf]
        %v3870 = vld [vmem:[%s5 + $0x4b4] sm:$0xf]
        %v3871 = vld [vmem:[%s5 + $0x4b8] sm:$0xf]
        %v3872 = vld [vmem:[%s5 + $0x4bc] sm:$0xf]
        %v3873 = vld [vmem:[%s5 + $0x4c0] sm:$0xf]
        %v3874 = vld [vmem:[%s5 + $0x4c4] sm:$0xf]
        %v3875 = vld [vmem:[%s5 + $0x4c8] sm:$0xf]
        %v3876 = vld [vmem:[%s5 + $0x4cc] sm:$0xf]
        %v3877 = vld [vmem:[%s5 + $0x4d0] sm:$0xf]
        %v3878 = vld [vmem:[%s5 + $0x4d4] sm:$0xf]
        %v3879 = vld [vmem:[%s5 + $0x4d8] sm:$0xf]
        %v3880 = vld [vmem:[%s5 + $0x4dc] sm:$0xf]
        %v3881 = vld [vmem:[%s5 + $0x4e0] sm:$0xf]
        %v3882 = vld [vmem:[%s5 + $0x4e4] sm:$0xf]
        %v3883 = vld [vmem:[%s5 + $0x4e8] sm:$0xf]
        %v3884 = vld [vmem:[%s5 + $0x4ec] sm:$0xf]
        %v3885 = vld [vmem:[%s5 + $0x4f0] sm:$0xf]
        %v3886 = vld [vmem:[%s5 + $0x4f4] sm:$0xf]
        %v3887 = vld [vmem:[%s5 + $0x4f8] sm:$0xf]
        %v3888 = vld [vmem:[%s5 + $0x4fc] sm:$0xf]
        %v3889 = vld [vmem:[%s5 + $0x500] sm:$0xf]
        %v3890 = vld [vmem:[%s5 + $0x504] sm:$0xf]
        %v3891 = vld [vmem:[%s5 + $0x508] sm:$0xf]
        %v3892 = vld [vmem:[%s5 + $0x50c] sm:$0xf]
        %v3893 = vld [vmem:[%s5 + $0x510] sm:$0xf]
        %v3894 = vld [vmem:[%s5 + $0x514] sm:$0xf]
        %v3895 = vld [vmem:[%s5 + $0x518] sm:$0xf]
        %v3896 = vld [vmem:[%s5 + $0x51c] sm:$0xf]
        %v3897 = vld [vmem:[%s5 + $0x520] sm:$0xf]
        %v3898 = vld [vmem:[%s5 + $0x524] sm:$0xf]
        %v3899 = vld [vmem:[%s5 + $0x528] sm:$0xf]
        %v3900 = vld [vmem:[%s5 + $0x52c] sm:$0xf]
        %v3901 = vld [vmem:[%s5 + $0x530] sm:$0xf]
        %v3902 = vld [vmem:[%s5 + $0x534] sm:$0xf]
        %v3903 = vld [vmem:[%s5 + $0x538] sm:$0xf]
        %v3904 = vld [vmem:[%s5 + $0x53c] sm:$0xf]
        %v3905 = vld [vmem:[%s5 + $0x540] sm:$0xf]
        %v3906 = vld [vmem:[%s5 + $0x544] sm:$0xf]
        %v3907 = vld [vmem:[%s5 + $0x548] sm:$0xf]
        %v3908 = vld [vmem:[%s5 + $0x54c] sm:$0xf]
        %v3909 = vld [vmem:[%s5 + $0x550] sm:$0xf]
        %v3910 = vld [vmem:[%s5 + $0x554] sm:$0xf]
        %v3911 = vld [vmem:[%s5 + $0x558] sm:$0xf]
        %v3912 = vld [vmem:[%s5 + $0x55c] sm:$0xf]
        %v3913 = vld [vmem:[%s5 + $0x560] sm:$0xf]
        %v3914 = vld [vmem:[%s5 + $0x564] sm:$0xf]
        %v3915 = vld [vmem:[%s5 + $0x568] sm:$0xf]
        %v3916 = vld [vmem:[%s5 + $0x56c] sm:$0xf]
        %v3917 = vld [vmem:[%s5 + $0x570] sm:$0xf]
        %v3918 = vld [vmem:[%s5 + $0x574] sm:$0xf]
        %v3919 = vld [vmem:[%s5 + $0x578] sm:$0xf]
        %v3920 = vld [vmem:[%s5 + $0x57c] sm:$0xf]
        %v3921 = vld [vmem:[%s5 + $0x580] sm:$0xf]
        %v3922 = vld [vmem:[%s5 + $0x584] sm:$0xf]
        %v3923 = vld [vmem:[%s5 + $0x588] sm:$0xf]
        %v3924 = vld [vmem:[%s5 + $0x58c] sm:$0xf]
        %v3925 = vld [vmem:[%s5 + $0x590] sm:$0xf]
        %v3926 = vld [vmem:[%s5 + $0x594] sm:$0xf]
        %v3927 = vld [vmem:[%s5 + $0x598] sm:$0xf]
        %v3928 = vld [vmem:[%s5 + $0x59c] sm:$0xf]
        %v3929 = vld [vmem:[%s5 + $0x5a0] sm:$0xf]
        %v3930 = vld [vmem:[%s5 + $0x5a4] sm:$0xf]
        %v3931 = vld [vmem:[%s5 + $0x5a8] sm:$0xf]
        %v3932 = vld [vmem:[%s5 + $0x5ac] sm:$0xf]
        %v3933 = vld [vmem:[%s5 + $0x5b0] sm:$0xf]
        %v3934 = vld [vmem:[%s5 + $0x5b4] sm:$0xf]
        %v3935 = vld [vmem:[%s5 + $0x5b8] sm:$0xf]
        %v3936 = vld [vmem:[%s5 + $0x5bc] sm:$0xf]
        %v3937 = vld [vmem:[%s5 + $0x5c0] sm:$0xf]
        %v3938 = vld [vmem:[%s5 + $0x5c4] sm:$0xf]
        %v3939 = vld [vmem:[%s5 + $0x5c8] sm:$0xf]
        %v3940 = vld [vmem:[%s5 + $0x5cc] sm:$0xf]
        %v3941 = vld [vmem:[%s5 + $0x5d0] sm:$0xf]
        %v3942 = vld [vmem:[%s5 + $0x5d4] sm:$0xf]
        %v3943 = vld [vmem:[%s5 + $0x5d8] sm:$0xf]
        %v3944 = vld [vmem:[%s5 + $0x5dc] sm:$0xf]
        %v3945 = vld [vmem:[%s5 + $0x5e0] sm:$0xf]
        %v3946 = vld [vmem:[%s5 + $0x5e4] sm:$0xf]
        %v3947 = vld [vmem:[%s5 + $0x5e8] sm:$0xf]
        %v3948 = vld [vmem:[%s5 + $0x5ec] sm:$0xf]
        %v3949 = vld [vmem:[%s5 + $0x5f0] sm:$0xf]
        %v3950 = vld [vmem:[%s5 + $0x5f4] sm:$0xf]
        %v3951 = vld [vmem:[%s5 + $0x5f8] sm:$0xf]
        %v3952 = vld [vmem:[%s5 + $0x5fc] sm:$0xf]
        %v3953 = vld [vmem:[%s5 + $0x600] sm:$0xf]
        %v3954 = vld [vmem:[%s5 + $0x604] sm:$0xf]
        %v3955 = vld [vmem:[%s5 + $0x608] sm:$0xf]
        %v3956 = vld [vmem:[%s5 + $0x60c] sm:$0xf]
        %v3957 = vld [vmem:[%s5 + $0x610] sm:$0xf]
        %v3958 = vld [vmem:[%s5 + $0x614] sm:$0xf]
        %v3959 = vld [vmem:[%s5 + $0x618] sm:$0xf]
        %v3960 = vld [vmem:[%s5 + $0x61c] sm:$0xf]
        %v3961 = vld [vmem:[%s6] sm:$0x1]
        %v4354 = vunpack.c.l.b16 %v3569
        %v4355 = vunpack.c.l.b16 %v3570
        %v4356 = vunpack.c.l.b16 %v3571
        %v4357 = vunpack.c.l.b16 %v3572
        %v4358 = vunpack.c.l.b16 %v3573
        %v4359 = vunpack.c.l.b16 %v3574
        %v4360 = vunpack.c.l.b16 %v3575
        %v4361 = vunpack.c.l.b16 %v3576
        %v4362 = vunpack.c.l.b16 %v3577
        %v4363 = vunpack.c.l.b16 %v3578
        %v4364 = vunpack.c.l.b16 %v3579
        %v4365 = vunpack.c.l.b16 %v3580
        %v4366 = vunpack.c.l.b16 %v3581
        %v4367 = vunpack.c.l.b16 %v3582
        %v4368 = vunpack.c.l.b16 %v3583
        %v4369 = vunpack.c.l.b16 %v3584
        %v4370 = vunpack.c.l.b16 %v3585
        %v4371 = vunpack.c.l.b16 %v3586
        %v4372 = vunpack.c.l.b16 %v3587
        %v4373 = vunpack.c.l.b16 %v3588
        %v4374 = vunpack.c.l.b16 %v3589
        %v4375 = vunpack.c.l.b16 %v3590
        %v4376 = vunpack.c.l.b16 %v3591
        %v4377 = vunpack.c.l.b16 %v3592
        %v4378 = vunpack.c.l.b16 %v3593
        %v4379 = vunpack.c.l.b16 %v3594
        %v4380 = vunpack.c.l.b16 %v3595
        %v4381 = vunpack.c.l.b16 %v3596
        %v4382 = vunpack.c.l.b16 %v3597
        %v4383 = vunpack.c.l.b16 %v3598
        %v4384 = vunpack.c.l.b16 %v3599
        %v4385 = vunpack.c.l.b16 %v3600
        %v4386 = vunpack.c.l.b16 %v3601
        %v4387 = vunpack.c.l.b16 %v3602
        %v4388 = vunpack.c.l.b16 %v3603
        %v4389 = vunpack.c.l.b16 %v3604
        %v4390 = vunpack.c.l.b16 %v3605
        %v4391 = vunpack.c.l.b16 %v3606
        %v4392 = vunpack.c.l.b16 %v3607
        %v4393 = vunpack.c.l.b16 %v3608
        %v4394 = vunpack.c.l.b16 %v3609
        %v4395 = vunpack.c.l.b16 %v3610
        %v4396 = vunpack.c.l.b16 %v3611
        %v4397 = vunpack.c.l.b16 %v3612
        %v4398 = vunpack.c.l.b16 %v3613
        %v4399 = vunpack.c.l.b16 %v3614
        %v4400 = vunpack.c.l.b16 %v3615
        %v4401 = vunpack.c.l.b16 %v3616
        %v4402 = vunpack.c.l.b16 %v3617
        %v4403 = vunpack.c.l.b16 %v3618
        %v4404 = vunpack.c.l.b16 %v3619
        %v4405 = vunpack.c.l.b16 %v3620
        %v4406 = vunpack.c.l.b16 %v3621
        %v4407 = vunpack.c.l.b16 %v3622
        %v4408 = vunpack.c.l.b16 %v3623
        %v4409 = vunpack.c.l.b16 %v3624
        %v4410 = vunpack.c.l.b16 %v3625
        %v4411 = vunpack.c.l.b16 %v3626
        %v4412 = vunpack.c.l.b16 %v3627
        %v4413 = vunpack.c.l.b16 %v3628
        %v4414 = vunpack.c.l.b16 %v3629
        %v4415 = vunpack.c.l.b16 %v3630
        %v4416 = vunpack.c.l.b16 %v3631
        %v4417 = vunpack.c.l.b16 %v3632
        %v4418 = vunpack.c.l.b16 %v3633
        %v4419 = vunpack.c.l.b16 %v3634
        %v4420 = vunpack.c.l.b16 %v3635
        %v4421 = vunpack.c.l.b16 %v3636
        %v4422 = vunpack.c.l.b16 %v3637
        %v4423 = vunpack.c.l.b16 %v3638
        %v4424 = vunpack.c.l.b16 %v3639
        %v4425 = vunpack.c.l.b16 %v3640
        %v4426 = vunpack.c.l.b16 %v3641
        %v4427 = vunpack.c.l.b16 %v3642
        %v4428 = vunpack.c.l.b16 %v3643
        %v4429 = vunpack.c.l.b16 %v3644
        %v4430 = vunpack.c.l.b16 %v3645
        %v4431 = vunpack.c.l.b16 %v3646
        %v4432 = vunpack.c.l.b16 %v3647
        %v4433 = vunpack.c.l.b16 %v3648
        %v4434 = vunpack.c.l.b16 %v3649
        %v4435 = vunpack.c.l.b16 %v3650
        %v4436 = vunpack.c.l.b16 %v3651
        %v4437 = vunpack.c.l.b16 %v3652
        %v4438 = vunpack.c.l.b16 %v3653
        %v4439 = vunpack.c.l.b16 %v3654
        %v4440 = vunpack.c.l.b16 %v3655
        %v4441 = vunpack.c.l.b16 %v3656
        %v4442 = vunpack.c.l.b16 %v3657
        %v4443 = vunpack.c.l.b16 %v3658
        %v4444 = vunpack.c.l.b16 %v3659
        %v4445 = vunpack.c.l.b16 %v3660
        %v4446 = vunpack.c.l.b16 %v3661
        %v4447 = vunpack.c.l.b16 %v3662
        %v4448 = vunpack.c.l.b16 %v3663
        %v4449 = vunpack.c.l.b16 %v3664
        %v4450 = vunpack.c.l.b16 %v3665
        %v4451 = vunpack.c.l.b16 %v3666
        %v4452 = vunpack.c.l.b16 %v3667
        %v4453 = vunpack.c.l.b16 %v3668
        %v4454 = vunpack.c.l.b16 %v3669
        %v4455 = vunpack.c.l.b16 %v3670
        %v4456 = vunpack.c.l.b16 %v3671
        %v4457 = vunpack.c.l.b16 %v3672
        %v4458 = vunpack.c.l.b16 %v3673
        %v4459 = vunpack.c.l.b16 %v3674
        %v4460 = vunpack.c.l.b16 %v3675
        %v4461 = vunpack.c.l.b16 %v3676
        %v4462 = vunpack.c.l.b16 %v3677
        %v4463 = vunpack.c.l.b16 %v3678
        %v4464 = vunpack.c.l.b16 %v3679
        %v4465 = vunpack.c.l.b16 %v3680
        %v4466 = vunpack.c.l.b16 %v3681
        %v4467 = vunpack.c.l.b16 %v3682
        %v4468 = vunpack.c.l.b16 %v3683
        %v4469 = vunpack.c.l.b16 %v3684
        %v4470 = vunpack.c.l.b16 %v3685
        %v4471 = vunpack.c.l.b16 %v3686
        %v4472 = vunpack.c.l.b16 %v3687
        %v4473 = vunpack.c.l.b16 %v3688
        %v4474 = vunpack.c.l.b16 %v3689
        %v4475 = vunpack.c.l.b16 %v3690
        %v4476 = vunpack.c.l.b16 %v3691
        %v4477 = vunpack.c.l.b16 %v3692
        %v4478 = vunpack.c.l.b16 %v3693
        %v4479 = vunpack.c.l.b16 %v3694
        %v4480 = vunpack.c.l.b16 %v3695
        %v4481 = vunpack.c.l.b16 %v3696
        %v4482 = vunpack.c.l.b16 %v3697
        %v4483 = vunpack.c.l.b16 %v3698
        %v4484 = vunpack.c.l.b16 %v3699
        %v4485 = vunpack.c.l.b16 %v3700
        %v4486 = vunpack.c.l.b16 %v3701
        %v4487 = vunpack.c.l.b16 %v3702
        %v4488 = vunpack.c.l.b16 %v3703
        %v4489 = vunpack.c.l.b16 %v3704
        %v4490 = vunpack.c.l.b16 %v3705
        %v4491 = vunpack.c.l.b16 %v3706
        %v4492 = vunpack.c.l.b16 %v3707
        %v4493 = vunpack.c.l.b16 %v3708
        %v4494 = vunpack.c.l.b16 %v3709
        %v4495 = vunpack.c.l.b16 %v3710
        %v4496 = vunpack.c.l.b16 %v3711
        %v4497 = vunpack.c.l.b16 %v3712
        %v4498 = vunpack.c.l.b16 %v3713
        %v4499 = vunpack.c.l.b16 %v3714
        %v4500 = vunpack.c.l.b16 %v3715
        %v4501 = vunpack.c.l.b16 %v3716
        %v4502 = vunpack.c.l.b16 %v3717
        %v4503 = vunpack.c.l.b16 %v3718
        %v4504 = vunpack.c.l.b16 %v3719
        %v4505 = vunpack.c.l.b16 %v3720
        %v4506 = vunpack.c.l.b16 %v3721
        %v4507 = vunpack.c.l.b16 %v3722
        %v4508 = vunpack.c.l.b16 %v3723
        %v4509 = vunpack.c.l.b16 %v3724
        %v4510 = vunpack.c.l.b16 %v3725
        %v4511 = vunpack.c.l.b16 %v3726
        %v4512 = vunpack.c.l.b16 %v3727
        %v4513 = vunpack.c.l.b16 %v3728
        %v4514 = vunpack.c.l.b16 %v3729
        %v4515 = vunpack.c.l.b16 %v3730
        %v4516 = vunpack.c.l.b16 %v3731
        %v4517 = vunpack.c.l.b16 %v3732
        %v4518 = vunpack.c.l.b16 %v3733
        %v4519 = vunpack.c.l.b16 %v3734
        %v4520 = vunpack.c.l.b16 %v3735
        %v4521 = vunpack.c.l.b16 %v3736
        %v4522 = vunpack.c.l.b16 %v3737
        %v4523 = vunpack.c.l.b16 %v3738
        %v4524 = vunpack.c.l.b16 %v3739
        %v4525 = vunpack.c.l.b16 %v3740
        %v4526 = vunpack.c.l.b16 %v3741
        %v4527 = vunpack.c.l.b16 %v3742
        %v4528 = vunpack.c.l.b16 %v3743
        %v4529 = vunpack.c.l.b16 %v3744
        %v4530 = vunpack.c.l.b16 %v3745
        %v4531 = vunpack.c.l.b16 %v3746
        %v4532 = vunpack.c.l.b16 %v3747
        %v4533 = vunpack.c.l.b16 %v3748
        %v4534 = vunpack.c.l.b16 %v3749
        %v4535 = vunpack.c.l.b16 %v3750
        %v4536 = vunpack.c.l.b16 %v3751
        %v4537 = vunpack.c.l.b16 %v3752
        %v4538 = vunpack.c.l.b16 %v3753
        %v4539 = vunpack.c.l.b16 %v3754
        %v4540 = vunpack.c.l.b16 %v3755
        %v4541 = vunpack.c.l.b16 %v3756
        %v4542 = vunpack.c.l.b16 %v3757
        %v4543 = vunpack.c.l.b16 %v3758
        %v4544 = vunpack.c.l.b16 %v3759
        %v4545 = vunpack.c.l.b16 %v3760
        %v4546 = vunpack.c.l.b16 %v3761
        %v4547 = vunpack.c.l.b16 %v3762
        %v4548 = vunpack.c.l.b16 %v3763
        %v4549 = vunpack.c.l.b16 %v3764
        %v4550 = vunpack.c.l.b16 %v3765
        %v4551 = vunpack.c.l.b16 %v3766
        %v4552 = vunpack.c.l.b16 %v3767
        %v4553 = vunpack.c.l.b16 %v3768
        %v4554 = vunpack.c.l.b16 %v3769
        %v4555 = vunpack.c.l.b16 %v3770
        %v4556 = vunpack.c.l.b16 %v3771
        %v4557 = vunpack.c.l.b16 %v3772
        %v4558 = vunpack.c.l.b16 %v3773
        %v4559 = vunpack.c.l.b16 %v3774
        %v4560 = vunpack.c.l.b16 %v3775
        %v4561 = vunpack.c.l.b16 %v3776
        %v4562 = vunpack.c.l.b16 %v3777
        %v4563 = vunpack.c.l.b16 %v3778
        %v4564 = vunpack.c.l.b16 %v3779
        %v4565 = vunpack.c.l.b16 %v3780
        %v4566 = vunpack.c.l.b16 %v3781
        %v4567 = vunpack.c.l.b16 %v3782
        %v4568 = vunpack.c.l.b16 %v3783
        %v4569 = vunpack.c.l.b16 %v3784
        %v4570 = vunpack.c.l.b16 %v3785
        %v4571 = vunpack.c.l.b16 %v3786
        %v4572 = vunpack.c.l.b16 %v3787
        %v4573 = vunpack.c.l.b16 %v3788
        %v4574 = vunpack.c.l.b16 %v3789
        %v4575 = vunpack.c.l.b16 %v3790
        %v4576 = vunpack.c.l.b16 %v3791
        %v4577 = vunpack.c.l.b16 %v3792
        %v4578 = vunpack.c.l.b16 %v3793
        %v4579 = vunpack.c.l.b16 %v3794
        %v4580 = vunpack.c.l.b16 %v3795
        %v4581 = vunpack.c.l.b16 %v3796
        %v4582 = vunpack.c.l.b16 %v3797
        %v4583 = vunpack.c.l.b16 %v3798
        %v4584 = vunpack.c.l.b16 %v3799
        %v4585 = vunpack.c.l.b16 %v3800
        %v4586 = vunpack.c.l.b16 %v3801
        %v4587 = vunpack.c.l.b16 %v3802
        %v4588 = vunpack.c.l.b16 %v3803
        %v4589 = vunpack.c.l.b16 %v3804
        %v4590 = vunpack.c.l.b16 %v3805
        %v4591 = vunpack.c.l.b16 %v3806
        %v4592 = vunpack.c.l.b16 %v3807
        %v4593 = vunpack.c.l.b16 %v3808
        %v4594 = vunpack.c.l.b16 %v3809
        %v4595 = vunpack.c.l.b16 %v3810
        %v4596 = vunpack.c.l.b16 %v3811
        %v4597 = vunpack.c.l.b16 %v3812
        %v4598 = vunpack.c.l.b16 %v3813
        %v4599 = vunpack.c.l.b16 %v3814
        %v4600 = vunpack.c.l.b16 %v3815
        %v4601 = vunpack.c.l.b16 %v3816
        %v4602 = vunpack.c.l.b16 %v3817
        %v4603 = vunpack.c.l.b16 %v3818
        %v4604 = vunpack.c.l.b16 %v3819
        %v4605 = vunpack.c.l.b16 %v3820
        %v4606 = vunpack.c.l.b16 %v3821
        %v4607 = vunpack.c.l.b16 %v3822
        %v4608 = vunpack.c.l.b16 %v3823
        %v4609 = vunpack.c.l.b16 %v3824
        %v4610 = vunpack.c.l.b16 %v3825
        %v4611 = vunpack.c.l.b16 %v3826
        %v4612 = vunpack.c.l.b16 %v3827
        %v4613 = vunpack.c.l.b16 %v3828
        %v4614 = vunpack.c.l.b16 %v3829
        %v4615 = vunpack.c.l.b16 %v3830
        %v4616 = vunpack.c.l.b16 %v3831
        %v4617 = vunpack.c.l.b16 %v3832
        %v4618 = vunpack.c.l.b16 %v3833
        %v4619 = vunpack.c.l.b16 %v3834
        %v4620 = vunpack.c.l.b16 %v3835
        %v4621 = vunpack.c.l.b16 %v3836
        %v4622 = vunpack.c.l.b16 %v3837
        %v4623 = vunpack.c.l.b16 %v3838
        %v4624 = vunpack.c.l.b16 %v3839
        %v4625 = vunpack.c.l.b16 %v3840
        %v4626 = vunpack.c.l.b16 %v3841
        %v4627 = vunpack.c.l.b16 %v3842
        %v4628 = vunpack.c.l.b16 %v3843
        %v4629 = vunpack.c.l.b16 %v3844
        %v4630 = vunpack.c.l.b16 %v3845
        %v4631 = vunpack.c.l.b16 %v3846
        %v4632 = vunpack.c.l.b16 %v3847
        %v4633 = vunpack.c.l.b16 %v3848
        %v4634 = vunpack.c.l.b16 %v3849
        %v4635 = vunpack.c.l.b16 %v3850
        %v4636 = vunpack.c.l.b16 %v3851
        %v4637 = vunpack.c.l.b16 %v3852
        %v4638 = vunpack.c.l.b16 %v3853
        %v4639 = vunpack.c.l.b16 %v3854
        %v4640 = vunpack.c.l.b16 %v3855
        %v4641 = vunpack.c.l.b16 %v3856
        %v4642 = vunpack.c.l.b16 %v3857
        %v4643 = vunpack.c.l.b16 %v3858
        %v4644 = vunpack.c.l.b16 %v3859
        %v4645 = vunpack.c.l.b16 %v3860
        %v4646 = vunpack.c.l.b16 %v3861
        %v4647 = vunpack.c.l.b16 %v3862
        %v4648 = vunpack.c.l.b16 %v3863
        %v4649 = vunpack.c.l.b16 %v3864
        %v4650 = vunpack.c.l.b16 %v3865
        %v4651 = vunpack.c.l.b16 %v3866
        %v4652 = vunpack.c.l.b16 %v3867
        %v4653 = vunpack.c.l.b16 %v3868
        %v4654 = vunpack.c.l.b16 %v3869
        %v4655 = vunpack.c.l.b16 %v3870
        %v4656 = vunpack.c.l.b16 %v3871
        %v4657 = vunpack.c.l.b16 %v3872
        %v4658 = vunpack.c.l.b16 %v3873
        %v4659 = vunpack.c.l.b16 %v3874
        %v4660 = vunpack.c.l.b16 %v3875
        %v4661 = vunpack.c.l.b16 %v3876
        %v4662 = vunpack.c.l.b16 %v3877
        %v4663 = vunpack.c.l.b16 %v3878
        %v4664 = vunpack.c.l.b16 %v3879
        %v4665 = vunpack.c.l.b16 %v3880
        %v4666 = vunpack.c.l.b16 %v3881
        %v4667 = vunpack.c.l.b16 %v3882
        %v4668 = vunpack.c.l.b16 %v3883
        %v4669 = vunpack.c.l.b16 %v3884
        %v4670 = vunpack.c.l.b16 %v3885
        %v4671 = vunpack.c.l.b16 %v3886
        %v4672 = vunpack.c.l.b16 %v3887
        %v4673 = vunpack.c.l.b16 %v3888
        %v4674 = vunpack.c.l.b16 %v3889
        %v4675 = vunpack.c.l.b16 %v3890
        %v4676 = vunpack.c.l.b16 %v3891
        %v4677 = vunpack.c.l.b16 %v3892
        %v4678 = vunpack.c.l.b16 %v3893
        %v4679 = vunpack.c.l.b16 %v3894
        %v4680 = vunpack.c.l.b16 %v3895
        %v4681 = vunpack.c.l.b16 %v3896
        %v4682 = vunpack.c.l.b16 %v3897
        %v4683 = vunpack.c.l.b16 %v3898
        %v4684 = vunpack.c.l.b16 %v3899
        %v4685 = vunpack.c.l.b16 %v3900
        %v4686 = vunpack.c.l.b16 %v3901
        %v4687 = vunpack.c.l.b16 %v3902
        %v4688 = vunpack.c.l.b16 %v3903
        %v4689 = vunpack.c.l.b16 %v3904
        %v4690 = vunpack.c.l.b16 %v3905
        %v4691 = vunpack.c.l.b16 %v3906
        %v4692 = vunpack.c.l.b16 %v3907
        %v4693 = vunpack.c.l.b16 %v3908
        %v4694 = vunpack.c.l.b16 %v3909
        %v4695 = vunpack.c.l.b16 %v3910
        %v4696 = vunpack.c.l.b16 %v3911
        %v4697 = vunpack.c.l.b16 %v3912
        %v4698 = vunpack.c.l.b16 %v3913
        %v4699 = vunpack.c.l.b16 %v3914
        %v4700 = vunpack.c.l.b16 %v3915
        %v4701 = vunpack.c.l.b16 %v3916
        %v4702 = vunpack.c.l.b16 %v3917
        %v4703 = vunpack.c.l.b16 %v3918
        %v4704 = vunpack.c.l.b16 %v3919
        %v4705 = vunpack.c.l.b16 %v3920
        %v4706 = vunpack.c.l.b16 %v3921
        %v4707 = vunpack.c.l.b16 %v3922
        %v4708 = vunpack.c.l.b16 %v3923
        %v4709 = vunpack.c.l.b16 %v3924
        %v4710 = vunpack.c.l.b16 %v3925
        %v4711 = vunpack.c.l.b16 %v3926
        %v4712 = vunpack.c.l.b16 %v3927
        %v4713 = vunpack.c.l.b16 %v3928
        %v4714 = vunpack.c.l.b16 %v3929
        %v4715 = vunpack.c.l.b16 %v3930
        %v4716 = vunpack.c.l.b16 %v3931
        %v4717 = vunpack.c.l.b16 %v3932
        %v4718 = vunpack.c.l.b16 %v3933
        %v4719 = vunpack.c.l.b16 %v3934
        %v4720 = vunpack.c.l.b16 %v3935
        %v4721 = vunpack.c.l.b16 %v3936
        %v4722 = vunpack.c.l.b16 %v3937
        %v4723 = vunpack.c.l.b16 %v3938
        %v4724 = vunpack.c.l.b16 %v3939
        %v4725 = vunpack.c.l.b16 %v3940
        %v4726 = vunpack.c.l.b16 %v3941
        %v4727 = vunpack.c.l.b16 %v3942
        %v4728 = vunpack.c.l.b16 %v3943
        %v4729 = vunpack.c.l.b16 %v3944
        %v4730 = vunpack.c.l.b16 %v3945
        %v4731 = vunpack.c.l.b16 %v3946
        %v4732 = vunpack.c.l.b16 %v3947
        %v4733 = vunpack.c.l.b16 %v3948
        %v4734 = vunpack.c.l.b16 %v3949
        %v4735 = vunpack.c.l.b16 %v3950
        %v4736 = vunpack.c.l.b16 %v3951
        %v4737 = vunpack.c.l.b16 %v3952
        %v4738 = vunpack.c.l.b16 %v3953
        %v4739 = vunpack.c.l.b16 %v3954
        %v4740 = vunpack.c.l.b16 %v3955
        %v4741 = vunpack.c.l.b16 %v3956
        %v4742 = vunpack.c.l.b16 %v3957
        %v4743 = vunpack.c.l.b16 %v3958
        %v4744 = vunpack.c.l.b16 %v3959
        %v4745 = vunpack.c.l.b16 %v3960
        %v4746 = vpack.c.b16 %v4355, %v4354
        %v4747 = vpack.c.b16 %v4357, %v4356
        %v4748 = vpack.c.b16 %v4359, %v4358
        %v4749 = vpack.c.b16 %v4361, %v4360
        %v4750 = vpack.c.b16 %v4363, %v4362
        %v4751 = vpack.c.b16 %v4365, %v4364
        %v4752 = vpack.c.b16 %v4367, %v4366
        %v4753 = vpack.c.b16 %v4369, %v4368
        %v4754 = vpack.c.b16 %v4371, %v4370
        %v4755 = vpack.c.b16 %v4373, %v4372
        %v4756 = vpack.c.b16 %v4375, %v4374
        %v4757 = vpack.c.b16 %v4377, %v4376
        %v4758 = vpack.c.b16 %v4379, %v4378
        %v4759 = vpack.c.b16 %v4381, %v4380
        %v4760 = vpack.c.b16 %v4383, %v4382
        %v4761 = vpack.c.b16 %v4385, %v4384
        %v4762 = vpack.c.b16 %v4387, %v4386
        %v4763 = vpack.c.b16 %v4389, %v4388
        %v4764 = vpack.c.b16 %v4391, %v4390
        %v4765 = vpack.c.b16 %v4393, %v4392
        %v4766 = vpack.c.b16 %v4395, %v4394
        %v4767 = vpack.c.b16 %v4397, %v4396
        %v4768 = vpack.c.b16 %v4399, %v4398
        %v4769 = vpack.c.b16 %v4401, %v4400
        %v4770 = vpack.c.b16 %v4403, %v4402
        %v4771 = vpack.c.b16 %v4405, %v4404
        %v4772 = vpack.c.b16 %v4407, %v4406
        %v4773 = vpack.c.b16 %v4409, %v4408
        %v4774 = vpack.c.b16 %v4411, %v4410
        %v4775 = vpack.c.b16 %v4413, %v4412
        %v4776 = vpack.c.b16 %v4415, %v4414
        %v4777 = vpack.c.b16 %v4417, %v4416
        %v4778 = vpack.c.b16 %v4419, %v4418
        %v4779 = vpack.c.b16 %v4421, %v4420
        %v4780 = vpack.c.b16 %v4423, %v4422
        %v4781 = vpack.c.b16 %v4425, %v4424
        %v4782 = vpack.c.b16 %v4427, %v4426
        %v4783 = vpack.c.b16 %v4429, %v4428
        %v4784 = vpack.c.b16 %v4431, %v4430
        %v4785 = vpack.c.b16 %v4433, %v4432
        %v4786 = vpack.c.b16 %v4435, %v4434
        %v4787 = vpack.c.b16 %v4437, %v4436
        %v4788 = vpack.c.b16 %v4439, %v4438
        %v4789 = vpack.c.b16 %v4441, %v4440
        %v4790 = vpack.c.b16 %v4443, %v4442
        %v4791 = vpack.c.b16 %v4445, %v4444
        %v4792 = vpack.c.b16 %v4447, %v4446
        %v4793 = vpack.c.b16 %v4449, %v4448
        %v4794 = vpack.c.b16 %v4451, %v4450
        %v4795 = vpack.c.b16 %v4453, %v4452
        %v4796 = vpack.c.b16 %v4455, %v4454
        %v4797 = vpack.c.b16 %v4457, %v4456
        %v4798 = vpack.c.b16 %v4459, %v4458
        %v4799 = vpack.c.b16 %v4461, %v4460
        %v4800 = vpack.c.b16 %v4463, %v4462
        %v4801 = vpack.c.b16 %v4465, %v4464
        %v4802 = vpack.c.b16 %v4467, %v4466
        %v4803 = vpack.c.b16 %v4469, %v4468
        %v4804 = vpack.c.b16 %v4471, %v4470
        %v4805 = vpack.c.b16 %v4473, %v4472
        %v4806 = vpack.c.b16 %v4475, %v4474
        %v4807 = vpack.c.b16 %v4477, %v4476
        %v4808 = vpack.c.b16 %v4479, %v4478
        %v4809 = vpack.c.b16 %v4481, %v4480
        %v4810 = vpack.c.b16 %v4483, %v4482
        %v4811 = vpack.c.b16 %v4485, %v4484
        %v4812 = vpack.c.b16 %v4487, %v4486
        %v4813 = vpack.c.b16 %v4489, %v4488
        %v4814 = vpack.c.b16 %v4491, %v4490
        %v4815 = vpack.c.b16 %v4493, %v4492
        %v4816 = vpack.c.b16 %v4495, %v4494
        %v4817 = vpack.c.b16 %v4497, %v4496
        %v4818 = vpack.c.b16 %v4499, %v4498
        %v4819 = vpack.c.b16 %v4501, %v4500
        %v4820 = vpack.c.b16 %v4503, %v4502
        %v4821 = vpack.c.b16 %v4505, %v4504
        %v4822 = vpack.c.b16 %v4507, %v4506
        %v4823 = vpack.c.b16 %v4509, %v4508
        %v4824 = vpack.c.b16 %v4511, %v4510
        %v4825 = vpack.c.b16 %v4513, %v4512
        %v4826 = vpack.c.b16 %v4515, %v4514
        %v4827 = vpack.c.b16 %v4517, %v4516
        %v4828 = vpack.c.b16 %v4519, %v4518
        %v4829 = vpack.c.b16 %v4521, %v4520
        %v4830 = vpack.c.b16 %v4523, %v4522
        %v4831 = vpack.c.b16 %v4525, %v4524
        %v4832 = vpack.c.b16 %v4527, %v4526
        %v4833 = vpack.c.b16 %v4529, %v4528
        %v4834 = vpack.c.b16 %v4531, %v4530
        %v4835 = vpack.c.b16 %v4533, %v4532
        %v4836 = vpack.c.b16 %v4535, %v4534
        %v4837 = vpack.c.b16 %v4537, %v4536
        %v4838 = vpack.c.b16 %v4539, %v4538
        %v4839 = vpack.c.b16 %v4541, %v4540
        %v4840 = vpack.c.b16 %v4543, %v4542
        %v4841 = vpack.c.b16 %v4545, %v4544
        %v4842 = vpack.c.b16 %v4547, %v4546
        %v4843 = vpack.c.b16 %v4549, %v4548
        %v4844 = vpack.c.b16 %v4551, %v4550
        %v4845 = vpack.c.b16 %v4553, %v4552
        %v4846 = vpack.c.b16 %v4555, %v4554
        %v4847 = vpack.c.b16 %v4557, %v4556
        %v4848 = vpack.c.b16 %v4559, %v4558
        %v4849 = vpack.c.b16 %v4561, %v4560
        %v4850 = vpack.c.b16 %v4563, %v4562
        %v4851 = vpack.c.b16 %v4565, %v4564
        %v4852 = vpack.c.b16 %v4567, %v4566
        %v4853 = vpack.c.b16 %v4569, %v4568
        %v4854 = vpack.c.b16 %v4571, %v4570
        %v4855 = vpack.c.b16 %v4573, %v4572
        %v4856 = vpack.c.b16 %v4575, %v4574
        %v4857 = vpack.c.b16 %v4577, %v4576
        %v4858 = vpack.c.b16 %v4579, %v4578
        %v4859 = vpack.c.b16 %v4581, %v4580
        %v4860 = vpack.c.b16 %v4583, %v4582
        %v4861 = vpack.c.b16 %v4585, %v4584
        %v4862 = vpack.c.b16 %v4587, %v4586
        %v4863 = vpack.c.b16 %v4589, %v4588
        %v4864 = vpack.c.b16 %v4591, %v4590
        %v4865 = vpack.c.b16 %v4593, %v4592
        %v4866 = vpack.c.b16 %v4595, %v4594
        %v4867 = vpack.c.b16 %v4597, %v4596
        %v4868 = vpack.c.b16 %v4599, %v4598
        %v4869 = vpack.c.b16 %v4601, %v4600
        %v4870 = vpack.c.b16 %v4603, %v4602
        %v4871 = vpack.c.b16 %v4605, %v4604
        %v4872 = vpack.c.b16 %v4607, %v4606
        %v4873 = vpack.c.b16 %v4609, %v4608
        %v4874 = vpack.c.b16 %v4611, %v4610
        %v4875 = vpack.c.b16 %v4613, %v4612
        %v4876 = vpack.c.b16 %v4615, %v4614
        %v4877 = vpack.c.b16 %v4617, %v4616
        %v4878 = vpack.c.b16 %v4619, %v4618
        %v4879 = vpack.c.b16 %v4621, %v4620
        %v4880 = vpack.c.b16 %v4623, %v4622
        %v4881 = vpack.c.b16 %v4625, %v4624
        %v4882 = vpack.c.b16 %v4627, %v4626
        %v4883 = vpack.c.b16 %v4629, %v4628
        %v4884 = vpack.c.b16 %v4631, %v4630
        %v4885 = vpack.c.b16 %v4633, %v4632
        %v4886 = vpack.c.b16 %v4635, %v4634
        %v4887 = vpack.c.b16 %v4637, %v4636
        %v4888 = vpack.c.b16 %v4639, %v4638
        %v4889 = vpack.c.b16 %v4641, %v4640
        %v4890 = vpack.c.b16 %v4643, %v4642
        %v4891 = vpack.c.b16 %v4645, %v4644
        %v4892 = vpack.c.b16 %v4647, %v4646
        %v4893 = vpack.c.b16 %v4649, %v4648
        %v4894 = vpack.c.b16 %v4651, %v4650
        %v4895 = vpack.c.b16 %v4653, %v4652
        %v4896 = vpack.c.b16 %v4655, %v4654
        %v4897 = vpack.c.b16 %v4657, %v4656
        %v4898 = vpack.c.b16 %v4659, %v4658
        %v4899 = vpack.c.b16 %v4661, %v4660
        %v4900 = vpack.c.b16 %v4663, %v4662
        %v4901 = vpack.c.b16 %v4665, %v4664
        %v4902 = vpack.c.b16 %v4667, %v4666
        %v4903 = vpack.c.b16 %v4669, %v4668
        %v4904 = vpack.c.b16 %v4671, %v4670
        %v4905 = vpack.c.b16 %v4673, %v4672
        %v4906 = vpack.c.b16 %v4675, %v4674
        %v4907 = vpack.c.b16 %v4677, %v4676
        %v4908 = vpack.c.b16 %v4679, %v4678
        %v4909 = vpack.c.b16 %v4681, %v4680
        %v4910 = vpack.c.b16 %v4683, %v4682
        %v4911 = vpack.c.b16 %v4685, %v4684
        %v4912 = vpack.c.b16 %v4687, %v4686
        %v4913 = vpack.c.b16 %v4689, %v4688
        %v4914 = vpack.c.b16 %v4691, %v4690
        %v4915 = vpack.c.b16 %v4693, %v4692
        %v4916 = vpack.c.b16 %v4695, %v4694
        %v4917 = vpack.c.b16 %v4697, %v4696
        %v4918 = vpack.c.b16 %v4699, %v4698
        %v4919 = vpack.c.b16 %v4701, %v4700
        %v4920 = vpack.c.b16 %v4703, %v4702
        %v4921 = vpack.c.b16 %v4705, %v4704
        %v4922 = vpack.c.b16 %v4707, %v4706
        %v4923 = vpack.c.b16 %v4709, %v4708
        %v4924 = vpack.c.b16 %v4711, %v4710
        %v4925 = vpack.c.b16 %v4713, %v4712
        %v4926 = vpack.c.b16 %v4715, %v4714
        %v4927 = vpack.c.b16 %v4717, %v4716
        %v4928 = vpack.c.b16 %v4719, %v4718
        %v4929 = vpack.c.b16 %v4721, %v4720
        %v4930 = vpack.c.b16 %v4723, %v4722
        %v4931 = vpack.c.b16 %v4725, %v4724
        %v4932 = vpack.c.b16 %v4727, %v4726
        %v4933 = vpack.c.b16 %v4729, %v4728
        %v4934 = vpack.c.b16 %v4731, %v4730
        %v4935 = vpack.c.b16 %v4733, %v4732
        %v4936 = vpack.c.b16 %v4735, %v4734
        %v4937 = vpack.c.b16 %v4737, %v4736
        %v4938 = vpack.c.b16 %v4739, %v4738
        %v4939 = vpack.c.b16 %v4741, %v4740
        %v4940 = vpack.c.b16 %v4743, %v4742
        %v4941 = vpack.c.b16 %v4745, %v4744
        %v5139 = vsel %vm683, %v3568, 0
        %5141 = vmatpush.bf16.msra.mxu0 %v4753
        %5142 = vmatpush.bf16.msra.mxu0 %v4752
        %5143 = vmatpush.bf16.msra.mxu0 %v4751
        %5144 = vmatpush.bf16.msra.mxu0 %v4750
        %5145 = vmatpush.bf16.msra.mxu0 %v4749
        %5146 = vmatpush.bf16.msra.mxu0 %v4748
        %5147 = vmatpush.bf16.msra.mxu0 %v4747
        %5148 = vmatpush.bf16.msra.mxu0 %v4746
        %5149 = vmatmul.bf16.gmra.mxu0 %v3544
        %v5150 = vpop.f32.mrf.mxu0
        %v5151 = vadd.f32 %v3961, %v5150
        %v5152 = vpop.f32.mrf.mxu0
        %5153 = vdwg.mxu0
        %5154 = vmatpush.bf16.msra.mxu0 %v4761
        %5155 = vmatpush.bf16.msra.mxu0 %v4760
        %5156 = vmatpush.bf16.msra.mxu0 %v4759
        %5157 = vmatpush.bf16.msra.mxu0 %v4758
        %5158 = vmatpush.bf16.msra.mxu0 %v4757
        %5159 = vmatpush.bf16.msra.mxu0 %v4756
        %5160 = vmatpush.bf16.msra.mxu0 %v4755
        %5161 = vmatpush.bf16.msra.mxu0 %v4754
        %5162 = vmatmul.bf16.gmra.mxu0 %v3545
        %v5163 = vpop.f32.mrf.mxu0
        %v5164 = vadd.f32 %v5151, %v5163
        %v5165 = vpop.f32.mrf.mxu0
        %5166 = vdwg.mxu0
        %5167 = vmatpush.bf16.msra.mxu0 %v4769
        %5168 = vmatpush.bf16.msra.mxu0 %v4768
        %5169 = vmatpush.bf16.msra.mxu0 %v4767
        %5170 = vmatpush.bf16.msra.mxu0 %v4766
        %5171 = vmatpush.bf16.msra.mxu0 %v4765
        %5172 = vmatpush.bf16.msra.mxu0 %v4764
        %5173 = vmatpush.bf16.msra.mxu0 %v4763
        %5174 = vmatpush.bf16.msra.mxu0 %v4762
        %5175 = vmatmul.bf16.gmra.mxu0 %v3546
        %v5176 = vpop.f32.mrf.mxu0
        %v5177 = vadd.f32 %v5164, %v5176
        %v5178 = vpop.f32.mrf.mxu0
        %5179 = vdwg.mxu0
        %5180 = vmatpush.bf16.msra.mxu0 %v4777
        %5181 = vmatpush.bf16.msra.mxu0 %v4776
        %5182 = vmatpush.bf16.msra.mxu0 %v4775
        %5183 = vmatpush.bf16.msra.mxu0 %v4774
        %5184 = vmatpush.bf16.msra.mxu0 %v4773
        %5185 = vmatpush.bf16.msra.mxu0 %v4772
        %5186 = vmatpush.bf16.msra.mxu0 %v4771
        %5187 = vmatpush.bf16.msra.mxu0 %v4770
        %5188 = vmatmul.bf16.gmra.mxu0 %v3547
        %v5189 = vpop.f32.mrf.mxu0
        %v5190 = vadd.f32 %v5177, %v5189
        %v5191 = vpop.f32.mrf.mxu0
        %5192 = vdwg.mxu0
        %5193 = vmatpush.bf16.msra.mxu0 %v4785
        %5194 = vmatpush.bf16.msra.mxu0 %v4784
        %5195 = vmatpush.bf16.msra.mxu0 %v4783
        %5196 = vmatpush.bf16.msra.mxu0 %v4782
        %5197 = vmatpush.bf16.msra.mxu0 %v4781
        %5198 = vmatpush.bf16.msra.mxu0 %v4780
        %5199 = vmatpush.bf16.msra.mxu0 %v4779
        %5200 = vmatpush.bf16.msra.mxu0 %v4778
        %5201 = vmatmul.bf16.gmra.mxu0 %v3548
        %v5202 = vpop.f32.mrf.mxu0
        %v5203 = vadd.f32 %v5190, %v5202
        %v5204 = vpop.f32.mrf.mxu0
        %5205 = vdwg.mxu0
        %5206 = vmatpush.bf16.msra.mxu0 %v4793
        %5207 = vmatpush.bf16.msra.mxu0 %v4792
        %5208 = vmatpush.bf16.msra.mxu0 %v4791
        %5209 = vmatpush.bf16.msra.mxu0 %v4790
        %5210 = vmatpush.bf16.msra.mxu0 %v4789
        %5211 = vmatpush.bf16.msra.mxu0 %v4788
        %5212 = vmatpush.bf16.msra.mxu0 %v4787
        %5213 = vmatpush.bf16.msra.mxu0 %v4786
        %5214 = vmatmul.bf16.gmra.mxu0 %v3549
        %v5215 = vpop.f32.mrf.mxu0
        %v5216 = vadd.f32 %v5203, %v5215
        %v5217 = vpop.f32.mrf.mxu0
        %5218 = vdwg.mxu0
        %5219 = vmatpush.bf16.msra.mxu0 %v4801
        %5220 = vmatpush.bf16.msra.mxu0 %v4800
        %5221 = vmatpush.bf16.msra.mxu0 %v4799
        %5222 = vmatpush.bf16.msra.mxu0 %v4798
        %5223 = vmatpush.bf16.msra.mxu0 %v4797
        %5224 = vmatpush.bf16.msra.mxu0 %v4796
        %5225 = vmatpush.bf16.msra.mxu0 %v4795
        %5226 = vmatpush.bf16.msra.mxu0 %v4794
        %5227 = vmatmul.bf16.gmra.mxu0 %v3550
        %v5228 = vpop.f32.mrf.mxu0
        %v5229 = vadd.f32 %v5216, %v5228
        %v5230 = vpop.f32.mrf.mxu0
        %5231 = vdwg.mxu0
        %5232 = vmatpush.bf16.msra.mxu0 %v4809
        %5233 = vmatpush.bf16.msra.mxu0 %v4808
        %5234 = vmatpush.bf16.msra.mxu0 %v4807
        %5235 = vmatpush.bf16.msra.mxu0 %v4806
        %5236 = vmatpush.bf16.msra.mxu0 %v4805
        %5237 = vmatpush.bf16.msra.mxu0 %v4804
        %5238 = vmatpush.bf16.msra.mxu0 %v4803
        %5239 = vmatpush.bf16.msra.mxu0 %v4802
        %5240 = vmatmul.bf16.gmra.mxu0 %v3551
        %v5241 = vpop.f32.mrf.mxu0
        %v5242 = vadd.f32 %v5229, %v5241
        %v5243 = vpop.f32.mrf.mxu0
        %5244 = vdwg.mxu0
        %5245 = vmatpush.bf16.msra.mxu0 %v4817
        %5246 = vmatpush.bf16.msra.mxu0 %v4816
        %5247 = vmatpush.bf16.msra.mxu0 %v4815
        %5248 = vmatpush.bf16.msra.mxu0 %v4814
        %5249 = vmatpush.bf16.msra.mxu0 %v4813
        %5250 = vmatpush.bf16.msra.mxu0 %v4812
        %5251 = vmatpush.bf16.msra.mxu0 %v4811
        %5252 = vmatpush.bf16.msra.mxu0 %v4810
        %5253 = vmatmul.bf16.gmra.mxu0 %v3552
        %v5254 = vpop.f32.mrf.mxu0
        %v5255 = vadd.f32 %v5242, %v5254
        %v5256 = vpop.f32.mrf.mxu0
        %5257 = vdwg.mxu0
        %5258 = vmatpush.bf16.msra.mxu0 %v4825
        %5259 = vmatpush.bf16.msra.mxu0 %v4824
        %5260 = vmatpush.bf16.msra.mxu0 %v4823
        %5261 = vmatpush.bf16.msra.mxu0 %v4822
        %5262 = vmatpush.bf16.msra.mxu0 %v4821
        %5263 = vmatpush.bf16.msra.mxu0 %v4820
        %5264 = vmatpush.bf16.msra.mxu0 %v4819
        %5265 = vmatpush.bf16.msra.mxu0 %v4818
        %5266 = vmatmul.bf16.gmra.mxu0 %v3553
        %v5267 = vpop.f32.mrf.mxu0
        %v5268 = vadd.f32 %v5255, %v5267
        %v5269 = vpop.f32.mrf.mxu0
        %5270 = vdwg.mxu0
        %5271 = vmatpush.bf16.msra.mxu0 %v4833
        %5272 = vmatpush.bf16.msra.mxu0 %v4832
        %5273 = vmatpush.bf16.msra.mxu0 %v4831
        %5274 = vmatpush.bf16.msra.mxu0 %v4830
        %5275 = vmatpush.bf16.msra.mxu0 %v4829
        %5276 = vmatpush.bf16.msra.mxu0 %v4828
        %5277 = vmatpush.bf16.msra.mxu0 %v4827
        %5278 = vmatpush.bf16.msra.mxu0 %v4826
        %5279 = vmatmul.bf16.gmra.mxu0 %v3554
        %v5280 = vpop.f32.mrf.mxu0
        %v5281 = vadd.f32 %v5268, %v5280
        %v5282 = vpop.f32.mrf.mxu0
        %5283 = vdwg.mxu0
        %5284 = vmatpush.bf16.msra.mxu0 %v4841
        %5285 = vmatpush.bf16.msra.mxu0 %v4840
        %5286 = vmatpush.bf16.msra.mxu0 %v4839
        %5287 = vmatpush.bf16.msra.mxu0 %v4838
        %5288 = vmatpush.bf16.msra.mxu0 %v4837
        %5289 = vmatpush.bf16.msra.mxu0 %v4836
        %5290 = vmatpush.bf16.msra.mxu0 %v4835
        %5291 = vmatpush.bf16.msra.mxu0 %v4834
        %5292 = vmatmul.bf16.gmra.mxu0 %v3555
        %v5293 = vpop.f32.mrf.mxu0
        %v5294 = vadd.f32 %v5281, %v5293
        %v5295 = vpop.f32.mrf.mxu0
        %5296 = vdwg.mxu0
        %5297 = vmatpush.bf16.msra.mxu0 %v4849
        %5298 = vmatpush.bf16.msra.mxu0 %v4848
        %5299 = vmatpush.bf16.msra.mxu0 %v4847
        %5300 = vmatpush.bf16.msra.mxu0 %v4846
        %5301 = vmatpush.bf16.msra.mxu0 %v4845
        %5302 = vmatpush.bf16.msra.mxu0 %v4844
        %5303 = vmatpush.bf16.msra.mxu0 %v4843
        %5304 = vmatpush.bf16.msra.mxu0 %v4842
        %5305 = vmatmul.bf16.gmra.mxu0 %v3556
        %v5306 = vpop.f32.mrf.mxu0
        %v5307 = vadd.f32 %v5294, %v5306
        %v5308 = vpop.f32.mrf.mxu0
        %5309 = vdwg.mxu0
        %5310 = vmatpush.bf16.msra.mxu0 %v4857
        %5311 = vmatpush.bf16.msra.mxu0 %v4856
        %5312 = vmatpush.bf16.msra.mxu0 %v4855
        %5313 = vmatpush.bf16.msra.mxu0 %v4854
        %5314 = vmatpush.bf16.msra.mxu0 %v4853
        %5315 = vmatpush.bf16.msra.mxu0 %v4852
        %5316 = vmatpush.bf16.msra.mxu0 %v4851
        %5317 = vmatpush.bf16.msra.mxu0 %v4850
        %5318 = vmatmul.bf16.gmra.mxu0 %v3557
        %v5319 = vpop.f32.mrf.mxu0
        %v5320 = vadd.f32 %v5307, %v5319
        %v5321 = vpop.f32.mrf.mxu0
        %5322 = vdwg.mxu0
        %5323 = vmatpush.bf16.msra.mxu0 %v4865
        %5324 = vmatpush.bf16.msra.mxu0 %v4864
        %5325 = vmatpush.bf16.msra.mxu0 %v4863
        %5326 = vmatpush.bf16.msra.mxu0 %v4862
        %5327 = vmatpush.bf16.msra.mxu0 %v4861
        %5328 = vmatpush.bf16.msra.mxu0 %v4860
        %5329 = vmatpush.bf16.msra.mxu0 %v4859
        %5330 = vmatpush.bf16.msra.mxu0 %v4858
        %5331 = vmatmul.bf16.gmra.mxu0 %v3558
        %v5332 = vpop.f32.mrf.mxu0
        %v5333 = vadd.f32 %v5320, %v5332
        %v5334 = vpop.f32.mrf.mxu0
        %5335 = vdwg.mxu0
        %5336 = vmatpush.bf16.msra.mxu0 %v4873
        %5337 = vmatpush.bf16.msra.mxu0 %v4872
        %5338 = vmatpush.bf16.msra.mxu0 %v4871
        %5339 = vmatpush.bf16.msra.mxu0 %v4870
        %5340 = vmatpush.bf16.msra.mxu0 %v4869
        %5341 = vmatpush.bf16.msra.mxu0 %v4868
        %5342 = vmatpush.bf16.msra.mxu0 %v4867
        %5343 = vmatpush.bf16.msra.mxu0 %v4866
        %5344 = vmatmul.bf16.gmra.mxu0 %v3559
        %v5345 = vpop.f32.mrf.mxu0
        %v5346 = vadd.f32 %v5333, %v5345
        %v5347 = vpop.f32.mrf.mxu0
        %5348 = vdwg.mxu0
        %5349 = vmatpush.bf16.msra.mxu0 %v4881
        %5350 = vmatpush.bf16.msra.mxu0 %v4880
        %5351 = vmatpush.bf16.msra.mxu0 %v4879
        %5352 = vmatpush.bf16.msra.mxu0 %v4878
        %5353 = vmatpush.bf16.msra.mxu0 %v4877
        %5354 = vmatpush.bf16.msra.mxu0 %v4876
        %5355 = vmatpush.bf16.msra.mxu0 %v4875
        %5356 = vmatpush.bf16.msra.mxu0 %v4874
        %5357 = vmatmul.bf16.gmra.mxu0 %v3560
        %v5358 = vpop.f32.mrf.mxu0
        %v5359 = vadd.f32 %v5346, %v5358
        %v5360 = vpop.f32.mrf.mxu0
        %5361 = vdwg.mxu0
        %5362 = vmatpush.bf16.msra.mxu0 %v4889
        %5363 = vmatpush.bf16.msra.mxu0 %v4888
        %5364 = vmatpush.bf16.msra.mxu0 %v4887
        %5365 = vmatpush.bf16.msra.mxu0 %v4886
        %5366 = vmatpush.bf16.msra.mxu0 %v4885
        %5367 = vmatpush.bf16.msra.mxu0 %v4884
        %5368 = vmatpush.bf16.msra.mxu0 %v4883
        %5369 = vmatpush.bf16.msra.mxu0 %v4882
        %5370 = vmatmul.bf16.gmra.mxu0 %v3561
        %v5371 = vpop.f32.mrf.mxu0
        %v5372 = vadd.f32 %v5359, %v5371
        %v5373 = vpop.f32.mrf.mxu0
        %5374 = vdwg.mxu0
        %5375 = vmatpush.bf16.msra.mxu0 %v4897
        %5376 = vmatpush.bf16.msra.mxu0 %v4896
        %5377 = vmatpush.bf16.msra.mxu0 %v4895
        %5378 = vmatpush.bf16.msra.mxu0 %v4894
        %5379 = vmatpush.bf16.msra.mxu0 %v4893
        %5380 = vmatpush.bf16.msra.mxu0 %v4892
        %5381 = vmatpush.bf16.msra.mxu0 %v4891
        %5382 = vmatpush.bf16.msra.mxu0 %v4890
        %5383 = vmatmul.bf16.gmra.mxu0 %v3562
        %v5384 = vpop.f32.mrf.mxu0
        %v5385 = vadd.f32 %v5372, %v5384
        %v5386 = vpop.f32.mrf.mxu0
        %5387 = vdwg.mxu0
        %5388 = vmatpush.bf16.msra.mxu0 %v4905
        %5389 = vmatpush.bf16.msra.mxu0 %v4904
        %5390 = vmatpush.bf16.msra.mxu0 %v4903
        %5391 = vmatpush.bf16.msra.mxu0 %v4902
        %5392 = vmatpush.bf16.msra.mxu0 %v4901
        %5393 = vmatpush.bf16.msra.mxu0 %v4900
        %5394 = vmatpush.bf16.msra.mxu0 %v4899
        %5395 = vmatpush.bf16.msra.mxu0 %v4898
        %5396 = vmatmul.bf16.gmra.mxu0 %v3563
        %v5397 = vpop.f32.mrf.mxu0
        %v5398 = vadd.f32 %v5385, %v5397
        %v5399 = vpop.f32.mrf.mxu0
        %5400 = vdwg.mxu0
        %5401 = vmatpush.bf16.msra.mxu0 %v4913
        %5402 = vmatpush.bf16.msra.mxu0 %v4912
        %5403 = vmatpush.bf16.msra.mxu0 %v4911
        %5404 = vmatpush.bf16.msra.mxu0 %v4910
        %5405 = vmatpush.bf16.msra.mxu0 %v4909
        %5406 = vmatpush.bf16.msra.mxu0 %v4908
        %5407 = vmatpush.bf16.msra.mxu0 %v4907
        %5408 = vmatpush.bf16.msra.mxu0 %v4906
        %5409 = vmatmul.bf16.gmra.mxu0 %v3564
        %v5410 = vpop.f32.mrf.mxu0
        %v5411 = vadd.f32 %v5398, %v5410
        %v5412 = vpop.f32.mrf.mxu0
        %5413 = vdwg.mxu0
        %5414 = vmatpush.bf16.msra.mxu0 %v4921
        %5415 = vmatpush.bf16.msra.mxu0 %v4920
        %5416 = vmatpush.bf16.msra.mxu0 %v4919
        %5417 = vmatpush.bf16.msra.mxu0 %v4918
        %5418 = vmatpush.bf16.msra.mxu0 %v4917
        %5419 = vmatpush.bf16.msra.mxu0 %v4916
        %5420 = vmatpush.bf16.msra.mxu0 %v4915
        %5421 = vmatpush.bf16.msra.mxu0 %v4914
        %5422 = vmatmul.bf16.gmra.mxu0 %v3565
        %v5423 = vpop.f32.mrf.mxu0
        %v5424 = vadd.f32 %v5411, %v5423
        %v5425 = vpop.f32.mrf.mxu0
        %5426 = vdwg.mxu0
        %5427 = vmatpush.bf16.msra.mxu0 %v4929
        %5428 = vmatpush.bf16.msra.mxu0 %v4928
        %5429 = vmatpush.bf16.msra.mxu0 %v4927
        %5430 = vmatpush.bf16.msra.mxu0 %v4926
        %5431 = vmatpush.bf16.msra.mxu0 %v4925
        %5432 = vmatpush.bf16.msra.mxu0 %v4924
        %5433 = vmatpush.bf16.msra.mxu0 %v4923
        %5434 = vmatpush.bf16.msra.mxu0 %v4922
        %5435 = vmatmul.bf16.gmra.mxu0 %v3566
        %v5436 = vpop.f32.mrf.mxu0
        %v5437 = vadd.f32 %v5424, %v5436
        %v5438 = vpop.f32.mrf.mxu0
        %5439 = vdwg.mxu0
        %5440 = vmatpush.bf16.msra.mxu0 %v4937
        %5441 = vmatpush.bf16.msra.mxu0 %v4936
        %5442 = vmatpush.bf16.msra.mxu0 %v4935
        %5443 = vmatpush.bf16.msra.mxu0 %v4934
        %5444 = vmatpush.bf16.msra.mxu0 %v4933
        %5445 = vmatpush.bf16.msra.mxu0 %v4932
        %5446 = vmatpush.bf16.msra.mxu0 %v4931
        %5447 = vmatpush.bf16.msra.mxu0 %v4930
        %5448 = vmatmul.bf16.gmra.mxu0 %v3567
        %v5449 = vpop.f32.mrf.mxu0
        %v5450 = vadd.f32 %v5437, %v5449
        %v5451 = vpop.f32.mrf.mxu0
        %5452 = vdwg.mxu0
        %5453 = vmatpush.bf16.msra.mxu0 0
        %5454 = vmatpush.bf16.msra.mxu0 0
        %5455 = vmatpush.bf16.msra.mxu0 0
        %5456 = vmatpush.bf16.msra.mxu0 0
        %5457 = vmatpush.bf16.msra.mxu0 %v4941
        %5458 = vmatpush.bf16.msra.mxu0 %v4940
        %5459 = vmatpush.bf16.msra.mxu0 %v4939
        %5460 = vmatpush.bf16.msra.mxu0 %v4938
        %5461 = vmatmul.bf16.gmra.mxu0 %v5139
        %v5462 = vpop.f32.mrf.mxu0
        %v5463 = vadd.f32 %v5450, %v5462
        %v5464 = vpop.f32.mrf.mxu0
        %5465 = vdwg.mxu0
        %v5466 = vmax.f32 %v5463, 0.0
        %v5467 = vpack.c.bf16 %v5466, %v5466
        %v5468 = vld [vmem:[%s7] sm:$0xf]
        %v5469 = vld [vmem:[%s7 + $0x4] sm:$0xf]
        %v5470 = vld [vmem:[%s7 + $0x8] sm:$0xf]
        %v5471 = vld [vmem:[%s7 + $0xc] sm:$0xf]
        %v5472 = vld [vmem:[%s7 + $0x10] sm:$0xf]
        %v5473 = vld [vmem:[%s7 + $0x14] sm:$0xf]
        %v5474 = vld [vmem:[%s7 + $0x18] sm:$0xf]
        %v5475 = vld [vmem:[%s7 + $0x1c] sm:$0xf]
        %v5476 = vld [vmem:[%s7 + $0x20] sm:$0xf]
        %v5477 = vld [vmem:[%s7 + $0x24] sm:$0xf]
        %v5478 = vld [vmem:[%s7 + $0x28] sm:$0xf]
        %v5479 = vld [vmem:[%s7 + $0x2c] sm:$0xf]
        %v5480 = vld [vmem:[%s7 + $0x30] sm:$0xf]
        %v5481 = vld [vmem:[%s7 + $0x34] sm:$0xf]
        %v5482 = vld [vmem:[%s7 + $0x38] sm:$0xf]
        %v5483 = vld [vmem:[%s7 + $0x3c] sm:$0xf]
        %v5484 = vld [vmem:[%s8] sm:$0x1]
        %v5501 = vunpack.c.l.b16 %v5468
        %v5502 = vunpack.c.l.b16 %v5469
        %v5503 = vunpack.c.l.b16 %v5470
        %v5504 = vunpack.c.l.b16 %v5471
        %v5505 = vunpack.c.l.b16 %v5472
        %v5506 = vunpack.c.l.b16 %v5473
        %v5507 = vunpack.c.l.b16 %v5474
        %v5508 = vunpack.c.l.b16 %v5475
        %v5509 = vunpack.c.l.b16 %v5476
        %v5510 = vunpack.c.l.b16 %v5477
        %v5511 = vunpack.c.l.b16 %v5478
        %v5512 = vunpack.c.l.b16 %v5479
        %v5513 = vunpack.c.l.b16 %v5480
        %v5514 = vunpack.c.l.b16 %v5481
        %v5515 = vunpack.c.l.b16 %v5482
        %v5516 = vunpack.c.l.b16 %v5483
        %v5517 = vpack.c.b16 %v5502, %v5501
        %v5518 = vpack.c.b16 %v5504, %v5503
        %v5519 = vpack.c.b16 %v5506, %v5505
        %v5520 = vpack.c.b16 %v5508, %v5507
        %v5521 = vpack.c.b16 %v5510, %v5509
        %v5522 = vpack.c.b16 %v5512, %v5511
        %v5523 = vpack.c.b16 %v5514, %v5513
        %v5524 = vpack.c.b16 %v5516, %v5515
        %5533 = vmatpush.bf16.msra.mxu0 %v5524
        %5534 = vmatpush.bf16.msra.mxu0 %v5523
        %5535 = vmatpush.bf16.msra.mxu0 %v5522
        %5536 = vmatpush.bf16.msra.mxu0 %v5521
        %5537 = vmatpush.bf16.msra.mxu0 %v5520
        %5538 = vmatpush.bf16.msra.mxu0 %v5519
        %5539 = vmatpush.bf16.msra.mxu0 %v5518
        %5540 = vmatpush.bf16.msra.mxu0 %v5517
        %5541 = vmatmul.bf16.gmra.mxu0 %v5467
        %v5542 = vpop.f32.mrf.mxu0
        %v5543 = vadd.f32 %v5484, %v5542
        %v5544 = vpop.f32.mrf.mxu0
        %5545 = vdwg.mxu0
        %vm5546 = vcmask 73728
        %5547 = vst.msk [vmem:[%s324] sm:$0x1] %vm5546, %v5543
        %s5548 = sand.u32 %s225, 1
        %s5549 = scalar_lea.sflag [#allocation8], %s5548
        %s5550 = sand.u32 %s225, 1
        %s5551 = scalar_lea.vmem [#allocation7], %s5550
        // Predicated region
        $region57: #{simple_cnn_forward.1} parent=55 // pred_check
          %p5552 = pneg %p235
        $region58: #{simple_cnn_forward.1} parent=55 // pred_check_branch
          %5554 = sbr.rel (%p5552) target = $region60
        $region59: #{simple_cnn_forward.1} parent=55 // pred_region
          %5556 = vsyncadd %s5549, 0
          %s5557 = scalar_lea.hbm %s9, %s23
          %s5559 = sshll.u32 %s5551, 4
          %s5560 = int_to_ptr.vmem [resolvable:$true] %s5559
          %s5561 = sshll.u32 %s5557, 4
          %s5562 = int_to_ptr.hbm [resolvable:$true] %s5561
          %5564 = dma.vmem_to_hbm [thread:$0]  %s5560, 16, %s5562, %s5549
        $region60: #{simple_cnn_forward.1} parent=55 // pred_fallthru
          _
      $region56: #{simple_cnn_forward.1} parent=5 // pred_fallthru
        _
      %p5565 = scmp.le.s32.totalorder 2, %s18
      // Predicated region
      $region61: #{simple_cnn_forward.1} parent=5 // pred_check
        %p5566 = pneg %p5565
      $region62: #{simple_cnn_forward.1} parent=5 // pred_check_branch
        %5568 = sbr.rel (%p5566) target = $region64
      $region63: #{simple_cnn_forward.1} parent=5 // pred_region
        %s5569 = ssub.s32 %s18, 2
        // Predicated region
        $region65: #{simple_cnn_forward.1} parent=63 // pred_check
          %p5570 = pneg %p241
        $region66: #{simple_cnn_forward.1} parent=63 // pred_check_branch
          %5572 = sbr.rel (%p5570) target = $region68
        $region67: #{simple_cnn_forward.1} parent=63 // pred_region
          %s5573 = sand.u32 %s226, 1
          %s5574 = scalar_lea.sflag [#allocation8], %s5573
          %s5575 = sand.u32 %s226, 1
          %s5576 = scalar_lea.vmem [#allocation7], %s5575
          %5578 = dma.done %s5574, 16
        $region68: #{simple_cnn_forward.1} parent=63 // pred_fallthru
          _
      $region64: #{simple_cnn_forward.1} parent=5 // pred_fallthru
        _
    $region6: #{simple_cnn_forward.1} parent=1 // loop_footer
      %s22 = sadd.s32 1, %s18
    $region7: #{simple_cnn_forward.1} parent=1 // loop_footer_branch
      %17 = sbr.rel target = $region3
    $region8: #{simple_cnn_forward.1} parent=1 // loop_exit
      _
    %5579 = vsyncpa [#allocation8], 1
    %s5580 = scalar_lea.sflag [#allocation8], 1
    %5581 = vsyncpa %s5580, 1

</llo_original>
